<compile_context>
chip_gen: v7x
topology: tpu7x:2x2x1
jax: 0.10.0
libtpu: 0.0.40
codegen_flags: <defaults>
</compile_context>

<pallas_src>
import jax
import jax.numpy as jnp
import numpy as np
from jax.experimental import pallas as pl
from jax.experimental.pallas import tpu as pltpu

# ----- static problem sizes -------------------------------------------------
B = 2            # batch
L = 64           # byte-token sequence length
E = 150          # embedding dim (nn.Embedding(256, 150, padding_idx=255))
C = 128          # conv channels
H2 = 64          # fc2 output features
RD = 100         # reduce-layer width
NCLS = 2         # head output

# derived sequence lengths (match PyTorch Conv1d / MaxPool1d formulas)
L1C = L + 2 - 7 + 1            # conv1: k=7, pad=1            -> 60
L1P = (L1C + 2 - 3) // 3 + 1   # maxpool: k=3, s=3, pad=1     -> 20
L2C = L1P + 2 - 7 + 1          # conv2                        -> 16
L2P = (L2C + 2 - 3) // 3 + 1   # maxpool                      -> 6
L3 = L2P                       # conv3..conv6: k=3, pad=1 keep length

KPARAM_ORDER = ('embed', 'w1', 'b1', 'w2f', 'b2', 'w3f', 'b3', 'w4f', 'b4',
                'w5f', 'b5', 'w6f', 'b6', 'wf1', 'bf1', 'wf2', 'bf2',
                'wrh', 'brh')


# ----- Pallas kernel ---------------------------------------------------------
def composite_kernel(ids_ref, embed_ref,
                     w1_ref, b1_ref, w2f_ref, b2_ref,
                     w3f_ref, b3_ref, w4f_ref, b4_ref,
                     w5f_ref, b5_ref, w6f_ref, b6_ref,
                     wf1_ref, bf1_ref, wf2_ref, bf2_ref,
                     wrh_ref, brh_ref,
                     out_ref, scr0, scr1):
    f32 = jnp.float32
    bf16 = jnp.bfloat16
    scrs = (scr0, scr1)
    zrow = jnp.zeros((1, C), f32)

    # ---------- embedding as a one-hot matmul (table row 255 is zero) ---------
    ids = ids_ref[...]                                              # (B*L, 1) i32
    lane = jax.lax.broadcasted_iota(jnp.int32, (B * L, 256), 1)
    onehot = jnp.where(lane == ids, 1.0, 0.0).astype(bf16)          # (B*L, 256)
    emb = jnp.dot(onehot, embed_ref[...],
                  preferred_element_type=f32).astype(bf16)          # (B*L, E)

    # ---------- helpers --------------------------------------------------------
    def maxpool3(h, lin, scr):
        # MaxPool1d(kernel=3, stride=3, padding=1).  Zero padding == -inf padding
        # here because h is post-ReLU (>= 0) and every window has >=2 real taps.
        lout = (lin + 2 - 3) // 3 + 1
        scr[0:lin, :] = h                                   # offset-0 aligned store
        parts = [jnp.maximum(h[0:1, :], h[1:2, :])]         # left-padded window
        nfull = lout - 1 if 3 * (lout - 1) + 1 <= lin - 1 else lout - 2
        a = scr[pl.ds(2, nfull, stride=3), :]
        b = scr[pl.ds(3, nfull, stride=3), :]
        c = scr[pl.ds(4, nfull, stride=3), :]
        parts.append(jnp.maximum(jnp.maximum(a, b), c))
        if nfull == lout - 2:                               # right-padded window
            p = lout - 1
            parts.append(jnp.maximum(h[3 * p - 1:3 * p, :], h[3 * p:3 * p + 1, :]))
        return jnp.concatenate(parts, axis=0)               # (lout, C)

    def im2col(h, k):
        # (lin, C) -> (lin, k*C) patches of a pad=1 conv; lane-aligned 128 pieces.
        hp = jnp.concatenate([zrow, h, zrow], axis=0)
        lout = hp.shape[0] - k + 1
        return jnp.concatenate([hp[j:j + lout, :] for j in range(k)], axis=1)

    # ---------- conv1 (k=7, pad=1): 7 batched tap matmuls + shifted adds -------
    acc1 = [None] * B
    for j in range(7):
        s = jnp.dot(emb, w1_ref[j], preferred_element_type=f32)     # (B*L, C)
        for b in range(B):
            base = b * L
            if j == 0:        # output row 0 only sees left padding for this tap
                t = jnp.concatenate([zrow, s[base:base + L1C - 1, :]], axis=0)
            elif j == 6:      # output row 59 only sees right padding for this tap
                t = jnp.concatenate([s[base + 5:base + 5 + L1C - 1, :], zrow],
                                    axis=0)
            else:
                t = s[base + j - 1:base + j - 1 + L1C, :]
            acc1[b] = t if acc1[b] is None else acc1[b] + t

    # ---------- pool1 + conv2 im2col (per sample), conv2 batched ---------------
    patches2 = []
    for b in range(B):
        h1 = jnp.maximum(acc1[b] + b1_ref[...], 0.0)                # (60, C)
        pool1 = maxpool3(h1, L1C, scrs[b])                          # (20, C)
        patches2.append(im2col(pool1, 7))                           # (16, 7*C)
    patch2 = jnp.concatenate(patches2, axis=0).astype(bf16)         # (32, 896)
    h2_all = jnp.maximum(
        jnp.dot(patch2, w2f_ref[...], preferred_element_type=f32) + b2_ref[...],
        0.0)                                                        # (32, C)

    # ---------- pool2 (per sample), conv3..conv6 batched -----------------------
    h_all = jnp.concatenate(
        [maxpool3(h2_all[b * L2C:(b + 1) * L2C, :], L2C, scrs[b])
         for b in range(B)], axis=0)                                # (B*6, C)
    for w_ref, bias_ref in ((w3f_ref, b3_ref), (w4f_ref, b4_ref),
                            (w5f_ref, b5_ref), (w6f_ref, b6_ref)):
        patch = jnp.concatenate(
            [im2col(h_all[b * L3:(b + 1) * L3, :], 3) for b in range(B)],
            axis=0).astype(bf16)                                    # (B*6, 3C)
        h_all = jnp.maximum(
            jnp.dot(patch, w_ref[...], preferred_element_type=f32) + bias_ref[...],
            0.0)                                                    # (B*6, C)

    # ---------- AdaptiveMaxPool1d(1) + batched FC chain -------------------------
    g = jnp.concatenate(
        [jnp.max(h_all[b * L3:(b + 1) * L3, :], axis=0, keepdims=True)
         for b in range(B)], axis=0)                                # (B, C)
    f1 = jnp.maximum(
        jnp.dot(g.astype(bf16), wf1_ref[...], preferred_element_type=f32)
        + bf1_ref[...], 0.0)                                        # (B, C)
    f2 = jnp.maximum(
        jnp.dot(f1.astype(bf16), wf2_ref[...], preferred_element_type=f32)
        + bf2_ref[...], 0.0)                                        # (B, H2)
    # reduce + head folded offline into (wrh, brh); dropout = identity in eval
    out_ref[...] = jnp.dot(f2, wrh_ref[...],
                           preferred_element_type=f32) + brh_ref[...]


# ----- wrapper ----------------------------------------------------------------
@jax.jit
def composite_forward(input_ids, kp):
    ids = input_ids.reshape(B * L, 1).astype(jnp.int32)
    args = (ids,) + tuple(kp[k] for k in KPARAM_ORDER)
    return pl.pallas_call(
        composite_kernel,
        out_shape=jax.ShapeDtypeStruct((B, NCLS), jnp.float32),
        in_specs=[pl.BlockSpec(memory_space=pltpu.MemorySpace.VMEM)] * len(args),
        out_specs=pl.BlockSpec(memory_space=pltpu.MemorySpace.VMEM),
        scratch_shapes=[pltpu.VMEM((64, C), jnp.float32),   # pool staging, sample 0
                        pltpu.VMEM((64, C), jnp.float32)],  # pool staging, sample 1
    )(*args)


# ----- deterministic parameter init (synthetic; no checkpoint load) -----------
def init_params(key):
    keys = jax.random.split(key, 21)

    def u(k, shape, scale=0.08):
        return jax.random.uniform(k, shape, jnp.float32, minval=-scale,
                                  maxval=scale)

    p = {}
    embed = 0.1 * jax.random.normal(keys[0], (256, E), jnp.float32)
    p['embed'] = embed.at[255].set(0.0)                 # padding_idx = 255
    # Conv1d weights stored as (k, C_in, C_out) = PyTorch weight transposed
    p['w1'], p['b1'] = u(keys[1], (7, E, C)), u(keys[2], (1, C))
    p['w2'], p['b2'] = u(keys[3], (7, C, C)), u(keys[4], (1, C))
    p['w3'], p['b3'] = u(keys[5], (3, C, C)), u(keys[6], (1, C))
    p['w4'], p['b4'] = u(keys[7], (3, C, C)), u(keys[8], (1, C))
    p['w5'], p['b5'] = u(keys[9], (3, C, C)), u(keys[10], (1, C))
    p['w6'], p['b6'] = u(keys[11], (3, C, C)), u(keys[12], (1, C))
    # Linear weights stored as (in, out) = PyTorch weight transposed
    p['wf1'], p['bf1'] = u(keys[13], (C, C)), u(keys[14], (1, C))
    p['wf2'], p['bf2'] = u(keys[15], (C, H2)), u(keys[16], (1, H2))
    p['wr'], p['br'] = u(keys[17], (H2, RD)), u(keys[18], (1, RD))
    p['wh'], p['bh'] = u(keys[19], (RD, NCLS)), u(keys[20], (1, NCLS))
    return p


def prepare_kernel_params(p):
    """bf16 weights (halve DMA), flattened im2col conv weights, folded reduce+head."""
    bf16 = jnp.bfloat16
    kp = {}
    kp['embed'] = p['embed'].astype(bf16)                 # (256, 150)
    kp['w1'] = p['w1'].astype(bf16)                       # (7, 150, 128)
    kp['b1'] = p['b1']
    kp['w2f'] = p['w2'].astype(bf16).reshape(7 * C, C)    # (896, 128)
    kp['b2'] = p['b2']
    for i in range(3, 7):
        kp[f'w{i}f'] = p[f'w{i}'].astype(bf16).reshape(3 * C, C)   # (384, 128)
        kp[f'b{i}'] = p[f'b{i}']
    kp['wf1'], kp['bf1'] = p['wf1'].astype(bf16), p['bf1']
    kp['wf2'], kp['bf2'] = p['wf2'].astype(bf16), p['bf2']
    # reduce @ head folded (no nonlinearity between them), kept in f32
    kp['wrh'] = p['wr'] @ p['wh']                         # (64, 2)
    kp['brh'] = p['br'] @ p['wh'] + p['bh']               # (1, 2)
    return kp


# ----- pure-JAX reference (PyTorch semantics, bf16-rounded weights) ------------
def reference_forward(input_ids, params):
    bf16, f32 = jnp.bfloat16, jnp.float32

    def r(w):   # match the kernel's bf16 weight storage
        return w.astype(bf16).astype(f32)

    x = jnp.take(r(params['embed']), input_ids, axis=0)    # (B, L, E)

    def conv_relu(h, w, b):
        k = w.shape[0]
        hp = jnp.pad(h, ((0, 0), (1, 1), (0, 0)))
        lout = hp.shape[1] - k + 1
        acc = sum(jnp.einsum('blc,cd->bld', hp[:, j:j + lout, :], r(w[j]))
                  for j in range(k))
        return jax.nn.relu(acc + b)

    def maxpool3(h):
        hp = jnp.pad(h, ((0, 0), (1, 1), (0, 0)))          # 0-pad ok: h >= 0
        lout = (hp.shape[1] - 3) // 3 + 1
        hp = hp[:, :lout * 3, :].reshape(h.shape[0], lout, 3, h.shape[2])
        return hp.max(axis=2)

    h = maxpool3(conv_relu(x, params['w1'], params['b1']))
    h = maxpool3(conv_relu(h, params['w2'], params['b2']))
    for nm in ('3', '4', '5', '6'):
        h = conv_relu(h, params['w' + nm], params['b' + nm])
    g = h.max(axis=1)                                      # adaptive max pool
    f1 = jax.nn.relu(g @ r(params['wf1']) + params['bf1'])
    f2 = jax.nn.relu(f1 @ r(params['wf2']) + params['bf2'])
    red = f2 @ params['wr'] + params['br']
    return red @ params['wh'] + params['bh']


if __name__ == "__main__":
    key = jax.random.PRNGKey(0)
    pkey, dkey = jax.random.split(key)
    params = init_params(pkey)
    kparams = prepare_kernel_params(params)

    # byte_tokens.input_ids ; word_tokens is unused by the char_cnn path
    input_ids = jax.random.randint(dkey, (B, L), 0, 256, dtype=jnp.int32)
    input_ids = input_ids.at[:, -8:].set(255)              # trailing padding bytes

    out = composite_forward(input_ids, kparams)
    out = jax.block_until_ready(out)
    assert out.shape == (B, NCLS)

    ref = reference_forward(input_ids, params)
    np.testing.assert_allclose(np.asarray(out), np.asarray(ref),
                               rtol=5e-2, atol=5e-2)
    print("KERNEL_OK")
</pallas_src>

<mosaic_0001>
module attributes {stable_mosaic.version = 11 : i64} {
  func.func @composite_kernel(%arg0: memref<128x1xi32, #tpu.memory_space<vmem>>, %arg1: memref<256x150xbf16, #tpu.memory_space<vmem>>, %arg2: memref<7x150x128xbf16, #tpu.memory_space<vmem>>, %arg3: memref<1x128xf32, #tpu.memory_space<vmem>>, %arg4: memref<896x128xbf16, #tpu.memory_space<vmem>>, %arg5: memref<1x128xf32, #tpu.memory_space<vmem>>, %arg6: memref<384x128xbf16, #tpu.memory_space<vmem>>, %arg7: memref<1x128xf32, #tpu.memory_space<vmem>>, %arg8: memref<384x128xbf16, #tpu.memory_space<vmem>>, %arg9: memref<1x128xf32, #tpu.memory_space<vmem>>, %arg10: memref<384x128xbf16, #tpu.memory_space<vmem>>, %arg11: memref<1x128xf32, #tpu.memory_space<vmem>>, %arg12: memref<384x128xbf16, #tpu.memory_space<vmem>>, %arg13: memref<1x128xf32, #tpu.memory_space<vmem>>, %arg14: memref<128x128xbf16, #tpu.memory_space<vmem>>, %arg15: memref<1x128xf32, #tpu.memory_space<vmem>>, %arg16: memref<128x64xbf16, #tpu.memory_space<vmem>>, %arg17: memref<1x64xf32, #tpu.memory_space<vmem>>, %arg18: memref<64x2xf32, #tpu.memory_space<vmem>>, %arg19: memref<1x2xf32, #tpu.memory_space<vmem>>, %arg20: memref<2x2xf32, #tpu.memory_space<vmem>>, %arg21: memref<64x128xf32, #tpu.memory_space<vmem>>, %arg22: memref<64x128xf32, #tpu.memory_space<vmem>>) attributes {dimension_semantics = [], scalar_prefetch = 0 : i64, scratch_operands = 2 : i64, tpu.core_type = #tpu.core_type<tc>} {
    %cst = arith.constant 0.000000e+00 : f32
    %0 = vector.broadcast %cst : f32 to vector<1x128xf32>
    %c0 = arith.constant 0 : index
    %c0_0 = arith.constant 0 : index
    %1 = vector.load %arg0[%c0, %c0_0] : memref<128x1xi32, #tpu.memory_space<vmem>>, vector<128x1xi32>
    %2 = tpu.iota {dimensions = array<i32: 1>} : vector<128x256xi32>
    %3 = vector.broadcast %1 : vector<128x1xi32> to vector<128x256xi32>
    %4 = arith.cmpi eq, %2, %3 : vector<128x256xi32>
    %cst_1 = arith.constant 1.000000e+00 : f32
    %cst_2 = arith.constant 0.000000e+00 : f32
    %5 = vector.broadcast %cst_1 : f32 to vector<128x256xf32>
    %6 = vector.broadcast %cst_2 : f32 to vector<128x256xf32>
    %7 = arith.select %4, %5, %6 : vector<128x256xi1>, vector<128x256xf32>
    %8 = arith.truncf %7 : vector<128x256xf32> to vector<128x256xbf16>
    %c0_3 = arith.constant 0 : index
    %c0_4 = arith.constant 0 : index
    %9 = vector.load %arg1[%c0_3, %c0_4] : memref<256x150xbf16, #tpu.memory_space<vmem>>, vector<256x150xbf16>
    %cst_5 = arith.constant dense<0.000000e+00> : vector<128x150xf32>
    %10 = tpu.matmul %8, %9, %cst_5 {dimension_numbers = #tpu.dot_dimension_numbers<[1], [0], [0], [1], [0, 0, 1, 1], [], []>} : vector<128x256xbf16>, vector<256x150xbf16>, vector<128x150xf32> -> vector<128x150xf32>
    %11 = arith.truncf %10 : vector<128x150xf32> to vector<128x150xbf16>
    %c0_6 = arith.constant 0 : index
    %c0_7 = arith.constant 0 : index
    %c0_8 = arith.constant 0 : index
    %12 = vector.load %arg2[%c0_6, %c0_7, %c0_8] : memref<7x150x128xbf16, #tpu.memory_space<vmem>>, vector<1x150x128xbf16>
    %13 = vector.shape_cast %12 : vector<1x150x128xbf16> to vector<150x128xbf16>
    %cst_9 = arith.constant dense<0.000000e+00> : vector<128x128xf32>
    %14 = tpu.matmul %11, %13, %cst_9 {dimension_numbers = #tpu.dot_dimension_numbers<[1], [0], [0], [1], [0, 0, 1, 1], [], []>} : vector<128x150xbf16>, vector<150x128xbf16>, vector<128x128xf32> -> vector<128x128xf32>
    %15 = vector.extract_strided_slice %14 {offsets = [0, 0], sizes = [59, 128], strides = [1, 1]} : vector<128x128xf32> to vector<59x128xf32>
    %16 = tpu.concatenate %0, %15 in 0 : vector<1x128xf32>, vector<59x128xf32> -> vector<60x128xf32>
    %17 = vector.extract_strided_slice %14 {offsets = [64, 0], sizes = [59, 128], strides = [1, 1]} : vector<128x128xf32> to vector<59x128xf32>
    %18 = tpu.concatenate %0, %17 in 0 : vector<1x128xf32>, vector<59x128xf32> -> vector<60x128xf32>
    %c1 = arith.constant 1 : index
    %c0_10 = arith.constant 0 : index
    %c0_11 = arith.constant 0 : index
    %19 = vector.load %arg2[%c1, %c0_10, %c0_11] : memref<7x150x128xbf16, #tpu.memory_space<vmem>>, vector<1x150x128xbf16>
    %20 = vector.shape_cast %19 : vector<1x150x128xbf16> to vector<150x128xbf16>
    %cst_12 = arith.constant dense<0.000000e+00> : vector<128x128xf32>
    %21 = tpu.matmul %11, %20, %cst_12 {dimension_numbers = #tpu.dot_dimension_numbers<[1], [0], [0], [1], [0, 0, 1, 1], [], []>} : vector<128x150xbf16>, vector<150x128xbf16>, vector<128x128xf32> -> vector<128x128xf32>
    %22 = vector.extract_strided_slice %21 {offsets = [0, 0], sizes = [60, 128], strides = [1, 1]} : vector<128x128xf32> to vector<60x128xf32>
    %23 = arith.addf %16, %22 : vector<60x128xf32>
    %24 = vector.extract_strided_slice %21 {offsets = [64, 0], sizes = [60, 128], strides = [1, 1]} : vector<128x128xf32> to vector<60x128xf32>
    %25 = arith.addf %18, %24 : vector<60x128xf32>
    %c2 = arith.constant 2 : index
    %c0_13 = arith.constant 0 : index
    %c0_14 = arith.constant 0 : index
    %26 = vector.load %arg2[%c2, %c0_13, %c0_14] : memref<7x150x128xbf16, #tpu.memory_space<vmem>>, vector<1x150x128xbf16>
    %27 = vector.shape_cast %26 : vector<1x150x128xbf16> to vector<150x128xbf16>
    %cst_15 = arith.constant dense<0.000000e+00> : vector<128x128xf32>
    %28 = tpu.matmul %11, %27, %cst_15 {dimension_numbers = #tpu.dot_dimension_numbers<[1], [0], [0], [1], [0, 0, 1, 1], [], []>} : vector<128x150xbf16>, vector<150x128xbf16>, vector<128x128xf32> -> vector<128x128xf32>
    %29 = vector.extract_strided_slice %28 {offsets = [1, 0], sizes = [60, 128], strides = [1, 1]} : vector<128x128xf32> to vector<60x128xf32>
    %30 = arith.addf %23, %29 : vector<60x128xf32>
    %31 = vector.extract_strided_slice %28 {offsets = [65, 0], sizes = [60, 128], strides = [1, 1]} : vector<128x128xf32> to vector<60x128xf32>
    %32 = arith.addf %25, %31 : vector<60x128xf32>
    %c3 = arith.constant 3 : index
    %c0_16 = arith.constant 0 : index
    %c0_17 = arith.constant 0 : index
    %33 = vector.load %arg2[%c3, %c0_16, %c0_17] : memref<7x150x128xbf16, #tpu.memory_space<vmem>>, vector<1x150x128xbf16>
    %34 = vector.shape_cast %33 : vector<1x150x128xbf16> to vector<150x128xbf16>
    %cst_18 = arith.constant dense<0.000000e+00> : vector<128x128xf32>
    %35 = tpu.matmul %11, %34, %cst_18 {dimension_numbers = #tpu.dot_dimension_numbers<[1], [0], [0], [1], [0, 0, 1, 1], [], []>} : vector<128x150xbf16>, vector<150x128xbf16>, vector<128x128xf32> -> vector<128x128xf32>
    %36 = vector.extract_strided_slice %35 {offsets = [2, 0], sizes = [60, 128], strides = [1, 1]} : vector<128x128xf32> to vector<60x128xf32>
    %37 = arith.addf %30, %36 : vector<60x128xf32>
    %38 = vector.extract_strided_slice %35 {offsets = [66, 0], sizes = [60, 128], strides = [1, 1]} : vector<128x128xf32> to vector<60x128xf32>
    %39 = arith.addf %32, %38 : vector<60x128xf32>
    %c4 = arith.constant 4 : index
    %c0_19 = arith.constant 0 : index
    %c0_20 = arith.constant 0 : index
    %40 = vector.load %arg2[%c4, %c0_19, %c0_20] : memref<7x150x128xbf16, #tpu.memory_space<vmem>>, vector<1x150x128xbf16>
    %41 = vector.shape_cast %40 : vector<1x150x128xbf16> to vector<150x128xbf16>
    %cst_21 = arith.constant dense<0.000000e+00> : vector<128x128xf32>
    %42 = tpu.matmul %11, %41, %cst_21 {dimension_numbers = #tpu.dot_dimension_numbers<[1], [0], [0], [1], [0, 0, 1, 1], [], []>} : vector<128x150xbf16>, vector<150x128xbf16>, vector<128x128xf32> -> vector<128x128xf32>
    %43 = vector.extract_strided_slice %42 {offsets = [3, 0], sizes = [60, 128], strides = [1, 1]} : vector<128x128xf32> to vector<60x128xf32>
    %44 = arith.addf %37, %43 : vector<60x128xf32>
    %45 = vector.extract_strided_slice %42 {offsets = [67, 0], sizes = [60, 128], strides = [1, 1]} : vector<128x128xf32> to vector<60x128xf32>
    %46 = arith.addf %39, %45 : vector<60x128xf32>
    %c5 = arith.constant 5 : index
    %c0_22 = arith.constant 0 : index
    %c0_23 = arith.constant 0 : index
    %47 = vector.load %arg2[%c5, %c0_22, %c0_23] : memref<7x150x128xbf16, #tpu.memory_space<vmem>>, vector<1x150x128xbf16>
    %48 = vector.shape_cast %47 : vector<1x150x128xbf16> to vector<150x128xbf16>
    %cst_24 = arith.constant dense<0.000000e+00> : vector<128x128xf32>
    %49 = tpu.matmul %11, %48, %cst_24 {dimension_numbers = #tpu.dot_dimension_numbers<[1], [0], [0], [1], [0, 0, 1, 1], [], []>} : vector<128x150xbf16>, vector<150x128xbf16>, vector<128x128xf32> -> vector<128x128xf32>
    %50 = vector.extract_strided_slice %49 {offsets = [4, 0], sizes = [60, 128], strides = [1, 1]} : vector<128x128xf32> to vector<60x128xf32>
    %51 = arith.addf %44, %50 : vector<60x128xf32>
    %52 = vector.extract_strided_slice %49 {offsets = [68, 0], sizes = [60, 128], strides = [1, 1]} : vector<128x128xf32> to vector<60x128xf32>
    %53 = arith.addf %46, %52 : vector<60x128xf32>
    %c6 = arith.constant 6 : index
    %c0_25 = arith.constant 0 : index
    %c0_26 = arith.constant 0 : index
    %54 = vector.load %arg2[%c6, %c0_25, %c0_26] : memref<7x150x128xbf16, #tpu.memory_space<vmem>>, vector<1x150x128xbf16>
    %55 = vector.shape_cast %54 : vector<1x150x128xbf16> to vector<150x128xbf16>
    %cst_27 = arith.constant dense<0.000000e+00> : vector<128x128xf32>
    %56 = tpu.matmul %11, %55, %cst_27 {dimension_numbers = #tpu.dot_dimension_numbers<[1], [0], [0], [1], [0, 0, 1, 1], [], []>} : vector<128x150xbf16>, vector<150x128xbf16>, vector<128x128xf32> -> vector<128x128xf32>
    %57 = vector.extract_strided_slice %56 {offsets = [5, 0], sizes = [59, 128], strides = [1, 1]} : vector<128x128xf32> to vector<59x128xf32>
    %58 = tpu.concatenate %57, %0 in 0 : vector<59x128xf32>, vector<1x128xf32> -> vector<60x128xf32>
    %59 = arith.addf %51, %58 : vector<60x128xf32>
    %60 = vector.extract_strided_slice %56 {offsets = [69, 0], sizes = [59, 128], strides = [1, 1]} : vector<128x128xf32> to vector<59x128xf32>
    %61 = tpu.concatenate %60, %0 in 0 : vector<59x128xf32>, vector<1x128xf32> -> vector<60x128xf32>
    %62 = arith.addf %53, %61 : vector<60x128xf32>
    %c0_28 = arith.constant 0 : index
    %c0_29 = arith.constant 0 : index
    %63 = vector.load %arg3[%c0_28, %c0_29] : memref<1x128xf32, #tpu.memory_space<vmem>>, vector<1x128xf32>
    %64 = vector.broadcast %63 : vector<1x128xf32> to vector<60x128xf32>
    %65 = arith.addf %59, %64 : vector<60x128xf32>
    %cst_30 = arith.constant 0.000000e+00 : f32
    %66 = vector.broadcast %cst_30 : f32 to vector<60x128xf32>
    %67 = arith.maximumf %65, %66 : vector<60x128xf32>
    %c0_31 = arith.constant 0 : index
    %c0_32 = arith.constant 0 : index
    %68 = vector.load %arg21[%c0_31, %c0_32] : memref<64x128xf32, #tpu.memory_space<vmem>>, vector<60x128xf32>
    tpu.vector_store %arg21[%c0_31, %c0_32], %67 {strides = array<i32>} : memref<64x128xf32, #tpu.memory_space<vmem>>, vector<60x128xf32>,
    %69 = vector.extract_strided_slice %67 {offsets = [0, 0], sizes = [1, 128], strides = [1, 1]} : vector<60x128xf32> to vector<1x128xf32>
    %70 = vector.extract_strided_slice %67 {offsets = [1, 0], sizes = [1, 128], strides = [1, 1]} : vector<60x128xf32> to vector<1x128xf32>
    %71 = arith.maximumf %69, %70 : vector<1x128xf32>
    %c2_33 = arith.constant 2 : index
    %c0_34 = arith.constant 0 : index
    %72 = tpu.strided_load %arg21[%c2_33, %c0_34] {strides = array<i32: 3, 1>} : memref<64x128xf32, #tpu.memory_space<vmem>>, vector<19x128xf32>
    %c3_35 = arith.constant 3 : index
    %c0_36 = arith.constant 0 : index
    %73 = tpu.strided_load %arg21[%c3_35, %c0_36] {strides = array<i32: 3, 1>} : memref<64x128xf32, #tpu.memory_space<vmem>>, vector<19x128xf32>
    %c4_37 = arith.constant 4 : index
    %c0_38 = arith.constant 0 : index
    %74 = tpu.strided_load %arg21[%c4_37, %c0_38] {strides = array<i32: 3, 1>} : memref<64x128xf32, #tpu.memory_space<vmem>>, vector<19x128xf32>
    %75 = arith.maximumf %72, %73 : vector<19x128xf32>
    %76 = arith.maximumf %75, %74 : vector<19x128xf32>
    %77 = tpu.concatenate %71, %76 in 0 : vector<1x128xf32>, vector<19x128xf32> -> vector<20x128xf32>
    %78 = tpu.concatenate %0, %77, %0 in 0 : vector<1x128xf32>, vector<20x128xf32>, vector<1x128xf32> -> vector<22x128xf32>
    %79 = vector.extract_strided_slice %78 {offsets = [0, 0], sizes = [16, 128], strides = [1, 1]} : vector<22x128xf32> to vector<16x128xf32>
    %80 = vector.extract_strided_slice %78 {offsets = [1, 0], sizes = [16, 128], strides = [1, 1]} : vector<22x128xf32> to vector<16x128xf32>
    %81 = vector.extract_strided_slice %78 {offsets = [2, 0], sizes = [16, 128], strides = [1, 1]} : vector<22x128xf32> to vector<16x128xf32>
    %82 = vector.extract_strided_slice %78 {offsets = [3, 0], sizes = [16, 128], strides = [1, 1]} : vector<22x128xf32> to vector<16x128xf32>
    %83 = vector.extract_strided_slice %78 {offsets = [4, 0], sizes = [16, 128], strides = [1, 1]} : vector<22x128xf32> to vector<16x128xf32>
    %84 = vector.extract_strided_slice %78 {offsets = [5, 0], sizes = [16, 128], strides = [1, 1]} : vector<22x128xf32> to vector<16x128xf32>
    %85 = vector.extract_strided_slice %78 {offsets = [6, 0], sizes = [16, 128], strides = [1, 1]} : vector<22x128xf32> to vector<16x128xf32>
    %86 = tpu.concatenate %79, %80, %81, %82, %83, %84, %85 in 1 : vector<16x128xf32>, vector<16x128xf32>, vector<16x128xf32>, vector<16x128xf32>, vector<16x128xf32>, vector<16x128xf32>, vector<16x128xf32> -> vector<16x896xf32>
    %c0_39 = arith.constant 0 : index
    %c0_40 = arith.constant 0 : index
    %87 = vector.load %arg3[%c0_39, %c0_40] : memref<1x128xf32, #tpu.memory_space<vmem>>, vector<1x128xf32>
    %88 = vector.broadcast %87 : vector<1x128xf32> to vector<60x128xf32>
    %89 = arith.addf %62, %88 : vector<60x128xf32>
    %cst_41 = arith.constant 0.000000e+00 : f32
    %90 = vector.broadcast %cst_41 : f32 to vector<60x128xf32>
    %91 = arith.maximumf %89, %90 : vector<60x128xf32>
    %c0_42 = arith.constant 0 : index
    %c0_43 = arith.constant 0 : index
    %92 = vector.load %arg22[%c0_42, %c0_43] : memref<64x128xf32, #tpu.memory_space<vmem>>, vector<60x128xf32>
    tpu.vector_store %arg22[%c0_42, %c0_43], %91 {strides = array<i32>} : memref<64x128xf32, #tpu.memory_space<vmem>>, vector<60x128xf32>,
    %93 = vector.extract_strided_slice %91 {offsets = [0, 0], sizes = [1, 128], strides = [1, 1]} : vector<60x128xf32> to vector<1x128xf32>
    %94 = vector.extract_strided_slice %91 {offsets = [1, 0], sizes = [1, 128], strides = [1, 1]} : vector<60x128xf32> to vector<1x128xf32>
    %95 = arith.maximumf %93, %94 : vector<1x128xf32>
    %c2_44 = arith.constant 2 : index
    %c0_45 = arith.constant 0 : index
    %96 = tpu.strided_load %arg22[%c2_44, %c0_45] {strides = array<i32: 3, 1>} : memref<64x128xf32, #tpu.memory_space<vmem>>, vector<19x128xf32>
    %c3_46 = arith.constant 3 : index
    %c0_47 = arith.constant 0 : index
    %97 = tpu.strided_load %arg22[%c3_46, %c0_47] {strides = array<i32: 3, 1>} : memref<64x128xf32, #tpu.memory_space<vmem>>, vector<19x128xf32>
    %c4_48 = arith.constant 4 : index
    %c0_49 = arith.constant 0 : index
    %98 = tpu.strided_load %arg22[%c4_48, %c0_49] {strides = array<i32: 3, 1>} : memref<64x128xf32, #tpu.memory_space<vmem>>, vector<19x128xf32>
    %99 = arith.maximumf %96, %97 : vector<19x128xf32>
    %100 = arith.maximumf %99, %98 : vector<19x128xf32>
    %101 = tpu.concatenate %95, %100 in 0 : vector<1x128xf32>, vector<19x128xf32> -> vector<20x128xf32>
    %102 = tpu.concatenate %0, %101, %0 in 0 : vector<1x128xf32>, vector<20x128xf32>, vector<1x128xf32> -> vector<22x128xf32>
    %103 = vector.extract_strided_slice %102 {offsets = [0, 0], sizes = [16, 128], strides = [1, 1]} : vector<22x128xf32> to vector<16x128xf32>
    %104 = vector.extract_strided_slice %102 {offsets = [1, 0], sizes = [16, 128], strides = [1, 1]} : vector<22x128xf32> to vector<16x128xf32>
    %105 = vector.extract_strided_slice %102 {offsets = [2, 0], sizes = [16, 128], strides = [1, 1]} : vector<22x128xf32> to vector<16x128xf32>
    %106 = vector.extract_strided_slice %102 {offsets = [3, 0], sizes = [16, 128], strides = [1, 1]} : vector<22x128xf32> to vector<16x128xf32>
    %107 = vector.extract_strided_slice %102 {offsets = [4, 0], sizes = [16, 128], strides = [1, 1]} : vector<22x128xf32> to vector<16x128xf32>
    %108 = vector.extract_strided_slice %102 {offsets = [5, 0], sizes = [16, 128], strides = [1, 1]} : vector<22x128xf32> to vector<16x128xf32>
    %109 = vector.extract_strided_slice %102 {offsets = [6, 0], sizes = [16, 128], strides = [1, 1]} : vector<22x128xf32> to vector<16x128xf32>
    %110 = tpu.concatenate %103, %104, %105, %106, %107, %108, %109 in 1 : vector<16x128xf32>, vector<16x128xf32>, vector<16x128xf32>, vector<16x128xf32>, vector<16x128xf32>, vector<16x128xf32>, vector<16x128xf32> -> vector<16x896xf32>
    %111 = tpu.concatenate %86, %110 in 0 : vector<16x896xf32>, vector<16x896xf32> -> vector<32x896xf32>
    %112 = arith.truncf %111 : vector<32x896xf32> to vector<32x896xbf16>
    %c0_50 = arith.constant 0 : index
    %c0_51 = arith.constant 0 : index
    %113 = vector.load %arg4[%c0_50, %c0_51] : memref<896x128xbf16, #tpu.memory_space<vmem>>, vector<896x128xbf16>
    %cst_52 = arith.constant dense<0.000000e+00> : vector<32x128xf32>
    %114 = tpu.matmul %112, %113, %cst_52 {dimension_numbers = #tpu.dot_dimension_numbers<[1], [0], [0], [1], [0, 0, 1, 1], [], []>} : vector<32x896xbf16>, vector<896x128xbf16>, vector<32x128xf32> -> vector<32x128xf32>
    %c0_53 = arith.constant 0 : index
    %c0_54 = arith.constant 0 : index
    %115 = vector.load %arg5[%c0_53, %c0_54] : memref<1x128xf32, #tpu.memory_space<vmem>>, vector<1x128xf32>
    %116 = vector.broadcast %115 : vector<1x128xf32> to vector<32x128xf32>
    %117 = arith.addf %114, %116 : vector<32x128xf32>
    %cst_55 = arith.constant 0.000000e+00 : f32
    %118 = vector.broadcast %cst_55 : f32 to vector<32x128xf32>
    %119 = arith.maximumf %117, %118 : vector<32x128xf32>
    %120 = vector.extract_strided_slice %119 {offsets = [0, 0], sizes = [16, 128], strides = [1, 1]} : vector<32x128xf32> to vector<16x128xf32>
    %c0_56 = arith.constant 0 : index
    %c0_57 = arith.constant 0 : index
    %121 = vector.load %arg21[%c0_56, %c0_57] : memref<64x128xf32, #tpu.memory_space<vmem>>, vector<16x128xf32>
    tpu.vector_store %arg21[%c0_56, %c0_57], %120 {strides = array<i32>} : memref<64x128xf32, #tpu.memory_space<vmem>>, vector<16x128xf32>,
    %122 = vector.extract_strided_slice %120 {offsets = [0, 0], sizes = [1, 128], strides = [1, 1]} : vector<16x128xf32> to vector<1x128xf32>
    %123 = vector.extract_strided_slice %120 {offsets = [1, 0], sizes = [1, 128], strides = [1, 1]} : vector<16x128xf32> to vector<1x128xf32>
    %124 = arith.maximumf %122, %123 : vector<1x128xf32>
    %c2_58 = arith.constant 2 : index
    %c0_59 = arith.constant 0 : index
    %125 = tpu.strided_load %arg21[%c2_58, %c0_59] {strides = array<i32: 3, 1>} : memref<64x128xf32, #tpu.memory_space<vmem>>, vector<4x128xf32>
    %c3_60 = arith.constant 3 : index
    %c0_61 = arith.constant 0 : index
    %126 = tpu.strided_load %arg21[%c3_60, %c0_61] {strides = array<i32: 3, 1>} : memref<64x128xf32, #tpu.memory_space<vmem>>, vector<4x128xf32>
    %c4_62 = arith.constant 4 : index
    %c0_63 = arith.constant 0 : index
    %127 = tpu.strided_load %arg21[%c4_62, %c0_63] {strides = array<i32: 3, 1>} : memref<64x128xf32, #tpu.memory_space<vmem>>, vector<4x128xf32>
    %128 = arith.maximumf %125, %126 : vector<4x128xf32>
    %129 = arith.maximumf %128, %127 : vector<4x128xf32>
    %130 = vector.extract_strided_slice %120 {offsets = [14, 0], sizes = [1, 128], strides = [1, 1]} : vector<16x128xf32> to vector<1x128xf32>
    %131 = vector.extract_strided_slice %120 {offsets = [15, 0], sizes = [1, 128], strides = [1, 1]} : vector<16x128xf32> to vector<1x128xf32>
    %132 = arith.maximumf %130, %131 : vector<1x128xf32>
    %133 = tpu.concatenate %124, %129, %132 in 0 : vector<1x128xf32>, vector<4x128xf32>, vector<1x128xf32> -> vector<6x128xf32>
    %134 = vector.extract_strided_slice %119 {offsets = [16, 0], sizes = [16, 128], strides = [1, 1]} : vector<32x128xf32> to vector<16x128xf32>
    %c0_64 = arith.constant 0 : index
    %c0_65 = arith.constant 0 : index
    %135 = vector.load %arg22[%c0_64, %c0_65] : memref<64x128xf32, #tpu.memory_space<vmem>>, vector<16x128xf32>
    tpu.vector_store %arg22[%c0_64, %c0_65], %134 {strides = array<i32>} : memref<64x128xf32, #tpu.memory_space<vmem>>, vector<16x128xf32>,
    %136 = vector.extract_strided_slice %134 {offsets = [0, 0], sizes = [1, 128], strides = [1, 1]} : vector<16x128xf32> to vector<1x128xf32>
    %137 = vector.extract_strided_slice %134 {offsets = [1, 0], sizes = [1, 128], strides = [1, 1]} : vector<16x128xf32> to vector<1x128xf32>
    %138 = arith.maximumf %136, %137 : vector<1x128xf32>
    %c2_66 = arith.constant 2 : index
    %c0_67 = arith.constant 0 : index
    %139 = tpu.strided_load %arg22[%c2_66, %c0_67] {strides = array<i32: 3, 1>} : memref<64x128xf32, #tpu.memory_space<vmem>>, vector<4x128xf32>
    %c3_68 = arith.constant 3 : index
    %c0_69 = arith.constant 0 : index
    %140 = tpu.strided_load %arg22[%c3_68, %c0_69] {strides = array<i32: 3, 1>} : memref<64x128xf32, #tpu.memory_space<vmem>>, vector<4x128xf32>
    %c4_70 = arith.constant 4 : index
    %c0_71 = arith.constant 0 : index
    %141 = tpu.strided_load %arg22[%c4_70, %c0_71] {strides = array<i32: 3, 1>} : memref<64x128xf32, #tpu.memory_space<vmem>>, vector<4x128xf32>
    %142 = arith.maximumf %139, %140 : vector<4x128xf32>
    %143 = arith.maximumf %142, %141 : vector<4x128xf32>
    %144 = vector.extract_strided_slice %134 {offsets = [14, 0], sizes = [1, 128], strides = [1, 1]} : vector<16x128xf32> to vector<1x128xf32>
    %145 = vector.extract_strided_slice %134 {offsets = [15, 0], sizes = [1, 128], strides = [1, 1]} : vector<16x128xf32> to vector<1x128xf32>
    %146 = arith.maximumf %144, %145 : vector<1x128xf32>
    %147 = tpu.concatenate %138, %143, %146 in 0 : vector<1x128xf32>, vector<4x128xf32>, vector<1x128xf32> -> vector<6x128xf32>
    %148 = tpu.concatenate %133, %147 in 0 : vector<6x128xf32>, vector<6x128xf32> -> vector<12x128xf32>
    %149 = vector.extract_strided_slice %148 {offsets = [0, 0], sizes = [6, 128], strides = [1, 1]} : vector<12x128xf32> to vector<6x128xf32>
    %150 = tpu.concatenate %0, %149, %0 in 0 : vector<1x128xf32>, vector<6x128xf32>, vector<1x128xf32> -> vector<8x128xf32>
    %151 = vector.extract_strided_slice %150 {offsets = [0, 0], sizes = [6, 128], strides = [1, 1]} : vector<8x128xf32> to vector<6x128xf32>
    %152 = vector.extract_strided_slice %150 {offsets = [1, 0], sizes = [6, 128], strides = [1, 1]} : vector<8x128xf32> to vector<6x128xf32>
    %153 = vector.extract_strided_slice %150 {offsets = [2, 0], sizes = [6, 128], strides = [1, 1]} : vector<8x128xf32> to vector<6x128xf32>
    %154 = tpu.concatenate %151, %152, %153 in 1 : vector<6x128xf32>, vector<6x128xf32>, vector<6x128xf32> -> vector<6x384xf32>
    %155 = vector.extract_strided_slice %148 {offsets = [6, 0], sizes = [6, 128], strides = [1, 1]} : vector<12x128xf32> to vector<6x128xf32>
    %156 = tpu.concatenate %0, %155, %0 in 0 : vector<1x128xf32>, vector<6x128xf32>, vector<1x128xf32> -> vector<8x128xf32>
    %157 = vector.extract_strided_slice %156 {offsets = [0, 0], sizes = [6, 128], strides = [1, 1]} : vector<8x128xf32> to vector<6x128xf32>
    %158 = vector.extract_strided_slice %156 {offsets = [1, 0], sizes = [6, 128], strides = [1, 1]} : vector<8x128xf32> to vector<6x128xf32>
    %159 = vector.extract_strided_slice %156 {offsets = [2, 0], sizes = [6, 128], strides = [1, 1]} : vector<8x128xf32> to vector<6x128xf32>
    %160 = tpu.concatenate %157, %158, %159 in 1 : vector<6x128xf32>, vector<6x128xf32>, vector<6x128xf32> -> vector<6x384xf32>
    %161 = tpu.concatenate %154, %160 in 0 : vector<6x384xf32>, vector<6x384xf32> -> vector<12x384xf32>
    %162 = arith.truncf %161 : vector<12x384xf32> to vector<12x384xbf16>
    %c0_72 = arith.constant 0 : index
    %c0_73 = arith.constant 0 : index
    %163 = vector.load %arg6[%c0_72, %c0_73] : memref<384x128xbf16, #tpu.memory_space<vmem>>, vector<384x128xbf16>
    %cst_74 = arith.constant dense<0.000000e+00> : vector<12x128xf32>
    %164 = tpu.matmul %162, %163, %cst_74 {dimension_numbers = #tpu.dot_dimension_numbers<[1], [0], [0], [1], [0, 0, 1, 1], [], []>} : vector<12x384xbf16>, vector<384x128xbf16>, vector<12x128xf32> -> vector<12x128xf32>
    %c0_75 = arith.constant 0 : index
    %c0_76 = arith.constant 0 : index
    %165 = vector.load %arg7[%c0_75, %c0_76] : memref<1x128xf32, #tpu.memory_space<vmem>>, vector<1x128xf32>
    %166 = vector.broadcast %165 : vector<1x128xf32> to vector<12x128xf32>
    %167 = arith.addf %164, %166 : vector<12x128xf32>
    %cst_77 = arith.constant 0.000000e+00 : f32
    %168 = vector.broadcast %cst_77 : f32 to vector<12x128xf32>
    %169 = arith.maximumf %167, %168 : vector<12x128xf32>
    %170 = vector.extract_strided_slice %169 {offsets = [0, 0], sizes = [6, 128], strides = [1, 1]} : vector<12x128xf32> to vector<6x128xf32>
    %171 = tpu.concatenate %0, %170, %0 in 0 : vector<1x128xf32>, vector<6x128xf32>, vector<1x128xf32> -> vector<8x128xf32>
    %172 = vector.extract_strided_slice %171 {offsets = [0, 0], sizes = [6, 128], strides = [1, 1]} : vector<8x128xf32> to vector<6x128xf32>
    %173 = vector.extract_strided_slice %171 {offsets = [1, 0], sizes = [6, 128], strides = [1, 1]} : vector<8x128xf32> to vector<6x128xf32>
    %174 = vector.extract_strided_slice %171 {offsets = [2, 0], sizes = [6, 128], strides = [1, 1]} : vector<8x128xf32> to vector<6x128xf32>
    %175 = tpu.concatenate %172, %173, %174 in 1 : vector<6x128xf32>, vector<6x128xf32>, vector<6x128xf32> -> vector<6x384xf32>
    %176 = vector.extract_strided_slice %169 {offsets = [6, 0], sizes = [6, 128], strides = [1, 1]} : vector<12x128xf32> to vector<6x128xf32>
    %177 = tpu.concatenate %0, %176, %0 in 0 : vector<1x128xf32>, vector<6x128xf32>, vector<1x128xf32> -> vector<8x128xf32>
    %178 = vector.extract_strided_slice %177 {offsets = [0, 0], sizes = [6, 128], strides = [1, 1]} : vector<8x128xf32> to vector<6x128xf32>
    %179 = vector.extract_strided_slice %177 {offsets = [1, 0], sizes = [6, 128], strides = [1, 1]} : vector<8x128xf32> to vector<6x128xf32>
    %180 = vector.extract_strided_slice %177 {offsets = [2, 0], sizes = [6, 128], strides = [1, 1]} : vector<8x128xf32> to vector<6x128xf32>
    %181 = tpu.concatenate %178, %179, %180 in 1 : vector<6x128xf32>, vector<6x128xf32>, vector<6x128xf32> -> vector<6x384xf32>
    %182 = tpu.concatenate %175, %181 in 0 : vector<6x384xf32>, vector<6x384xf32> -> vector<12x384xf32>
    %183 = arith.truncf %182 : vector<12x384xf32> to vector<12x384xbf16>
    %c0_78 = arith.constant 0 : index
    %c0_79 = arith.constant 0 : index
    %184 = vector.load %arg8[%c0_78, %c0_79] : memref<384x128xbf16, #tpu.memory_space<vmem>>, vector<384x128xbf16>
    %cst_80 = arith.constant dense<0.000000e+00> : vector<12x128xf32>
    %185 = tpu.matmul %183, %184, %cst_80 {dimension_numbers = #tpu.dot_dimension_numbers<[1], [0], [0], [1], [0, 0, 1, 1], [], []>} : vector<12x384xbf16>, vector<384x128xbf16>, vector<12x128xf32> -> vector<12x128xf32>
    %c0_81 = arith.constant 0 : index
    %c0_82 = arith.constant 0 : index
    %186 = vector.load %arg9[%c0_81, %c0_82] : memref<1x128xf32, #tpu.memory_space<vmem>>, vector<1x128xf32>
    %187 = vector.broadcast %186 : vector<1x128xf32> to vector<12x128xf32>
    %188 = arith.addf %185, %187 : vector<12x128xf32>
    %cst_83 = arith.constant 0.000000e+00 : f32
    %189 = vector.broadcast %cst_83 : f32 to vector<12x128xf32>
    %190 = arith.maximumf %188, %189 : vector<12x128xf32>
    %191 = vector.extract_strided_slice %190 {offsets = [0, 0], sizes = [6, 128], strides = [1, 1]} : vector<12x128xf32> to vector<6x128xf32>
    %192 = tpu.concatenate %0, %191, %0 in 0 : vector<1x128xf32>, vector<6x128xf32>, vector<1x128xf32> -> vector<8x128xf32>
    %193 = vector.extract_strided_slice %192 {offsets = [0, 0], sizes = [6, 128], strides = [1, 1]} : vector<8x128xf32> to vector<6x128xf32>
    %194 = vector.extract_strided_slice %192 {offsets = [1, 0], sizes = [6, 128], strides = [1, 1]} : vector<8x128xf32> to vector<6x128xf32>
    %195 = vector.extract_strided_slice %192 {offsets = [2, 0], sizes = [6, 128], strides = [1, 1]} : vector<8x128xf32> to vector<6x128xf32>
    %196 = tpu.concatenate %193, %194, %195 in 1 : vector<6x128xf32>, vector<6x128xf32>, vector<6x128xf32> -> vector<6x384xf32>
    %197 = vector.extract_strided_slice %190 {offsets = [6, 0], sizes = [6, 128], strides = [1, 1]} : vector<12x128xf32> to vector<6x128xf32>
    %198 = tpu.concatenate %0, %197, %0 in 0 : vector<1x128xf32>, vector<6x128xf32>, vector<1x128xf32> -> vector<8x128xf32>
    %199 = vector.extract_strided_slice %198 {offsets = [0, 0], sizes = [6, 128], strides = [1, 1]} : vector<8x128xf32> to vector<6x128xf32>
    %200 = vector.extract_strided_slice %198 {offsets = [1, 0], sizes = [6, 128], strides = [1, 1]} : vector<8x128xf32> to vector<6x128xf32>
    %201 = vector.extract_strided_slice %198 {offsets = [2, 0], sizes = [6, 128], strides = [1, 1]} : vector<8x128xf32> to vector<6x128xf32>
    %202 = tpu.concatenate %199, %200, %201 in 1 : vector<6x128xf32>, vector<6x128xf32>, vector<6x128xf32> -> vector<6x384xf32>
    %203 = tpu.concatenate %196, %202 in 0 : vector<6x384xf32>, vector<6x384xf32> -> vector<12x384xf32>
    %204 = arith.truncf %203 : vector<12x384xf32> to vector<12x384xbf16>
    %c0_84 = arith.constant 0 : index
    %c0_85 = arith.constant 0 : index
    %205 = vector.load %arg10[%c0_84, %c0_85] : memref<384x128xbf16, #tpu.memory_space<vmem>>, vector<384x128xbf16>
    %cst_86 = arith.constant dense<0.000000e+00> : vector<12x128xf32>
    %206 = tpu.matmul %204, %205, %cst_86 {dimension_numbers = #tpu.dot_dimension_numbers<[1], [0], [0], [1], [0, 0, 1, 1], [], []>} : vector<12x384xbf16>, vector<384x128xbf16>, vector<12x128xf32> -> vector<12x128xf32>
    %c0_87 = arith.constant 0 : index
    %c0_88 = arith.constant 0 : index
    %207 = vector.load %arg11[%c0_87, %c0_88] : memref<1x128xf32, #tpu.memory_space<vmem>>, vector<1x128xf32>
    %208 = vector.broadcast %207 : vector<1x128xf32> to vector<12x128xf32>
    %209 = arith.addf %206, %208 : vector<12x128xf32>
    %cst_89 = arith.constant 0.000000e+00 : f32
    %210 = vector.broadcast %cst_89 : f32 to vector<12x128xf32>
    %211 = arith.maximumf %209, %210 : vector<12x128xf32>
    %212 = vector.extract_strided_slice %211 {offsets = [0, 0], sizes = [6, 128], strides = [1, 1]} : vector<12x128xf32> to vector<6x128xf32>
    %213 = tpu.concatenate %0, %212, %0 in 0 : vector<1x128xf32>, vector<6x128xf32>, vector<1x128xf32> -> vector<8x128xf32>
    %214 = vector.extract_strided_slice %213 {offsets = [0, 0], sizes = [6, 128], strides = [1, 1]} : vector<8x128xf32> to vector<6x128xf32>
    %215 = vector.extract_strided_slice %213 {offsets = [1, 0], sizes = [6, 128], strides = [1, 1]} : vector<8x128xf32> to vector<6x128xf32>
    %216 = vector.extract_strided_slice %213 {offsets = [2, 0], sizes = [6, 128], strides = [1, 1]} : vector<8x128xf32> to vector<6x128xf32>
    %217 = tpu.concatenate %214, %215, %216 in 1 : vector<6x128xf32>, vector<6x128xf32>, vector<6x128xf32> -> vector<6x384xf32>
    %218 = vector.extract_strided_slice %211 {offsets = [6, 0], sizes = [6, 128], strides = [1, 1]} : vector<12x128xf32> to vector<6x128xf32>
    %219 = tpu.concatenate %0, %218, %0 in 0 : vector<1x128xf32>, vector<6x128xf32>, vector<1x128xf32> -> vector<8x128xf32>
    %220 = vector.extract_strided_slice %219 {offsets = [0, 0], sizes = [6, 128], strides = [1, 1]} : vector<8x128xf32> to vector<6x128xf32>
    %221 = vector.extract_strided_slice %219 {offsets = [1, 0], sizes = [6, 128], strides = [1, 1]} : vector<8x128xf32> to vector<6x128xf32>
    %222 = vector.extract_strided_slice %219 {offsets = [2, 0], sizes = [6, 128], strides = [1, 1]} : vector<8x128xf32> to vector<6x128xf32>
    %223 = tpu.concatenate %220, %221, %222 in 1 : vector<6x128xf32>, vector<6x128xf32>, vector<6x128xf32> -> vector<6x384xf32>
    %224 = tpu.concatenate %217, %223 in 0 : vector<6x384xf32>, vector<6x384xf32> -> vector<12x384xf32>
    %225 = arith.truncf %224 : vector<12x384xf32> to vector<12x384xbf16>
    %c0_90 = arith.constant 0 : index
    %c0_91 = arith.constant 0 : index
    %226 = vector.load %arg12[%c0_90, %c0_91] : memref<384x128xbf16, #tpu.memory_space<vmem>>, vector<384x128xbf16>
    %cst_92 = arith.constant dense<0.000000e+00> : vector<12x128xf32>
    %227 = tpu.matmul %225, %226, %cst_92 {dimension_numbers = #tpu.dot_dimension_numbers<[1], [0], [0], [1], [0, 0, 1, 1], [], []>} : vector<12x384xbf16>, vector<384x128xbf16>, vector<12x128xf32> -> vector<12x128xf32>
    %c0_93 = arith.constant 0 : index
    %c0_94 = arith.constant 0 : index
    %228 = vector.load %arg13[%c0_93, %c0_94] : memref<1x128xf32, #tpu.memory_space<vmem>>, vector<1x128xf32>
    %229 = vector.broadcast %228 : vector<1x128xf32> to vector<12x128xf32>
    %230 = arith.addf %227, %229 : vector<12x128xf32>
    %cst_95 = arith.constant 0.000000e+00 : f32
    %231 = vector.broadcast %cst_95 : f32 to vector<12x128xf32>
    %232 = arith.maximumf %230, %231 : vector<12x128xf32>
    %233 = vector.extract_strided_slice %232 {offsets = [0, 0], sizes = [6, 128], strides = [1, 1]} : vector<12x128xf32> to vector<6x128xf32>
    %cst_96 = arith.constant dense<0xFF800000> : vector<128xf32>
    %234 = vector.multi_reduction <maximumf>, %233, %cst_96 [0] : vector<6x128xf32> to vector<128xf32>
    %235 = vector.shape_cast %234 : vector<128xf32> to vector<1x128xf32>
    %236 = vector.extract_strided_slice %232 {offsets = [6, 0], sizes = [6, 128], strides = [1, 1]} : vector<12x128xf32> to vector<6x128xf32>
    %cst_97 = arith.constant dense<0xFF800000> : vector<128xf32>
    %237 = vector.multi_reduction <maximumf>, %236, %cst_97 [0] : vector<6x128xf32> to vector<128xf32>
    %238 = vector.shape_cast %237 : vector<128xf32> to vector<1x128xf32>
    %239 = tpu.concatenate %235, %238 in 0 : vector<1x128xf32>, vector<1x128xf32> -> vector<2x128xf32>
    %240 = arith.truncf %239 : vector<2x128xf32> to vector<2x128xbf16>
    %c0_98 = arith.constant 0 : index
    %c0_99 = arith.constant 0 : index
    %241 = vector.load %arg14[%c0_98, %c0_99] : memref<128x128xbf16, #tpu.memory_space<vmem>>, vector<128x128xbf16>
    %cst_100 = arith.constant dense<0.000000e+00> : vector<2x128xf32>
    %242 = tpu.matmul %240, %241, %cst_100 {dimension_numbers = #tpu.dot_dimension_numbers<[1], [0], [0], [1], [0, 0, 1, 1], [], []>} : vector<2x128xbf16>, vector<128x128xbf16>, vector<2x128xf32> -> vector<2x128xf32>
    %c0_101 = arith.constant 0 : index
    %c0_102 = arith.constant 0 : index
    %243 = vector.load %arg15[%c0_101, %c0_102] : memref<1x128xf32, #tpu.memory_space<vmem>>, vector<1x128xf32>
    %244 = vector.broadcast %243 : vector<1x128xf32> to vector<2x128xf32>
    %245 = arith.addf %242, %244 : vector<2x128xf32>
    %cst_103 = arith.constant 0.000000e+00 : f32
    %246 = vector.broadcast %cst_103 : f32 to vector<2x128xf32>
    %247 = arith.maximumf %245, %246 : vector<2x128xf32>
    %248 = arith.truncf %247 : vector<2x128xf32> to vector<2x128xbf16>
    %c0_104 = arith.constant 0 : index
    %c0_105 = arith.constant 0 : index
    %249 = vector.load %arg16[%c0_104, %c0_105] : memref<128x64xbf16, #tpu.memory_space<vmem>>, vector<128x64xbf16>
    %cst_106 = arith.constant dense<0.000000e+00> : vector<2x64xf32>
    %250 = tpu.matmul %248, %249, %cst_106 {dimension_numbers = #tpu.dot_dimension_numbers<[1], [0], [0], [1], [0, 0, 1, 1], [], []>} : vector<2x128xbf16>, vector<128x64xbf16>, vector<2x64xf32> -> vector<2x64xf32>
    %c0_107 = arith.constant 0 : index
    %c0_108 = arith.constant 0 : index
    %251 = vector.load %arg17[%c0_107, %c0_108] : memref<1x64xf32, #tpu.memory_space<vmem>>, vector<1x64xf32>
    %252 = vector.broadcast %251 : vector<1x64xf32> to vector<2x64xf32>
    %253 = arith.addf %250, %252 : vector<2x64xf32>
    %cst_109 = arith.constant 0.000000e+00 : f32
    %254 = vector.broadcast %cst_109 : f32 to vector<2x64xf32>
    %255 = arith.maximumf %253, %254 : vector<2x64xf32>
    %c0_110 = arith.constant 0 : index
    %c0_111 = arith.constant 0 : index
    %256 = vector.load %arg18[%c0_110, %c0_111] : memref<64x2xf32, #tpu.memory_space<vmem>>, vector<64x2xf32>
    %cst_112 = arith.constant dense<0.000000e+00> : vector<2x2xf32>
    %257 = tpu.matmul %255, %256, %cst_112 {dimension_numbers = #tpu.dot_dimension_numbers<[1], [0], [0], [1], [0, 0, 1, 1], [], []>} : vector<2x64xf32>, vector<64x2xf32>, vector<2x2xf32> -> vector<2x2xf32>
    %c0_113 = arith.constant 0 : index
    %c0_114 = arith.constant 0 : index
    %258 = vector.load %arg19[%c0_113, %c0_114] : memref<1x2xf32, #tpu.memory_space<vmem>>, vector<1x2xf32>
    %259 = vector.broadcast %258 : vector<1x2xf32> to vector<2x2xf32>
    %260 = arith.addf %257, %259 : vector<2x2xf32>
    %c0_115 = arith.constant 0 : index
    %c0_116 = arith.constant 0 : index
    %261 = vector.load %arg20[%c0_115, %c0_116] : memref<2x2xf32, #tpu.memory_space<vmem>>, vector<2x2xf32>
    tpu.vector_store %arg20[%c0_115, %c0_116], %260 {strides = array<i32>} : memref<2x2xf32, #tpu.memory_space<vmem>>, vector<2x2xf32>,
    return
  }
}

</mosaic_0001>

<llo_original>
// kernel: composite_forward.1
$region0: #{composite_forward.1}
  #allocation0 [shape = 'u32[]', space=smem, size = 0x4, offset = 0x4, fixed_abs, tag = 'smem constant byte address 0x4 - core index']
  #allocation1 [shape = 'u32[144,128]{1,0:T(1,128)}', space=vmem, size = 0x12000, scoped, tag = 'internal scratch']
  #allocation2 [shape = 'f32[64,128]{1,0:T(8,128)}', space=vmem, size = 0x8000, scoped, tag = 'scratch operand']
  #allocation3 [shape = 'f32[64,128]{1,0:T(8,128)}', space=vmem, size = 0x8000, scoped, tag = 'scratch operand']
  %s0 = inlined_call_operand.vmem [shape: s32[128,1], index: 0, kind: input, shape index: {}]
  %s1 = inlined_call_operand.vmem [shape: bf16[256,150], index: 1, kind: input, shape index: {}]
  %s2 = inlined_call_operand.vmem [shape: bf16[7,150,128], index: 2, kind: input, shape index: {}]
  %s3 = inlined_call_operand.vmem [shape: f32[1,128], index: 3, kind: input, shape index: {}]
  %s4 = inlined_call_operand.hbm [shape: bf16[896,128], index: 4, kind: input, shape index: {}]
  %s5 = inlined_call_operand.vmem [shape: f32[1,128], index: 5, kind: input, shape index: {}]
  %s6 = inlined_call_operand.vmem [shape: bf16[384,128], index: 6, kind: input, shape index: {}]
  %s7 = inlined_call_operand.vmem [shape: f32[1,128], index: 7, kind: input, shape index: {}]
  %s8 = inlined_call_operand.hbm [shape: bf16[384,128], index: 8, kind: input, shape index: {}]
  %s9 = inlined_call_operand.vmem [shape: f32[1,128], index: 9, kind: input, shape index: {}]
  %s10 = inlined_call_operand.hbm [shape: bf16[384,128], index: 10, kind: input, shape index: {}]
  %s11 = inlined_call_operand.vmem [shape: f32[1,128], index: 11, kind: input, shape index: {}]
  %s12 = inlined_call_operand.hbm [shape: bf16[384,128], index: 12, kind: input, shape index: {}]
  %s13 = inlined_call_operand.vmem [shape: f32[1,128], index: 13, kind: input, shape index: {}]
  %s14 = inlined_call_operand.hbm [shape: bf16[128,128], index: 14, kind: input, shape index: {}]
  %s15 = inlined_call_operand.hbm [shape: f32[1,128], index: 15, kind: input, shape index: {}]
  %s16 = inlined_call_operand.vmem [shape: bf16[128,64], index: 16, kind: input, shape index: {}]
  %s17 = inlined_call_operand.hbm [shape: f32[1,64], index: 17, kind: input, shape index: {}]
  %s18 = inlined_call_operand.vmem [shape: f32[64,2], index: 18, kind: input, shape index: {}]
  %s19 = inlined_call_operand.hbm [shape: f32[1,2], index: 19, kind: input, shape index: {}]
  %s20 = inlined_call_operand.hbm [shape: f32[2,2], index: 20, kind: output, shape index: {}]
  %s21 = sld [smem:[#allocation0]]
  $region122: #{composite_forward.1} parent=0
    _
  %s23 = ssub.s32 1, %s21
  %s24 = scalar_select 0, %s23, %s21
  $region1: #{composite_forward.1} parent=0
    #allocation4 [shape = 'u8[229376]{0}', space=vmem, size = 0x38000, scoped, tag = 'input window, operand 4, single buffered']
    #allocation5 [shape = 's32[1]{0}', space=sflag, size = 0x4, scoped, tag = 'scoped memory for composite_forward.1']
    #allocation6 [shape = 's32[1]{0}', space=sflag, size = 0x4, scoped, tag = 'scoped memory for composite_forward.1']
    #allocation7 [shape = 'u8[98304]{0}', space=vmem, size = 0x18000, scoped, tag = 'input window, operand 8, single buffered']
    #allocation8 [shape = 's32[1]{0}', space=sflag, size = 0x4, scoped, tag = 'scoped memory for composite_forward.1']
    #allocation9 [shape = 'u8[98304]{0}', space=vmem, size = 0x18000, scoped, tag = 'input window, operand 10, single buffered']
    #allocation10 [shape = 'u8[98304]{0}', space=vmem, size = 0x18000, scoped, tag = 'input window, operand 12, single buffered']
    #allocation11 [shape = 's32[1]{0}', space=sflag, size = 0x4, scoped, tag = 'scoped memory for composite_forward.1']
    #allocation12 [shape = 'u8[32768]{0}', space=vmem, size = 0x8000, scoped, tag = 'input window, operand 14, single buffered']
    #allocation13 [shape = 'u8[512]{0}', space=vmem, size = 0x400, scoped, tag = 'input window, operand 15, single buffered']
    #allocation14 [shape = 's32[1]{0}', space=sflag, size = 0x4, scoped, tag = 'scoped memory for composite_forward.1']
    #allocation15 [shape = 'u8[512]{0}', space=vmem, size = 0x400, scoped, tag = 'input window, operand 17, single buffered']
    #allocation16 [shape = 'u8[512]{0}', space=vmem, size = 0x400, scoped, tag = 'input window, operand 19, single buffered']
    #allocation17 [shape = 's32[1]{0}', space=sflag, size = 0x4, scoped, tag = 'scoped memory for composite_forward.1']
    #allocation18 [shape = 'u8[1024]{0}', space=vmem, size = 0x400, scoped, tag = 'output window, operand 0, single buffered']
    %25 = vsyncpa [#allocation5], 0
    %26 = vsyncpa [#allocation8], 0
    %27 = vsyncpa [#allocation11], 0
    %28 = vsyncpa [#allocation14], 0
    %29 = vsyncpa [#allocation17], 0
    %30 = vsyncpa [#allocation6], 0
    // Predicated region
    $region2: #{composite_forward.1} parent=1 // pred_check
      _
    $region3: #{composite_forward.1} parent=1 // pred_check_branch
      %32 = sbr.rel (0) target = $region5
    $region4: #{composite_forward.1} parent=1 // pred_region
      _
    $region5: #{composite_forward.1} parent=1 // pred_fallthru
      _
    // Predicated region
    $region6: #{composite_forward.1} parent=1 // pred_check
      _
    $region7: #{composite_forward.1} parent=1 // pred_check_branch
      %34 = sbr.rel (0) target = $region9
    $region8: #{composite_forward.1} parent=1 // pred_region
      _
    $region9: #{composite_forward.1} parent=1 // pred_fallthru
      _
    // Predicated region
    $region10: #{composite_forward.1} parent=1 // pred_check
      _
    $region11: #{composite_forward.1} parent=1 // pred_check_branch
      %36 = sbr.rel (0) target = $region13
    $region12: #{composite_forward.1} parent=1 // pred_region
      _
    $region13: #{composite_forward.1} parent=1 // pred_fallthru
      _
    // Predicated region
    $region14: #{composite_forward.1} parent=1 // pred_check
      _
    $region15: #{composite_forward.1} parent=1 // pred_check_branch
      %38 = sbr.rel (0) target = $region17
    $region16: #{composite_forward.1} parent=1 // pred_region
      _
    $region17: #{composite_forward.1} parent=1 // pred_fallthru
      _
    // Predicated region
    $region18: #{composite_forward.1} parent=1 // pred_check
      _
    $region19: #{composite_forward.1} parent=1 // pred_check_branch
      %40 = sbr.rel (0) target = $region21
    $region20: #{composite_forward.1} parent=1 // pred_region
      %s42 = ssub.s32 7168, 7168
      %43 = vsyncadd [#allocation5], %s42
      %s44 = sshll.u32 [#allocation4], 4
      %s45 = int_to_ptr.vmem [resolvable:$true] %s44
      %50 = dma.hbm_to_vmem [thread:$0]  %s4, 7168, %s45, [#allocation5], 64, 64, 4
    $region21: #{composite_forward.1} parent=1 // pred_fallthru
      _
    // Predicated region
    $region22: #{composite_forward.1} parent=1 // pred_check
      _
    $region23: #{composite_forward.1} parent=1 // pred_check_branch
      %52 = sbr.rel (0) target = $region25
    $region24: #{composite_forward.1} parent=1 // pred_region
      _
    $region25: #{composite_forward.1} parent=1 // pred_fallthru
      _
    // Predicated region
    $region26: #{composite_forward.1} parent=1 // pred_check
      _
    $region27: #{composite_forward.1} parent=1 // pred_check_branch
      %54 = sbr.rel (0) target = $region29
    $region28: #{composite_forward.1} parent=1 // pred_region
      _
    $region29: #{composite_forward.1} parent=1 // pred_fallthru
      _
    // Predicated region
    $region30: #{composite_forward.1} parent=1 // pred_check
      _
    $region31: #{composite_forward.1} parent=1 // pred_check_branch
      %56 = sbr.rel (0) target = $region33
    $region32: #{composite_forward.1} parent=1 // pred_region
      _
    $region33: #{composite_forward.1} parent=1 // pred_fallthru
      _
    // Predicated region
    $region34: #{composite_forward.1} parent=1 // pred_check
      _
    $region35: #{composite_forward.1} parent=1 // pred_check_branch
      %58 = sbr.rel (0) target = $region37
    $region36: #{composite_forward.1} parent=1 // pred_region
      %s60 = ssub.s32 3072, 3072
      %61 = vsyncadd [#allocation8], %s60
      %s62 = sshll.u32 [#allocation7], 4
      %s63 = int_to_ptr.vmem [resolvable:$true] %s62
      %68 = dma.hbm_to_vmem [thread:$0]  %s8, 3072, %s63, [#allocation8], 64, 64, 4
    $region37: #{composite_forward.1} parent=1 // pred_fallthru
      _
    // Predicated region
    $region38: #{composite_forward.1} parent=1 // pred_check
      _
    $region39: #{composite_forward.1} parent=1 // pred_check_branch
      %70 = sbr.rel (0) target = $region41
    $region40: #{composite_forward.1} parent=1 // pred_region
      _
    $region41: #{composite_forward.1} parent=1 // pred_fallthru
      _
    // Predicated region
    $region42: #{composite_forward.1} parent=1 // pred_check
      _
    $region43: #{composite_forward.1} parent=1 // pred_check_branch
      %72 = sbr.rel (0) target = $region45
    $region44: #{composite_forward.1} parent=1 // pred_region
      %s74 = ssub.s32 3072, 3072
      %75 = vsyncadd [#allocation8], %s74
      %s76 = sshll.u32 [#allocation9], 4
      %s77 = int_to_ptr.vmem [resolvable:$true] %s76
      %82 = dma.hbm_to_vmem [thread:$0]  %s10, 3072, %s77, [#allocation8], 64, 64, 4
    $region45: #{composite_forward.1} parent=1 // pred_fallthru
      _
    // Predicated region
    $region46: #{composite_forward.1} parent=1 // pred_check
      _
    $region47: #{composite_forward.1} parent=1 // pred_check_branch
      %84 = sbr.rel (0) target = $region49
    $region48: #{composite_forward.1} parent=1 // pred_region
      _
    $region49: #{composite_forward.1} parent=1 // pred_fallthru
      _
    // Predicated region
    $region50: #{composite_forward.1} parent=1 // pred_check
      _
    $region51: #{composite_forward.1} parent=1 // pred_check_branch
      %86 = sbr.rel (0) target = $region53
    $region52: #{composite_forward.1} parent=1 // pred_region
      %s88 = ssub.s32 3072, 3072
      %89 = vsyncadd [#allocation11], %s88
      %s90 = sshll.u32 [#allocation10], 4
      %s91 = int_to_ptr.vmem [resolvable:$true] %s90
      %96 = dma.hbm_to_vmem [thread:$0]  %s12, 3072, %s91, [#allocation11], 64, 64, 4
    $region53: #{composite_forward.1} parent=1 // pred_fallthru
      _
    // Predicated region
    $region54: #{composite_forward.1} parent=1 // pred_check
      _
    $region55: #{composite_forward.1} parent=1 // pred_check_branch
      %98 = sbr.rel (0) target = $region57
    $region56: #{composite_forward.1} parent=1 // pred_region
      _
    $region57: #{composite_forward.1} parent=1 // pred_fallthru
      _
    // Predicated region
    $region58: #{composite_forward.1} parent=1 // pred_check
      _
    $region59: #{composite_forward.1} parent=1 // pred_check_branch
      %100 = sbr.rel (0) target = $region61
    $region60: #{composite_forward.1} parent=1 // pred_region
      %s102 = ssub.s32 1024, 1024
      %103 = vsyncadd [#allocation11], %s102
      %s104 = sshll.u32 [#allocation12], 4
      %s105 = int_to_ptr.vmem [resolvable:$true] %s104
      %110 = dma.hbm_to_vmem [thread:$0]  %s14, 1024, %s105, [#allocation11], 64, 64, 4
    $region61: #{composite_forward.1} parent=1 // pred_fallthru
      _
    // Predicated region
    $region62: #{composite_forward.1} parent=1 // pred_check
      _
    $region63: #{composite_forward.1} parent=1 // pred_check_branch
      %112 = sbr.rel (0) target = $region65
    $region64: #{composite_forward.1} parent=1 // pred_region
      %s114 = ssub.s32 16, 16
      %115 = vsyncadd [#allocation14], %s114
      %s117 = sshll.u32 [#allocation13], 4
      %s118 = int_to_ptr.vmem [resolvable:$true] %s117
      %120 = dma.hbm_to_vmem [thread:$0]  %s15, 16, %s118, [#allocation14]
    $region65: #{composite_forward.1} parent=1 // pred_fallthru
      _
    // Predicated region
    $region66: #{composite_forward.1} parent=1 // pred_check
      _
    $region67: #{composite_forward.1} parent=1 // pred_check_branch
      %122 = sbr.rel (0) target = $region69
    $region68: #{composite_forward.1} parent=1 // pred_region
      _
    $region69: #{composite_forward.1} parent=1 // pred_fallthru
      _
    // Predicated region
    $region70: #{composite_forward.1} parent=1 // pred_check
      _
    $region71: #{composite_forward.1} parent=1 // pred_check_branch
      %124 = sbr.rel (0) target = $region73
    $region72: #{composite_forward.1} parent=1 // pred_region
      %s126 = ssub.s32 16, 16
      %127 = vsyncadd [#allocation14], %s126
      %s129 = sshll.u32 [#allocation15], 4
      %s130 = int_to_ptr.vmem [resolvable:$true] %s129
      %132 = dma.hbm_to_vmem [thread:$0]  %s17, 16, %s130, [#allocation14]
    $region73: #{composite_forward.1} parent=1 // pred_fallthru
      _
    // Predicated region
    $region74: #{composite_forward.1} parent=1 // pred_check
      _
    $region75: #{composite_forward.1} parent=1 // pred_check_branch
      %134 = sbr.rel (0) target = $region77
    $region76: #{composite_forward.1} parent=1 // pred_region
      _
    $region77: #{composite_forward.1} parent=1 // pred_fallthru
      _
    // Predicated region
    $region78: #{composite_forward.1} parent=1 // pred_check
      _
    $region79: #{composite_forward.1} parent=1 // pred_check_branch
      %136 = sbr.rel (0) target = $region81
    $region80: #{composite_forward.1} parent=1 // pred_region
      %s138 = ssub.s32 16, 16
      %139 = vsyncadd [#allocation17], %s138
      %s141 = sshll.u32 [#allocation16], 4
      %s142 = int_to_ptr.vmem [resolvable:$true] %s141
      %144 = dma.hbm_to_vmem [thread:$0]  %s19, 16, %s142, [#allocation17]
    $region81: #{composite_forward.1} parent=1 // pred_fallthru
      _
    // Predicated region
    $region82: #{composite_forward.1} parent=1 // pred_check
      _
    $region83: #{composite_forward.1} parent=1 // pred_check_branch
      %146 = sbr.rel (0) target = $region85
    $region84: #{composite_forward.1} parent=1 // pred_region
      %147 = dma.done [#allocation5], 7168
    $region85: #{composite_forward.1} parent=1 // pred_fallthru
      _
    // Predicated region
    $region86: #{composite_forward.1} parent=1 // pred_check
      _
    $region87: #{composite_forward.1} parent=1 // pred_check_branch
      %149 = sbr.rel (0) target = $region89
    $region88: #{composite_forward.1} parent=1 // pred_region
      %150 = dma.done [#allocation8], 3072
    $region89: #{composite_forward.1} parent=1 // pred_fallthru
      _
    // Predicated region
    $region90: #{composite_forward.1} parent=1 // pred_check
      _
    $region91: #{composite_forward.1} parent=1 // pred_check_branch
      %152 = sbr.rel (0) target = $region93
    $region92: #{composite_forward.1} parent=1 // pred_region
      %153 = dma.done [#allocation8], 3072
    $region93: #{composite_forward.1} parent=1 // pred_fallthru
      _
    // Predicated region
    $region94: #{composite_forward.1} parent=1 // pred_check
      _
    $region95: #{composite_forward.1} parent=1 // pred_check_branch
      %155 = sbr.rel (0) target = $region97
    $region96: #{composite_forward.1} parent=1 // pred_region
      %156 = dma.done [#allocation11], 3072
    $region97: #{composite_forward.1} parent=1 // pred_fallthru
      _
    // Predicated region
    $region98: #{composite_forward.1} parent=1 // pred_check
      _
    $region99: #{composite_forward.1} parent=1 // pred_check_branch
      %158 = sbr.rel (0) target = $region101
    $region100: #{composite_forward.1} parent=1 // pred_region
      %159 = dma.done [#allocation11], 1024
    $region101: #{composite_forward.1} parent=1 // pred_fallthru
      _
    // Predicated region
    $region102: #{composite_forward.1} parent=1 // pred_check
      _
    $region103: #{composite_forward.1} parent=1 // pred_check_branch
      %161 = sbr.rel (0) target = $region105
    $region104: #{composite_forward.1} parent=1 // pred_region
      %162 = dma.done [#allocation14], 16
    $region105: #{composite_forward.1} parent=1 // pred_fallthru
      _
    // Predicated region
    $region106: #{composite_forward.1} parent=1 // pred_check
      _
    $region107: #{composite_forward.1} parent=1 // pred_check_branch
      %164 = sbr.rel (0) target = $region109
    $region108: #{composite_forward.1} parent=1 // pred_region
      %165 = dma.done [#allocation14], 16
    $region109: #{composite_forward.1} parent=1 // pred_fallthru
      _
    // Predicated region
    $region110: #{composite_forward.1} parent=1 // pred_check
      _
    $region111: #{composite_forward.1} parent=1 // pred_check_branch
      %167 = sbr.rel (0) target = $region113
    $region112: #{composite_forward.1} parent=1 // pred_region
      %168 = dma.done [#allocation17], 16
    $region113: #{composite_forward.1} parent=1 // pred_fallthru
      _
    %v170 = vld [vmem:[%s0] sm:$0xff]
    %v171 = vld [vmem:[%s0 + $0x8] sm:$0xff]
    %v172 = vld [vmem:[%s0 + $0x10] sm:$0xff]
    %v173 = vld [vmem:[%s0 + $0x18] sm:$0xff]
    %v174 = vld [vmem:[%s0 + $0x20] sm:$0xff]
    %v175 = vld [vmem:[%s0 + $0x28] sm:$0xff]
    %v176 = vld [vmem:[%s0 + $0x30] sm:$0xff]
    %v177 = vld [vmem:[%s0 + $0x38] sm:$0xff]
    %v178 = vld [vmem:[%s0 + $0x40] sm:$0xff]
    %v179 = vld [vmem:[%s0 + $0x48] sm:$0xff]
    %v180 = vld [vmem:[%s0 + $0x50] sm:$0xff]
    %v181 = vld [vmem:[%s0 + $0x58] sm:$0xff]
    %v182 = vld [vmem:[%s0 + $0x60] sm:$0xff]
    %v183 = vld [vmem:[%s0 + $0x68] sm:$0xff]
    %v184 = vld [vmem:[%s0 + $0x70] sm:$0xff]
    %v185 = vld [vmem:[%s0 + $0x78] sm:$0xff]
    %v186 = vlaneseq
    %v187 = vand.u32 %v186, 127
    %v188 = vadd.s32 %v187, 128
    %189 = vset.pattern.permute.xlu0 0
    %190 = vperm.xlu0 %189, %v170
    %v191 = vpop.permute.xlu0 %190
    %192 = vset.pattern.permute.xlu0 0
    %193 = vperm.xlu0 %192, %v171
    %v194 = vpop.permute.xlu0 %193
    %195 = vset.pattern.permute.xlu0 0
    %196 = vperm.xlu0 %195, %v172
    %v197 = vpop.permute.xlu0 %196
    %198 = vset.pattern.permute.xlu0 0
    %199 = vperm.xlu0 %198, %v173
    %v200 = vpop.permute.xlu0 %199
    %201 = vset.pattern.permute.xlu0 0
    %202 = vperm.xlu0 %201, %v174
    %v203 = vpop.permute.xlu0 %202
    %204 = vset.pattern.permute.xlu0 0
    %205 = vperm.xlu0 %204, %v175
    %v206 = vpop.permute.xlu0 %205
    %207 = vset.pattern.permute.xlu0 0
    %208 = vperm.xlu0 %207, %v176
    %v209 = vpop.permute.xlu0 %208
    %210 = vset.pattern.permute.xlu0 0
    %211 = vperm.xlu0 %210, %v177
    %v212 = vpop.permute.xlu0 %211
    %213 = vset.pattern.permute.xlu0 0
    %214 = vperm.xlu0 %213, %v178
    %v215 = vpop.permute.xlu0 %214
    %216 = vset.pattern.permute.xlu0 0
    %217 = vperm.xlu0 %216, %v179
    %v218 = vpop.permute.xlu0 %217
    %219 = vset.pattern.permute.xlu0 0
    %220 = vperm.xlu0 %219, %v180
    %v221 = vpop.permute.xlu0 %220
    %222 = vset.pattern.permute.xlu0 0
    %223 = vperm.xlu0 %222, %v181
    %v224 = vpop.permute.xlu0 %223
    %225 = vset.pattern.permute.xlu0 0
    %226 = vperm.xlu0 %225, %v182
    %v227 = vpop.permute.xlu0 %226
    %228 = vset.pattern.permute.xlu0 0
    %229 = vperm.xlu0 %228, %v183
    %v230 = vpop.permute.xlu0 %229
    %231 = vset.pattern.permute.xlu0 0
    %232 = vperm.xlu0 %231, %v184
    %v233 = vpop.permute.xlu0 %232
    %234 = vset.pattern.permute.xlu0 0
    %235 = vperm.xlu0 %234, %v185
    %v236 = vpop.permute.xlu0 %235
    %vm237 = vcmp.eq.s32.totalorder %v187, %v191
    %vm238 = vcmp.eq.s32.totalorder %v188, %v191
    %vm239 = vcmp.eq.s32.totalorder %v187, %v194
    %vm240 = vcmp.eq.s32.totalorder %v188, %v194
    %vm241 = vcmp.eq.s32.totalorder %v187, %v197
    %vm242 = vcmp.eq.s32.totalorder %v188, %v197
    %vm243 = vcmp.eq.s32.totalorder %v187, %v200
    %vm244 = vcmp.eq.s32.totalorder %v188, %v200
    %vm245 = vcmp.eq.s32.totalorder %v187, %v203
    %vm246 = vcmp.eq.s32.totalorder %v188, %v203
    %vm247 = vcmp.eq.s32.totalorder %v187, %v206
    %vm248 = vcmp.eq.s32.totalorder %v188, %v206
    %vm249 = vcmp.eq.s32.totalorder %v187, %v209
    %vm250 = vcmp.eq.s32.totalorder %v188, %v209
    %vm251 = vcmp.eq.s32.totalorder %v187, %v212
    %vm252 = vcmp.eq.s32.totalorder %v188, %v212
    %vm253 = vcmp.eq.s32.totalorder %v187, %v215
    %vm254 = vcmp.eq.s32.totalorder %v188, %v215
    %vm255 = vcmp.eq.s32.totalorder %v187, %v218
    %vm256 = vcmp.eq.s32.totalorder %v188, %v218
    %vm257 = vcmp.eq.s32.totalorder %v187, %v221
    %vm258 = vcmp.eq.s32.totalorder %v188, %v221
    %vm259 = vcmp.eq.s32.totalorder %v187, %v224
    %vm260 = vcmp.eq.s32.totalorder %v188, %v224
    %vm261 = vcmp.eq.s32.totalorder %v187, %v227
    %vm262 = vcmp.eq.s32.totalorder %v188, %v227
    %vm263 = vcmp.eq.s32.totalorder %v187, %v230
    %vm264 = vcmp.eq.s32.totalorder %v188, %v230
    %vm265 = vcmp.eq.s32.totalorder %v187, %v233
    %vm266 = vcmp.eq.s32.totalorder %v188, %v233
    %vm267 = vcmp.eq.s32.totalorder %v187, %v236
    %vm268 = vcmp.eq.s32.totalorder %v188, %v236
    %v269 = vsel %vm237, 1.0, 0.0
    %v270 = vsel %vm238, 1.0, 0.0
    %v271 = vsel %vm239, 1.0, 0.0
    %v272 = vsel %vm240, 1.0, 0.0
    %v273 = vsel %vm241, 1.0, 0.0
    %v274 = vsel %vm242, 1.0, 0.0
    %v275 = vsel %vm243, 1.0, 0.0
    %v276 = vsel %vm244, 1.0, 0.0
    %v277 = vsel %vm245, 1.0, 0.0
    %v278 = vsel %vm246, 1.0, 0.0
    %v279 = vsel %vm247, 1.0, 0.0
    %v280 = vsel %vm248, 1.0, 0.0
    %v281 = vsel %vm249, 1.0, 0.0
    %v282 = vsel %vm250, 1.0, 0.0
    %v283 = vsel %vm251, 1.0, 0.0
    %v284 = vsel %vm252, 1.0, 0.0
    %v285 = vsel %vm253, 1.0, 0.0
    %v286 = vsel %vm254, 1.0, 0.0
    %v287 = vsel %vm255, 1.0, 0.0
    %v288 = vsel %vm256, 1.0, 0.0
    %v289 = vsel %vm257, 1.0, 0.0
    %v290 = vsel %vm258, 1.0, 0.0
    %v291 = vsel %vm259, 1.0, 0.0
    %v292 = vsel %vm260, 1.0, 0.0
    %v293 = vsel %vm261, 1.0, 0.0
    %v294 = vsel %vm262, 1.0, 0.0
    %v295 = vsel %vm263, 1.0, 0.0
    %v296 = vsel %vm264, 1.0, 0.0
    %v297 = vsel %vm265, 1.0, 0.0
    %v298 = vsel %vm266, 1.0, 0.0
    %v299 = vsel %vm267, 1.0, 0.0
    %v300 = vsel %vm268, 1.0, 0.0
    %v301 = vpack.c.bf16 %v271, %v269
    %v302 = vpack.c.bf16 %v272, %v270
    %v303 = vpack.c.bf16 %v275, %v273
    %v304 = vpack.c.bf16 %v276, %v274
    %v305 = vpack.c.bf16 %v279, %v277
    %v306 = vpack.c.bf16 %v280, %v278
    %v307 = vpack.c.bf16 %v283, %v281
    %v308 = vpack.c.bf16 %v284, %v282
    %v309 = vpack.c.bf16 %v287, %v285
    %v310 = vpack.c.bf16 %v288, %v286
    %v311 = vpack.c.bf16 %v291, %v289
    %v312 = vpack.c.bf16 %v292, %v290
    %v313 = vpack.c.bf16 %v295, %v293
    %v314 = vpack.c.bf16 %v296, %v294
    %v315 = vpack.c.bf16 %v299, %v297
    %v316 = vpack.c.bf16 %v300, %v298
    %v317 = vld [vmem:[%s1] sm:$0xff]
    %v318 = vld [vmem:[%s1 + $0x8] sm:$0xff]
    %v319 = vld [vmem:[%s1 + $0x10] sm:$0xff]
    %v320 = vld [vmem:[%s1 + $0x18] sm:$0xff]
    %v321 = vld [vmem:[%s1 + $0x20] sm:$0xff]
    %v322 = vld [vmem:[%s1 + $0x28] sm:$0xff]
    %v323 = vld [vmem:[%s1 + $0x30] sm:$0xff]
    %v324 = vld [vmem:[%s1 + $0x38] sm:$0xff]
    %v325 = vld [vmem:[%s1 + $0x40] sm:$0xff]
    %v326 = vld [vmem:[%s1 + $0x48] sm:$0xff]
    %v327 = vld [vmem:[%s1 + $0x50] sm:$0xff]
    %v328 = vld [vmem:[%s1 + $0x58] sm:$0xff]
    %v329 = vld [vmem:[%s1 + $0x60] sm:$0xff]
    %v330 = vld [vmem:[%s1 + $0x68] sm:$0xff]
    %v331 = vld [vmem:[%s1 + $0x70] sm:$0xff]
    %v332 = vld [vmem:[%s1 + $0x78] sm:$0xff]
    %v333 = vld [vmem:[%s1 + $0x80] sm:$0xff]
    %v334 = vld [vmem:[%s1 + $0x88] sm:$0xff]
    %v335 = vld [vmem:[%s1 + $0x90] sm:$0xff]
    %v336 = vld [vmem:[%s1 + $0x98] sm:$0xff]
    %v337 = vld [vmem:[%s1 + $0xa0] sm:$0xff]
    %v338 = vld [vmem:[%s1 + $0xa8] sm:$0xff]
    %v339 = vld [vmem:[%s1 + $0xb0] sm:$0xff]
    %v340 = vld [vmem:[%s1 + $0xb8] sm:$0xff]
    %v341 = vld [vmem:[%s1 + $0xc0] sm:$0xff]
    %v342 = vld [vmem:[%s1 + $0xc8] sm:$0xff]
    %v343 = vld [vmem:[%s1 + $0xd0] sm:$0xff]
    %v344 = vld [vmem:[%s1 + $0xd8] sm:$0xff]
    %v345 = vld [vmem:[%s1 + $0xe0] sm:$0xff]
    %v346 = vld [vmem:[%s1 + $0xe8] sm:$0xff]
    %v347 = vld [vmem:[%s1 + $0xf0] sm:$0xff]
    %v348 = vld [vmem:[%s1 + $0xf8] sm:$0xff]
    %v381 = vunpack.c.l.b16 %v317
    %v382 = vunpack.c.h.b16 %v317
    %v383 = vunpack.c.l.b16 %v318
    %v384 = vunpack.c.h.b16 %v318
    %v385 = vunpack.c.l.b16 %v319
    %v386 = vunpack.c.h.b16 %v319
    %v387 = vunpack.c.l.b16 %v320
    %v388 = vunpack.c.h.b16 %v320
    %v389 = vunpack.c.l.b16 %v321
    %v390 = vunpack.c.h.b16 %v321
    %v391 = vunpack.c.l.b16 %v322
    %v392 = vunpack.c.h.b16 %v322
    %v393 = vunpack.c.l.b16 %v323
    %v394 = vunpack.c.h.b16 %v323
    %v395 = vunpack.c.l.b16 %v324
    %v396 = vunpack.c.h.b16 %v324
    %v397 = vunpack.c.l.b16 %v325
    %v398 = vunpack.c.h.b16 %v325
    %v399 = vunpack.c.l.b16 %v326
    %v400 = vunpack.c.h.b16 %v326
    %v401 = vunpack.c.l.b16 %v327
    %v402 = vunpack.c.h.b16 %v327
    %v403 = vunpack.c.l.b16 %v328
    %v404 = vunpack.c.h.b16 %v328
    %v405 = vunpack.c.l.b16 %v329
    %v406 = vunpack.c.h.b16 %v329
    %v407 = vunpack.c.l.b16 %v330
    %v408 = vunpack.c.h.b16 %v330
    %v409 = vunpack.c.l.b16 %v331
    %v410 = vunpack.c.h.b16 %v331
    %v411 = vunpack.c.l.b16 %v332
    %v412 = vunpack.c.h.b16 %v332
    %v413 = vunpack.c.l.b16 %v333
    %v414 = vunpack.c.h.b16 %v333
    %v415 = vunpack.c.l.b16 %v334
    %v416 = vunpack.c.h.b16 %v334
    %v417 = vunpack.c.l.b16 %v335
    %v418 = vunpack.c.h.b16 %v335
    %v419 = vunpack.c.l.b16 %v336
    %v420 = vunpack.c.h.b16 %v336
    %v421 = vunpack.c.l.b16 %v337
    %v422 = vunpack.c.h.b16 %v337
    %v423 = vunpack.c.l.b16 %v338
    %v424 = vunpack.c.h.b16 %v338
    %v425 = vunpack.c.l.b16 %v339
    %v426 = vunpack.c.h.b16 %v339
    %v427 = vunpack.c.l.b16 %v340
    %v428 = vunpack.c.h.b16 %v340
    %v429 = vunpack.c.l.b16 %v341
    %v430 = vunpack.c.h.b16 %v341
    %v431 = vunpack.c.l.b16 %v342
    %v432 = vunpack.c.h.b16 %v342
    %v433 = vunpack.c.l.b16 %v343
    %v434 = vunpack.c.h.b16 %v343
    %v435 = vunpack.c.l.b16 %v344
    %v436 = vunpack.c.h.b16 %v344
    %v437 = vunpack.c.l.b16 %v345
    %v438 = vunpack.c.h.b16 %v345
    %v439 = vunpack.c.l.b16 %v346
    %v440 = vunpack.c.h.b16 %v346
    %v441 = vunpack.c.l.b16 %v347
    %v442 = vunpack.c.h.b16 %v347
    %v443 = vunpack.c.l.b16 %v348
    %v444 = vunpack.c.h.b16 %v348
    %v445 = vpack.c.b16 %v383, %v381
    %v446 = vpack.c.b16 %v384, %v382
    %v447 = vpack.c.b16 %v387, %v385
    %v448 = vpack.c.b16 %v388, %v386
    %v449 = vpack.c.b16 %v391, %v389
    %v450 = vpack.c.b16 %v392, %v390
    %v451 = vpack.c.b16 %v395, %v393
    %v452 = vpack.c.b16 %v396, %v394
    %v453 = vpack.c.b16 %v399, %v397
    %v454 = vpack.c.b16 %v400, %v398
    %v455 = vpack.c.b16 %v403, %v401
    %v456 = vpack.c.b16 %v404, %v402
    %v457 = vpack.c.b16 %v407, %v405
    %v458 = vpack.c.b16 %v408, %v406
    %v459 = vpack.c.b16 %v411, %v409
    %v460 = vpack.c.b16 %v412, %v410
    %v461 = vpack.c.b16 %v415, %v413
    %v462 = vpack.c.b16 %v416, %v414
    %v463 = vpack.c.b16 %v419, %v417
    %v464 = vpack.c.b16 %v420, %v418
    %v465 = vpack.c.b16 %v423, %v421
    %v466 = vpack.c.b16 %v424, %v422
    %v467 = vpack.c.b16 %v427, %v425
    %v468 = vpack.c.b16 %v428, %v426
    %v469 = vpack.c.b16 %v431, %v429
    %v470 = vpack.c.b16 %v432, %v430
    %v471 = vpack.c.b16 %v435, %v433
    %v472 = vpack.c.b16 %v436, %v434
    %v473 = vpack.c.b16 %v439, %v437
    %v474 = vpack.c.b16 %v440, %v438
    %v475 = vpack.c.b16 %v443, %v441
    %v476 = vpack.c.b16 %v444, %v442
    %509 = vmatprep.subr.bf16.mxu0 %v446
    %510 = vmatpush1.bf16.msra.mxu0 %v445
    %511 = vmatprep.subr.bf16.mxu0 %v448
    %512 = vmatpush1.bf16.msra.mxu0 %v447
    %513 = vmatprep.subr.bf16.mxu0 %v450
    %514 = vmatpush1.bf16.msra.mxu0 %v449
    %515 = vmatprep.subr.bf16.mxu0 %v452
    %516 = vmatpush1.bf16.msra.mxu0 %v451
    %517 = vmatprep.subr.bf16.mxu0 %v454
    %518 = vmatpush1.bf16.msra.mxu0 %v453
    %519 = vmatprep.subr.bf16.mxu0 %v456
    %520 = vmatpush1.bf16.msra.mxu0 %v455
    %521 = vmatprep.subr.bf16.mxu0 %v458
    %522 = vmatpush1.bf16.msra.mxu0 %v457
    %523 = vmatprep.subr.bf16.mxu0 %v460
    %524 = vmatpush1.bf16.msra.mxu0 %v459
    %525 = vmatprep.subr.bf16.mxu0 %v462
    %526 = vmatpush1.bf16.msra.mxu0 %v461
    %527 = vmatprep.subr.bf16.mxu0 %v464
    %528 = vmatpush1.bf16.msra.mxu0 %v463
    %529 = vmatprep.subr.bf16.mxu0 %v466
    %530 = vmatpush1.bf16.msra.mxu0 %v465
    %531 = vmatprep.subr.bf16.mxu0 %v468
    %532 = vmatpush1.bf16.msra.mxu0 %v467
    %533 = vmatprep.subr.bf16.mxu0 %v470
    %534 = vmatpush1.bf16.msra.mxu0 %v469
    %535 = vmatprep.subr.bf16.mxu0 %v472
    %536 = vmatpush1.bf16.msra.mxu0 %v471
    %537 = vmatprep.subr.bf16.mxu0 %v474
    %538 = vmatpush1.bf16.msra.mxu0 %v473
    %539 = vmatprep.subr.bf16.mxu0 %v476
    %540 = vmatpush1.bf16.msra.mxu0 %v475
    %541 = vmatprep.mubr.bf16.mxu0 %v302
    %542 = vmatmul.mubr.bf16.gmra.mrb[0].mxu0 %v301
    %v543 = vpop.f32.mrb[0].mxu0
    %v544 = vadd.f32 0.0, %v543
    %v545 = vpop.f32.mrb[0].mxu0
    %v546 = vadd.f32 0.0, %v545
    %v547 = vpop.f32.mrb[0].mxu0
    %v548 = vadd.f32 0.0, %v547
    %v549 = vpop.f32.mrb[0].mxu0
    %v550 = vadd.f32 0.0, %v549
    %551 = vmatprep.mubr.bf16.mxu0 %v304
    %552 = vmatmul.mubr.bf16.gmra.mrb[0].mxu0 %v303
    %v553 = vpop.f32.mrb[0].mxu0
    %v554 = vadd.f32 0.0, %v553
    %v555 = vpop.f32.mrb[0].mxu0
    %v556 = vadd.f32 0.0, %v555
    %v557 = vpop.f32.mrb[0].mxu0
    %v558 = vadd.f32 0.0, %v557
    %v559 = vpop.f32.mrb[0].mxu0
    %v560 = vadd.f32 0.0, %v559
    %561 = vmatprep.mubr.bf16.mxu0 %v306
    %562 = vmatmul.mubr.bf16.gmra.mrb[0].mxu0 %v305
    %v563 = vpop.f32.mrb[0].mxu0
    %v564 = vadd.f32 0.0, %v563
    %v565 = vpop.f32.mrb[0].mxu0
    %v566 = vadd.f32 0.0, %v565
    %v567 = vpop.f32.mrb[0].mxu0
    %v568 = vadd.f32 0.0, %v567
    %v569 = vpop.f32.mrb[0].mxu0
    %v570 = vadd.f32 0.0, %v569
    %571 = vmatprep.mubr.bf16.mxu0 %v308
    %572 = vmatmul.mubr.bf16.gmra.mrb[0].mxu0 %v307
    %v573 = vpop.f32.mrb[0].mxu0
    %v574 = vadd.f32 0.0, %v573
    %v575 = vpop.f32.mrb[0].mxu0
    %v576 = vadd.f32 0.0, %v575
    %v577 = vpop.f32.mrb[0].mxu0
    %v578 = vadd.f32 0.0, %v577
    %v579 = vpop.f32.mrb[0].mxu0
    %v580 = vadd.f32 0.0, %v579
    %581 = vmatprep.mubr.bf16.mxu0 %v310
    %582 = vmatmul.mubr.bf16.gmra.mrb[0].mxu0 %v309
    %v583 = vpop.f32.mrb[0].mxu0
    %v584 = vadd.f32 0.0, %v583
    %v585 = vpop.f32.mrb[0].mxu0
    %v586 = vadd.f32 0.0, %v585
    %v587 = vpop.f32.mrb[0].mxu0
    %v588 = vadd.f32 0.0, %v587
    %v589 = vpop.f32.mrb[0].mxu0
    %v590 = vadd.f32 0.0, %v589
    %591 = vmatprep.mubr.bf16.mxu0 %v312
    %592 = vmatmul.mubr.bf16.gmra.mrb[0].mxu0 %v311
    %v593 = vpop.f32.mrb[0].mxu0
    %v594 = vadd.f32 0.0, %v593
    %v595 = vpop.f32.mrb[0].mxu0
    %v596 = vadd.f32 0.0, %v595
    %v597 = vpop.f32.mrb[0].mxu0
    %v598 = vadd.f32 0.0, %v597
    %v599 = vpop.f32.mrb[0].mxu0
    %v600 = vadd.f32 0.0, %v599
    %601 = vmatprep.mubr.bf16.mxu0 %v314
    %602 = vmatmul.mubr.bf16.gmra.mrb[0].mxu0 %v313
    %v603 = vpop.f32.mrb[0].mxu0
    %v604 = vadd.f32 0.0, %v603
    %v605 = vpop.f32.mrb[0].mxu0
    %v606 = vadd.f32 0.0, %v605
    %v607 = vpop.f32.mrb[0].mxu0
    %v608 = vadd.f32 0.0, %v607
    %v609 = vpop.f32.mrb[0].mxu0
    %v610 = vadd.f32 0.0, %v609
    %611 = vmatprep.mubr.bf16.mxu0 %v316
    %612 = vmatmul.mubr.bf16.gmra.mrb[0].mxu0 %v315
    %v613 = vpop.f32.mrb[0].mxu0
    %v614 = vadd.f32 0.0, %v613
    %v615 = vpop.f32.mrb[0].mxu0
    %v616 = vadd.f32 0.0, %v615
    %v617 = vpop.f32.mrb[0].mxu0
    %v618 = vadd.f32 0.0, %v617
    %v619 = vpop.f32.mrb[0].mxu0
    %v620 = vadd.f32 0.0, %v619
    %621 = vdwg.mxu0
    %v622 = vpack.c.bf16 %v548, %v544
    %v623 = vpack.c.bf16 %v550, %v546
    %v624 = vpack.c.bf16 %v558, %v554
    %v625 = vpack.c.bf16 %v560, %v556
    %v626 = vpack.c.bf16 %v568, %v564
    %v627 = vpack.c.bf16 %v570, %v566
    %v628 = vpack.c.bf16 %v578, %v574
    %v629 = vpack.c.bf16 %v580, %v576
    %v630 = vpack.c.bf16 %v588, %v584
    %v631 = vpack.c.bf16 %v590, %v586
    %v632 = vpack.c.bf16 %v598, %v594
    %v633 = vpack.c.bf16 %v600, %v596
    %v634 = vpack.c.bf16 %v608, %v604
    %v635 = vpack.c.bf16 %v610, %v606
    %v636 = vpack.c.bf16 %v618, %v614
    %v637 = vpack.c.bf16 %v620, %v616
    %v638 = vld [vmem:[%s2] sm:$0xf]
    %v639 = vld [vmem:[%s2 + $0x4] sm:$0xf]
    %v640 = vld [vmem:[%s2 + $0x8] sm:$0xf]
    %v641 = vld [vmem:[%s2 + $0xc] sm:$0xf]
    %v642 = vld [vmem:[%s2 + $0x10] sm:$0xf]
    %v643 = vld [vmem:[%s2 + $0x14] sm:$0xf]
    %v644 = vld [vmem:[%s2 + $0x18] sm:$0xf]
    %v645 = vld [vmem:[%s2 + $0x1c] sm:$0xf]
    %v646 = vld [vmem:[%s2 + $0x20] sm:$0xf]
    %v647 = vld [vmem:[%s2 + $0x24] sm:$0xf]
    %v648 = vld [vmem:[%s2 + $0x28] sm:$0xf]
    %v649 = vld [vmem:[%s2 + $0x2c] sm:$0xf]
    %v650 = vld [vmem:[%s2 + $0x30] sm:$0xf]
    %v651 = vld [vmem:[%s2 + $0x34] sm:$0xf]
    %v652 = vld [vmem:[%s2 + $0x38] sm:$0xf]
    %v653 = vld [vmem:[%s2 + $0x3c] sm:$0xf]
    %v654 = vld [vmem:[%s2 + $0x40] sm:$0xf]
    %v655 = vld [vmem:[%s2 + $0x44] sm:$0xf]
    %v656 = vld [vmem:[%s2 + $0x48] sm:$0x7]
    %v676 = vunpack.c.l.b16 %v638
    %v677 = vunpack.c.l.b16 %v639
    %v678 = vunpack.c.l.b16 %v640
    %v679 = vunpack.c.l.b16 %v641
    %v680 = vunpack.c.l.b16 %v642
    %v681 = vunpack.c.l.b16 %v643
    %v682 = vunpack.c.l.b16 %v644
    %v683 = vunpack.c.l.b16 %v645
    %v684 = vunpack.c.l.b16 %v646
    %v685 = vunpack.c.l.b16 %v647
    %v686 = vunpack.c.l.b16 %v648
    %v687 = vunpack.c.l.b16 %v649
    %v688 = vunpack.c.l.b16 %v650
    %v689 = vunpack.c.l.b16 %v651
    %v690 = vunpack.c.l.b16 %v652
    %v691 = vunpack.c.l.b16 %v653
    %v692 = vunpack.c.l.b16 %v654
    %v693 = vunpack.c.l.b16 %v655
    %v694 = vunpack.c.l.b16 %v656
    %v695 = vpack.c.b16 %v677, %v676
    %v696 = vpack.c.b16 %v679, %v678
    %v697 = vpack.c.b16 %v681, %v680
    %v698 = vpack.c.b16 %v683, %v682
    %v699 = vpack.c.b16 %v685, %v684
    %v700 = vpack.c.b16 %v687, %v686
    %v701 = vpack.c.b16 %v689, %v688
    %v702 = vpack.c.b16 %v691, %v690
    %v703 = vpack.c.b16 %v693, %v692
    %v704 = vpack.c.b16 %v694, %v694
    %vm714 = vcmask 179200
    %v716 = vsel %vm714, %v623, 0
    %v719 = vsel %vm714, %v625, 0
    %v722 = vsel %vm714, %v627, 0
    %v725 = vsel %vm714, %v629, 0
    %v728 = vsel %vm714, %v631, 0
    %v731 = vsel %vm714, %v633, 0
    %v734 = vsel %vm714, %v635, 0
    %v737 = vsel %vm714, %v637, 0
    %vm739 = vcmask 1042432
    %v741 = vsel %vm739, %v704, 0
    %743 = vmatprep.subr.bf16.mxu0 0
    %744 = vmatpush1.bf16.msra.mxu0 %v695
    %745 = vmatprep.subr.bf16.mxu0 0
    %746 = vmatpush1.bf16.msra.mxu0 %v696
    %747 = vmatprep.subr.bf16.mxu0 0
    %748 = vmatpush1.bf16.msra.mxu0 %v697
    %749 = vmatprep.subr.bf16.mxu0 0
    %750 = vmatpush1.bf16.msra.mxu0 %v698
    %751 = vmatprep.subr.bf16.mxu0 0
    %752 = vmatpush1.bf16.msra.mxu0 %v699
    %753 = vmatprep.subr.bf16.mxu0 0
    %754 = vmatpush1.bf16.msra.mxu0 %v700
    %755 = vmatprep.subr.bf16.mxu0 0
    %756 = vmatpush1.bf16.msra.mxu0 %v701
    %757 = vmatprep.subr.bf16.mxu0 0
    %758 = vmatpush1.bf16.msra.mxu0 %v702
    %759 = vmatprep.subr.bf16.mxu0 0
    %760 = vmatpush1.bf16.msra.mxu0 %v703
    %761 = vmatprep.subr.bf16.mxu0 0
    %762 = vmatpush1.bf16.msra.mxu0 %v741
    %763 = vmatprep.subr.bf16.mxu0 0
    %764 = vmatpush1.bf16.msra.mxu0 0
    %765 = vmatprep.subr.bf16.mxu0 0
    %766 = vmatpush1.bf16.msra.mxu0 0
    %767 = vmatprep.subr.bf16.mxu0 0
    %768 = vmatpush1.bf16.msra.mxu0 0
    %769 = vmatprep.subr.bf16.mxu0 0
    %770 = vmatpush1.bf16.msra.mxu0 0
    %771 = vmatprep.subr.bf16.mxu0 0
    %772 = vmatpush1.bf16.msra.mxu0 0
    %773 = vmatprep.subr.bf16.mxu0 0
    %774 = vmatpush1.bf16.msra.mxu0 0
    %775 = vmatprep.mubr.bf16.mxu0 %v716
    %776 = vmatmul.mubr.bf16.gmra.mrb[0].mxu0 %v622
    %v777 = vpop.f32.mrb[0].mxu0
    %v778 = vadd.f32 0.0, %v777
    %v779 = vpop.f32.mrb[0].mxu0
    %v780 = vpop.f32.mrb[0].mxu0
    %v781 = vadd.f32 0.0, %v780
    %v782 = vpop.f32.mrb[0].mxu0
    %783 = vmatprep.mubr.bf16.mxu0 %v719
    %784 = vmatmul.mubr.bf16.gmra.mrb[0].mxu0 %v624
    %v785 = vpop.f32.mrb[0].mxu0
    %v786 = vadd.f32 0.0, %v785
    %v787 = vpop.f32.mrb[0].mxu0
    %v788 = vpop.f32.mrb[0].mxu0
    %v789 = vadd.f32 0.0, %v788
    %v790 = vpop.f32.mrb[0].mxu0
    %791 = vmatprep.mubr.bf16.mxu0 %v722
    %792 = vmatmul.mubr.bf16.gmra.mrb[0].mxu0 %v626
    %v793 = vpop.f32.mrb[0].mxu0
    %v794 = vadd.f32 0.0, %v793
    %v795 = vpop.f32.mrb[0].mxu0
    %v796 = vpop.f32.mrb[0].mxu0
    %v797 = vadd.f32 0.0, %v796
    %v798 = vpop.f32.mrb[0].mxu0
    %799 = vmatprep.mubr.bf16.mxu0 %v725
    %800 = vmatmul.mubr.bf16.gmra.mrb[0].mxu0 %v628
    %v801 = vpop.f32.mrb[0].mxu0
    %v802 = vadd.f32 0.0, %v801
    %v803 = vpop.f32.mrb[0].mxu0
    %v804 = vpop.f32.mrb[0].mxu0
    %v805 = vadd.f32 0.0, %v804
    %v806 = vpop.f32.mrb[0].mxu0
    %807 = vmatprep.mubr.bf16.mxu0 %v728
    %808 = vmatmul.mubr.bf16.gmra.mrb[0].mxu0 %v630
    %v809 = vpop.f32.mrb[0].mxu0
    %v810 = vadd.f32 0.0, %v809
    %v811 = vpop.f32.mrb[0].mxu0
    %v812 = vpop.f32.mrb[0].mxu0
    %v813 = vadd.f32 0.0, %v812
    %v814 = vpop.f32.mrb[0].mxu0
    %815 = vmatprep.mubr.bf16.mxu0 %v731
    %816 = vmatmul.mubr.bf16.gmra.mrb[0].mxu0 %v632
    %v817 = vpop.f32.mrb[0].mxu0
    %v818 = vadd.f32 0.0, %v817
    %v819 = vpop.f32.mrb[0].mxu0
    %v820 = vpop.f32.mrb[0].mxu0
    %v821 = vadd.f32 0.0, %v820
    %v822 = vpop.f32.mrb[0].mxu0
    %823 = vmatprep.mubr.bf16.mxu0 %v734
    %824 = vmatmul.mubr.bf16.gmra.mrb[0].mxu0 %v634
    %v825 = vpop.f32.mrb[0].mxu0
    %v826 = vadd.f32 0.0, %v825
    %v827 = vpop.f32.mrb[0].mxu0
    %v828 = vpop.f32.mrb[0].mxu0
    %v829 = vadd.f32 0.0, %v828
    %v830 = vpop.f32.mrb[0].mxu0
    %831 = vmatprep.mubr.bf16.mxu0 %v737
    %832 = vmatmul.mubr.bf16.gmra.mrb[0].mxu0 %v636
    %v833 = vpop.f32.mrb[0].mxu0
    %v834 = vadd.f32 0.0, %v833
    %v835 = vpop.f32.mrb[0].mxu0
    %v836 = vpop.f32.mrb[0].mxu0
    %v837 = vadd.f32 0.0, %v836
    %v838 = vpop.f32.mrb[0].mxu0
    %839 = vdwg.mxu0
    %vm848 = vcmask 1040384
    %v849 = vrot.slane %v778, 7
    %v850 = vrot.slane %v781, 7
    %v851 = vsel %vm848, %v849, %v850
    %v852 = vrot.slane %v786, 7
    %v853 = vsel %vm848, %v850, %v852
    %v854 = vrot.slane %v789, 7
    %v855 = vsel %vm848, %v852, %v854
    %v856 = vrot.slane %v794, 7
    %v857 = vsel %vm848, %v854, %v856
    %v858 = vrot.slane %v797, 7
    %v859 = vsel %vm848, %v856, %v858
    %v860 = vrot.slane %v802, 7
    %v861 = vsel %vm848, %v858, %v860
    %v862 = vrot.slane %v805, 7
    %v863 = vsel %vm848, %v860, %v862
    %v872 = vsel %vm848, 0.0, %v849
    %v881 = vrot.slane %v810, 7
    %v882 = vrot.slane %v813, 7
    %v883 = vsel %vm848, %v881, %v882
    %v884 = vrot.slane %v818, 7
    %v885 = vsel %vm848, %v882, %v884
    %v886 = vrot.slane %v821, 7
    %v887 = vsel %vm848, %v884, %v886
    %v888 = vrot.slane %v826, 7
    %v889 = vsel %vm848, %v886, %v888
    %v890 = vrot.slane %v829, 7
    %v891 = vsel %vm848, %v888, %v890
    %v892 = vrot.slane %v834, 7
    %v893 = vsel %vm848, %v890, %v892
    %v894 = vrot.slane %v837, 7
    %v895 = vsel %vm848, %v892, %v894
    %v904 = vsel %vm848, 0.0, %v881
    %s905 = scalar_lea.vmem %s2, 76
    %v906 = vld [vmem:[%s905] sm:$0xf]
    %v907 = vld [vmem:[%s905 + $0x4] sm:$0xf]
    %v908 = vld [vmem:[%s905 + $0x8] sm:$0xf]
    %v909 = vld [vmem:[%s905 + $0xc] sm:$0xf]
    %v910 = vld [vmem:[%s905 + $0x10] sm:$0xf]
    %v911 = vld [vmem:[%s905 + $0x14] sm:$0xf]
    %v912 = vld [vmem:[%s905 + $0x18] sm:$0xf]
    %v913 = vld [vmem:[%s905 + $0x1c] sm:$0xf]
    %v914 = vld [vmem:[%s905 + $0x20] sm:$0xf]
    %v915 = vld [vmem:[%s905 + $0x24] sm:$0xf]
    %v916 = vld [vmem:[%s905 + $0x28] sm:$0xf]
    %v917 = vld [vmem:[%s905 + $0x2c] sm:$0xf]
    %v918 = vld [vmem:[%s905 + $0x30] sm:$0xf]
    %v919 = vld [vmem:[%s905 + $0x34] sm:$0xf]
    %v920 = vld [vmem:[%s905 + $0x38] sm:$0xf]
    %v921 = vld [vmem:[%s905 + $0x3c] sm:$0xf]
    %v922 = vld [vmem:[%s905 + $0x40] sm:$0xf]
    %v923 = vld [vmem:[%s905 + $0x44] sm:$0xf]
    %v924 = vld [vmem:[%s905 + $0x48] sm:$0x7]
    %v944 = vunpack.c.l.b16 %v906
    %v945 = vunpack.c.l.b16 %v907
    %v946 = vunpack.c.l.b16 %v908
    %v947 = vunpack.c.l.b16 %v909
    %v948 = vunpack.c.l.b16 %v910
    %v949 = vunpack.c.l.b16 %v911
    %v950 = vunpack.c.l.b16 %v912
    %v951 = vunpack.c.l.b16 %v913
    %v952 = vunpack.c.l.b16 %v914
    %v953 = vunpack.c.l.b16 %v915
    %v954 = vunpack.c.l.b16 %v916
    %v955 = vunpack.c.l.b16 %v917
    %v956 = vunpack.c.l.b16 %v918
    %v957 = vunpack.c.l.b16 %v919
    %v958 = vunpack.c.l.b16 %v920
    %v959 = vunpack.c.l.b16 %v921
    %v960 = vunpack.c.l.b16 %v922
    %v961 = vunpack.c.l.b16 %v923
    %v962 = vunpack.c.l.b16 %v924
    %v963 = vpack.c.b16 %v945, %v944
    %v964 = vpack.c.b16 %v947, %v946
    %v965 = vpack.c.b16 %v949, %v948
    %v966 = vpack.c.b16 %v951, %v950
    %v967 = vpack.c.b16 %v953, %v952
    %v968 = vpack.c.b16 %v955, %v954
    %v969 = vpack.c.b16 %v957, %v956
    %v970 = vpack.c.b16 %v959, %v958
    %v971 = vpack.c.b16 %v961, %v960
    %v972 = vpack.c.b16 %v962, %v962
    %v983 = vsel %vm739, %v972, 0
    %985 = vmatprep.subr.bf16.mxu0 0
    %986 = vmatpush1.bf16.msra.mxu0 %v963
    %987 = vmatprep.subr.bf16.mxu0 0
    %988 = vmatpush1.bf16.msra.mxu0 %v964
    %989 = vmatprep.subr.bf16.mxu0 0
    %990 = vmatpush1.bf16.msra.mxu0 %v965
    %991 = vmatprep.subr.bf16.mxu0 0
    %992 = vmatpush1.bf16.msra.mxu0 %v966
    %993 = vmatprep.subr.bf16.mxu0 0
    %994 = vmatpush1.bf16.msra.mxu0 %v967
    %995 = vmatprep.subr.bf16.mxu0 0
    %996 = vmatpush1.bf16.msra.mxu0 %v968
    %997 = vmatprep.subr.bf16.mxu0 0
    %998 = vmatpush1.bf16.msra.mxu0 %v969
    %999 = vmatprep.subr.bf16.mxu0 0
    %1000 = vmatpush1.bf16.msra.mxu0 %v970
    %1001 = vmatprep.subr.bf16.mxu0 0
    %1002 = vmatpush1.bf16.msra.mxu0 %v971
    %1003 = vmatprep.subr.bf16.mxu0 0
    %1004 = vmatpush1.bf16.msra.mxu0 %v983
    %1005 = vmatprep.subr.bf16.mxu0 0
    %1006 = vmatpush1.bf16.msra.mxu0 0
    %1007 = vmatprep.subr.bf16.mxu0 0
    %1008 = vmatpush1.bf16.msra.mxu0 0
    %1009 = vmatprep.subr.bf16.mxu0 0
    %1010 = vmatpush1.bf16.msra.mxu0 0
    %1011 = vmatprep.subr.bf16.mxu0 0
    %1012 = vmatpush1.bf16.msra.mxu0 0
    %1013 = vmatprep.subr.bf16.mxu0 0
    %1014 = vmatpush1.bf16.msra.mxu0 0
    %1015 = vmatprep.subr.bf16.mxu0 0
    %1016 = vmatpush1.bf16.msra.mxu0 0
    %1017 = vmatprep.mubr.bf16.mxu0 %v716
    %1018 = vmatmul.mubr.bf16.gmra.mrb[0].mxu0 %v622
    %v1019 = vpop.f32.mrb[0].mxu0
    %v1020 = vadd.f32 0.0, %v1019
    %v1021 = vpop.f32.mrb[0].mxu0
    %v1022 = vpop.f32.mrb[0].mxu0
    %v1023 = vadd.f32 0.0, %v1022
    %v1024 = vpop.f32.mrb[0].mxu0
    %1025 = vmatprep.mubr.bf16.mxu0 %v719
    %1026 = vmatmul.mubr.bf16.gmra.mrb[0].mxu0 %v624
    %v1027 = vpop.f32.mrb[0].mxu0
    %v1028 = vadd.f32 0.0, %v1027
    %v1029 = vpop.f32.mrb[0].mxu0
    %v1030 = vpop.f32.mrb[0].mxu0
    %v1031 = vadd.f32 0.0, %v1030
    %v1032 = vpop.f32.mrb[0].mxu0
    %1033 = vmatprep.mubr.bf16.mxu0 %v722
    %1034 = vmatmul.mubr.bf16.gmra.mrb[0].mxu0 %v626
    %v1035 = vpop.f32.mrb[0].mxu0
    %v1036 = vadd.f32 0.0, %v1035
    %v1037 = vpop.f32.mrb[0].mxu0
    %v1038 = vpop.f32.mrb[0].mxu0
    %v1039 = vadd.f32 0.0, %v1038
    %v1040 = vpop.f32.mrb[0].mxu0
    %1041 = vmatprep.mubr.bf16.mxu0 %v725
    %1042 = vmatmul.mubr.bf16.gmra.mrb[0].mxu0 %v628
    %v1043 = vpop.f32.mrb[0].mxu0
    %v1044 = vadd.f32 0.0, %v1043
    %v1045 = vpop.f32.mrb[0].mxu0
    %v1046 = vpop.f32.mrb[0].mxu0
    %v1047 = vadd.f32 0.0, %v1046
    %v1048 = vpop.f32.mrb[0].mxu0
    %1049 = vmatprep.mubr.bf16.mxu0 %v728
    %1050 = vmatmul.mubr.bf16.gmra.mrb[0].mxu0 %v630
    %v1051 = vpop.f32.mrb[0].mxu0
    %v1052 = vadd.f32 0.0, %v1051
    %v1053 = vpop.f32.mrb[0].mxu0
    %v1054 = vpop.f32.mrb[0].mxu0
    %v1055 = vadd.f32 0.0, %v1054
    %v1056 = vpop.f32.mrb[0].mxu0
    %1057 = vmatprep.mubr.bf16.mxu0 %v731
    %1058 = vmatmul.mubr.bf16.gmra.mrb[0].mxu0 %v632
    %v1059 = vpop.f32.mrb[0].mxu0
    %v1060 = vadd.f32 0.0, %v1059
    %v1061 = vpop.f32.mrb[0].mxu0
    %v1062 = vpop.f32.mrb[0].mxu0
    %v1063 = vadd.f32 0.0, %v1062
    %v1064 = vpop.f32.mrb[0].mxu0
    %1065 = vmatprep.mubr.bf16.mxu0 %v734
    %1066 = vmatmul.mubr.bf16.gmra.mrb[0].mxu0 %v634
    %v1067 = vpop.f32.mrb[0].mxu0
    %v1068 = vadd.f32 0.0, %v1067
    %v1069 = vpop.f32.mrb[0].mxu0
    %v1070 = vpop.f32.mrb[0].mxu0
    %v1071 = vadd.f32 0.0, %v1070
    %v1072 = vpop.f32.mrb[0].mxu0
    %1073 = vmatprep.mubr.bf16.mxu0 %v737
    %1074 = vmatmul.mubr.bf16.gmra.mrb[0].mxu0 %v636
    %v1075 = vpop.f32.mrb[0].mxu0
    %v1076 = vadd.f32 0.0, %v1075
    %v1077 = vpop.f32.mrb[0].mxu0
    %v1078 = vpop.f32.mrb[0].mxu0
    %v1079 = vadd.f32 0.0, %v1078
    %v1080 = vpop.f32.mrb[0].mxu0
    %1081 = vdwg.mxu0
    %v1082 = vadd.f32 %v872, %v1020
    %v1083 = vadd.f32 %v851, %v1023
    %v1084 = vadd.f32 %v853, %v1028
    %v1085 = vadd.f32 %v855, %v1031
    %v1086 = vadd.f32 %v857, %v1036
    %v1087 = vadd.f32 %v859, %v1039
    %v1088 = vadd.f32 %v861, %v1044
    %v1089 = vadd.f32 %v863, %v1047
    %v1090 = vadd.f32 %v904, %v1052
    %v1091 = vadd.f32 %v883, %v1055
    %v1092 = vadd.f32 %v885, %v1060
    %v1093 = vadd.f32 %v887, %v1063
    %v1094 = vadd.f32 %v889, %v1068
    %v1095 = vadd.f32 %v891, %v1071
    %v1096 = vadd.f32 %v893, %v1076
    %v1097 = vadd.f32 %v895, %v1079
    %s1098 = scalar_lea.vmem %s2, 152
    %v1099 = vld [vmem:[%s1098] sm:$0xf]
    %v1100 = vld [vmem:[%s1098 + $0x4] sm:$0xf]
    %v1101 = vld [vmem:[%s1098 + $0x8] sm:$0xf]
    %v1102 = vld [vmem:[%s1098 + $0xc] sm:$0xf]
    %v1103 = vld [vmem:[%s1098 + $0x10] sm:$0xf]
    %v1104 = vld [vmem:[%s1098 + $0x14] sm:$0xf]
    %v1105 = vld [vmem:[%s1098 + $0x18] sm:$0xf]
    %v1106 = vld [vmem:[%s1098 + $0x1c] sm:$0xf]
    %v1107 = vld [vmem:[%s1098 + $0x20] sm:$0xf]
    %v1108 = vld [vmem:[%s1098 + $0x24] sm:$0xf]
    %v1109 = vld [vmem:[%s1098 + $0x28] sm:$0xf]
    %v1110 = vld [vmem:[%s1098 + $0x2c] sm:$0xf]
    %v1111 = vld [vmem:[%s1098 + $0x30] sm:$0xf]
    %v1112 = vld [vmem:[%s1098 + $0x34] sm:$0xf]
    %v1113 = vld [vmem:[%s1098 + $0x38] sm:$0xf]
    %v1114 = vld [vmem:[%s1098 + $0x3c] sm:$0xf]
    %v1115 = vld [vmem:[%s1098 + $0x40] sm:$0xf]
    %v1116 = vld [vmem:[%s1098 + $0x44] sm:$0xf]
    %v1117 = vld [vmem:[%s1098 + $0x48] sm:$0x7]
    %v1137 = vunpack.c.l.b16 %v1099
    %v1138 = vunpack.c.l.b16 %v1100
    %v1139 = vunpack.c.l.b16 %v1101
    %v1140 = vunpack.c.l.b16 %v1102
    %v1141 = vunpack.c.l.b16 %v1103
    %v1142 = vunpack.c.l.b16 %v1104
    %v1143 = vunpack.c.l.b16 %v1105
    %v1144 = vunpack.c.l.b16 %v1106
    %v1145 = vunpack.c.l.b16 %v1107
    %v1146 = vunpack.c.l.b16 %v1108
    %v1147 = vunpack.c.l.b16 %v1109
    %v1148 = vunpack.c.l.b16 %v1110
    %v1149 = vunpack.c.l.b16 %v1111
    %v1150 = vunpack.c.l.b16 %v1112
    %v1151 = vunpack.c.l.b16 %v1113
    %v1152 = vunpack.c.l.b16 %v1114
    %v1153 = vunpack.c.l.b16 %v1115
    %v1154 = vunpack.c.l.b16 %v1116
    %v1155 = vunpack.c.l.b16 %v1117
    %v1156 = vpack.c.b16 %v1138, %v1137
    %v1157 = vpack.c.b16 %v1140, %v1139
    %v1158 = vpack.c.b16 %v1142, %v1141
    %v1159 = vpack.c.b16 %v1144, %v1143
    %v1160 = vpack.c.b16 %v1146, %v1145
    %v1161 = vpack.c.b16 %v1148, %v1147
    %v1162 = vpack.c.b16 %v1150, %v1149
    %v1163 = vpack.c.b16 %v1152, %v1151
    %v1164 = vpack.c.b16 %v1154, %v1153
    %v1165 = vpack.c.b16 %v1155, %v1155
    %v1176 = vsel %vm739, %v1165, 0
    %1178 = vmatprep.subr.bf16.mxu0 0
    %1179 = vmatpush1.bf16.msra.mxu0 %v1156
    %1180 = vmatprep.subr.bf16.mxu0 0
    %1181 = vmatpush1.bf16.msra.mxu0 %v1157
    %1182 = vmatprep.subr.bf16.mxu0 0
    %1183 = vmatpush1.bf16.msra.mxu0 %v1158
    %1184 = vmatprep.subr.bf16.mxu0 0
    %1185 = vmatpush1.bf16.msra.mxu0 %v1159
    %1186 = vmatprep.subr.bf16.mxu0 0
    %1187 = vmatpush1.bf16.msra.mxu0 %v1160
    %1188 = vmatprep.subr.bf16.mxu0 0
    %1189 = vmatpush1.bf16.msra.mxu0 %v1161
    %1190 = vmatprep.subr.bf16.mxu0 0
    %1191 = vmatpush1.bf16.msra.mxu0 %v1162
    %1192 = vmatprep.subr.bf16.mxu0 0
    %1193 = vmatpush1.bf16.msra.mxu0 %v1163
    %1194 = vmatprep.subr.bf16.mxu0 0
    %1195 = vmatpush1.bf16.msra.mxu0 %v1164
    %1196 = vmatprep.subr.bf16.mxu0 0
    %1197 = vmatpush1.bf16.msra.mxu0 %v1176
    %1198 = vmatprep.subr.bf16.mxu0 0
    %1199 = vmatpush1.bf16.msra.mxu0 0
    %1200 = vmatprep.subr.bf16.mxu0 0
    %1201 = vmatpush1.bf16.msra.mxu0 0
    %1202 = vmatprep.subr.bf16.mxu0 0
    %1203 = vmatpush1.bf16.msra.mxu0 0
    %1204 = vmatprep.subr.bf16.mxu0 0
    %1205 = vmatpush1.bf16.msra.mxu0 0
    %1206 = vmatprep.subr.bf16.mxu0 0
    %1207 = vmatpush1.bf16.msra.mxu0 0
    %1208 = vmatprep.subr.bf16.mxu0 0
    %1209 = vmatpush1.bf16.msra.mxu0 0
    %1210 = vmatprep.mubr.bf16.mxu0 %v716
    %1211 = vmatmul.mubr.bf16.gmra.mrb[0].mxu0 %v622
    %v1212 = vpop.f32.mrb[0].mxu0
    %v1213 = vadd.f32 0.0, %v1212
    %v1214 = vpop.f32.mrb[0].mxu0
    %v1215 = vpop.f32.mrb[0].mxu0
    %v1216 = vadd.f32 0.0, %v1215
    %v1217 = vpop.f32.mrb[0].mxu0
    %1218 = vmatprep.mubr.bf16.mxu0 %v719
    %1219 = vmatmul.mubr.bf16.gmra.mrb[0].mxu0 %v624
    %v1220 = vpop.f32.mrb[0].mxu0
    %v1221 = vadd.f32 0.0, %v1220
    %v1222 = vpop.f32.mrb[0].mxu0
    %v1223 = vpop.f32.mrb[0].mxu0
    %v1224 = vadd.f32 0.0, %v1223
    %v1225 = vpop.f32.mrb[0].mxu0
    %1226 = vmatprep.mubr.bf16.mxu0 %v722
    %1227 = vmatmul.mubr.bf16.gmra.mrb[0].mxu0 %v626
    %v1228 = vpop.f32.mrb[0].mxu0
    %v1229 = vadd.f32 0.0, %v1228
    %v1230 = vpop.f32.mrb[0].mxu0
    %v1231 = vpop.f32.mrb[0].mxu0
    %v1232 = vadd.f32 0.0, %v1231
    %v1233 = vpop.f32.mrb[0].mxu0
    %1234 = vmatprep.mubr.bf16.mxu0 %v725
    %1235 = vmatmul.mubr.bf16.gmra.mrb[0].mxu0 %v628
    %v1236 = vpop.f32.mrb[0].mxu0
    %v1237 = vadd.f32 0.0, %v1236
    %v1238 = vpop.f32.mrb[0].mxu0
    %v1239 = vpop.f32.mrb[0].mxu0
    %v1240 = vadd.f32 0.0, %v1239
    %v1241 = vpop.f32.mrb[0].mxu0
    %1242 = vmatprep.mubr.bf16.mxu0 %v728
    %1243 = vmatmul.mubr.bf16.gmra.mrb[0].mxu0 %v630
    %v1244 = vpop.f32.mrb[0].mxu0
    %v1245 = vadd.f32 0.0, %v1244
    %v1246 = vpop.f32.mrb[0].mxu0
    %v1247 = vpop.f32.mrb[0].mxu0
    %v1248 = vadd.f32 0.0, %v1247
    %v1249 = vpop.f32.mrb[0].mxu0
    %1250 = vmatprep.mubr.bf16.mxu0 %v731
    %1251 = vmatmul.mubr.bf16.gmra.mrb[0].mxu0 %v632
    %v1252 = vpop.f32.mrb[0].mxu0
    %v1253 = vadd.f32 0.0, %v1252
    %v1254 = vpop.f32.mrb[0].mxu0
    %v1255 = vpop.f32.mrb[0].mxu0
    %v1256 = vadd.f32 0.0, %v1255
    %v1257 = vpop.f32.mrb[0].mxu0
    %1258 = vmatprep.mubr.bf16.mxu0 %v734
    %1259 = vmatmul.mubr.bf16.gmra.mrb[0].mxu0 %v634
    %v1260 = vpop.f32.mrb[0].mxu0
    %v1261 = vadd.f32 0.0, %v1260
    %v1262 = vpop.f32.mrb[0].mxu0
    %v1263 = vpop.f32.mrb[0].mxu0
    %v1264 = vadd.f32 0.0, %v1263
    %v1265 = vpop.f32.mrb[0].mxu0
    %1266 = vmatprep.mubr.bf16.mxu0 %v737
    %1267 = vmatmul.mubr.bf16.gmra.mrb[0].mxu0 %v636
    %v1268 = vpop.f32.mrb[0].mxu0
    %v1269 = vadd.f32 0.0, %v1268
    %v1270 = vpop.f32.mrb[0].mxu0
    %v1271 = vpop.f32.mrb[0].mxu0
    %v1272 = vadd.f32 0.0, %v1271
    %v1273 = vpop.f32.mrb[0].mxu0
    %1274 = vdwg.mxu0
    %vm1283 = vcmask 1046528
    %v1284 = vrot.slane %v1213, 1
    %v1285 = vrot.slane %v1216, 1
    %v1286 = vsel %vm1283, %v1284, %v1285
    %v1287 = vrot.slane %v1221, 1
    %v1288 = vsel %vm1283, %v1285, %v1287
    %v1289 = vrot.slane %v1224, 1
    %v1290 = vsel %vm1283, %v1287, %v1289
    %v1291 = vrot.slane %v1229, 1
    %v1292 = vsel %vm1283, %v1289, %v1291
    %v1293 = vrot.slane %v1232, 1
    %v1294 = vsel %vm1283, %v1291, %v1293
    %v1295 = vrot.slane %v1237, 1
    %v1296 = vsel %vm1283, %v1293, %v1295
    %v1297 = vrot.slane %v1240, 1
    %v1298 = vsel %vm1283, %v1295, %v1297
    %v1307 = vadd.f32 %v1082, %v1286
    %v1308 = vadd.f32 %v1083, %v1288
    %v1309 = vadd.f32 %v1084, %v1290
    %v1310 = vadd.f32 %v1085, %v1292
    %v1311 = vadd.f32 %v1086, %v1294
    %v1312 = vadd.f32 %v1087, %v1296
    %v1313 = vadd.f32 %v1088, %v1298
    %v1314 = vadd.f32 %v1089, %v1297
    %v1323 = vrot.slane %v1245, 1
    %v1324 = vrot.slane %v1248, 1
    %v1325 = vsel %vm1283, %v1323, %v1324
    %v1326 = vrot.slane %v1253, 1
    %v1327 = vsel %vm1283, %v1324, %v1326
    %v1328 = vrot.slane %v1256, 1
    %v1329 = vsel %vm1283, %v1326, %v1328
    %v1330 = vrot.slane %v1261, 1
    %v1331 = vsel %vm1283, %v1328, %v1330
    %v1332 = vrot.slane %v1264, 1
    %v1333 = vsel %vm1283, %v1330, %v1332
    %v1334 = vrot.slane %v1269, 1
    %v1335 = vsel %vm1283, %v1332, %v1334
    %v1336 = vrot.slane %v1272, 1
    %v1337 = vsel %vm1283, %v1334, %v1336
    %v1346 = vadd.f32 %v1090, %v1325
    %v1347 = vadd.f32 %v1091, %v1327
    %v1348 = vadd.f32 %v1092, %v1329
    %v1349 = vadd.f32 %v1093, %v1331
    %v1350 = vadd.f32 %v1094, %v1333
    %v1351 = vadd.f32 %v1095, %v1335
    %v1352 = vadd.f32 %v1096, %v1337
    %v1353 = vadd.f32 %v1097, %v1336
    %s1354 = scalar_lea.vmem %s2, 228
    %v1355 = vld [vmem:[%s1354] sm:$0xf]
    %v1356 = vld [vmem:[%s1354 + $0x4] sm:$0xf]
    %v1357 = vld [vmem:[%s1354 + $0x8] sm:$0xf]
    %v1358 = vld [vmem:[%s1354 + $0xc] sm:$0xf]
    %v1359 = vld [vmem:[%s1354 + $0x10] sm:$0xf]
    %v1360 = vld [vmem:[%s1354 + $0x14] sm:$0xf]
    %v1361 = vld [vmem:[%s1354 + $0x18] sm:$0xf]
    %v1362 = vld [vmem:[%s1354 + $0x1c] sm:$0xf]
    %v1363 = vld [vmem:[%s1354 + $0x20] sm:$0xf]
    %v1364 = vld [vmem:[%s1354 + $0x24] sm:$0xf]
    %v1365 = vld [vmem:[%s1354 + $0x28] sm:$0xf]
    %v1366 = vld [vmem:[%s1354 + $0x2c] sm:$0xf]
    %v1367 = vld [vmem:[%s1354 + $0x30] sm:$0xf]
    %v1368 = vld [vmem:[%s1354 + $0x34] sm:$0xf]
    %v1369 = vld [vmem:[%s1354 + $0x38] sm:$0xf]
    %v1370 = vld [vmem:[%s1354 + $0x3c] sm:$0xf]
    %v1371 = vld [vmem:[%s1354 + $0x40] sm:$0xf]
    %v1372 = vld [vmem:[%s1354 + $0x44] sm:$0xf]
    %v1373 = vld [vmem:[%s1354 + $0x48] sm:$0x7]
    %v1393 = vunpack.c.l.b16 %v1355
    %v1394 = vunpack.c.l.b16 %v1356
    %v1395 = vunpack.c.l.b16 %v1357
    %v1396 = vunpack.c.l.b16 %v1358
    %v1397 = vunpack.c.l.b16 %v1359
    %v1398 = vunpack.c.l.b16 %v1360
    %v1399 = vunpack.c.l.b16 %v1361
    %v1400 = vunpack.c.l.b16 %v1362
    %v1401 = vunpack.c.l.b16 %v1363
    %v1402 = vunpack.c.l.b16 %v1364
    %v1403 = vunpack.c.l.b16 %v1365
    %v1404 = vunpack.c.l.b16 %v1366
    %v1405 = vunpack.c.l.b16 %v1367
    %v1406 = vunpack.c.l.b16 %v1368
    %v1407 = vunpack.c.l.b16 %v1369
    %v1408 = vunpack.c.l.b16 %v1370
    %v1409 = vunpack.c.l.b16 %v1371
    %v1410 = vunpack.c.l.b16 %v1372
    %v1411 = vunpack.c.l.b16 %v1373
    %v1412 = vpack.c.b16 %v1394, %v1393
    %v1413 = vpack.c.b16 %v1396, %v1395
    %v1414 = vpack.c.b16 %v1398, %v1397
    %v1415 = vpack.c.b16 %v1400, %v1399
    %v1416 = vpack.c.b16 %v1402, %v1401
    %v1417 = vpack.c.b16 %v1404, %v1403
    %v1418 = vpack.c.b16 %v1406, %v1405
    %v1419 = vpack.c.b16 %v1408, %v1407
    %v1420 = vpack.c.b16 %v1410, %v1409
    %v1421 = vpack.c.b16 %v1411, %v1411
    %v1432 = vsel %vm739, %v1421, 0
    %1434 = vmatprep.subr.bf16.mxu0 0
    %1435 = vmatpush1.bf16.msra.mxu0 %v1412
    %1436 = vmatprep.subr.bf16.mxu0 0
    %1437 = vmatpush1.bf16.msra.mxu0 %v1413
    %1438 = vmatprep.subr.bf16.mxu0 0
    %1439 = vmatpush1.bf16.msra.mxu0 %v1414
    %1440 = vmatprep.subr.bf16.mxu0 0
    %1441 = vmatpush1.bf16.msra.mxu0 %v1415
    %1442 = vmatprep.subr.bf16.mxu0 0
    %1443 = vmatpush1.bf16.msra.mxu0 %v1416
    %1444 = vmatprep.subr.bf16.mxu0 0
    %1445 = vmatpush1.bf16.msra.mxu0 %v1417
    %1446 = vmatprep.subr.bf16.mxu0 0
    %1447 = vmatpush1.bf16.msra.mxu0 %v1418
    %1448 = vmatprep.subr.bf16.mxu0 0
    %1449 = vmatpush1.bf16.msra.mxu0 %v1419
    %1450 = vmatprep.subr.bf16.mxu0 0
    %1451 = vmatpush1.bf16.msra.mxu0 %v1420
    %1452 = vmatprep.subr.bf16.mxu0 0
    %1453 = vmatpush1.bf16.msra.mxu0 %v1432
    %1454 = vmatprep.subr.bf16.mxu0 0
    %1455 = vmatpush1.bf16.msra.mxu0 0
    %1456 = vmatprep.subr.bf16.mxu0 0
    %1457 = vmatpush1.bf16.msra.mxu0 0
    %1458 = vmatprep.subr.bf16.mxu0 0
    %1459 = vmatpush1.bf16.msra.mxu0 0
    %1460 = vmatprep.subr.bf16.mxu0 0
    %1461 = vmatpush1.bf16.msra.mxu0 0
    %1462 = vmatprep.subr.bf16.mxu0 0
    %1463 = vmatpush1.bf16.msra.mxu0 0
    %1464 = vmatprep.subr.bf16.mxu0 0
    %1465 = vmatpush1.bf16.msra.mxu0 0
    %1466 = vmatprep.mubr.bf16.mxu0 %v716
    %1467 = vmatmul.mubr.bf16.gmra.mrb[0].mxu0 %v622
    %v1468 = vpop.f32.mrb[0].mxu0
    %v1469 = vadd.f32 0.0, %v1468
    %v1470 = vpop.f32.mrb[0].mxu0
    %v1471 = vpop.f32.mrb[0].mxu0
    %v1472 = vadd.f32 0.0, %v1471
    %v1473 = vpop.f32.mrb[0].mxu0
    %1474 = vmatprep.mubr.bf16.mxu0 %v719
    %1475 = vmatmul.mubr.bf16.gmra.mrb[0].mxu0 %v624
    %v1476 = vpop.f32.mrb[0].mxu0
    %v1477 = vadd.f32 0.0, %v1476
    %v1478 = vpop.f32.mrb[0].mxu0
    %v1479 = vpop.f32.mrb[0].mxu0
    %v1480 = vadd.f32 0.0, %v1479
    %v1481 = vpop.f32.mrb[0].mxu0
    %1482 = vmatprep.mubr.bf16.mxu0 %v722
    %1483 = vmatmul.mubr.bf16.gmra.mrb[0].mxu0 %v626
    %v1484 = vpop.f32.mrb[0].mxu0
    %v1485 = vadd.f32 0.0, %v1484
    %v1486 = vpop.f32.mrb[0].mxu0
    %v1487 = vpop.f32.mrb[0].mxu0
    %v1488 = vadd.f32 0.0, %v1487
    %v1489 = vpop.f32.mrb[0].mxu0
    %1490 = vmatprep.mubr.bf16.mxu0 %v725
    %1491 = vmatmul.mubr.bf16.gmra.mrb[0].mxu0 %v628
    %v1492 = vpop.f32.mrb[0].mxu0
    %v1493 = vadd.f32 0.0, %v1492
    %v1494 = vpop.f32.mrb[0].mxu0
    %v1495 = vpop.f32.mrb[0].mxu0
    %v1496 = vadd.f32 0.0, %v1495
    %v1497 = vpop.f32.mrb[0].mxu0
    %1498 = vmatprep.mubr.bf16.mxu0 %v728
    %1499 = vmatmul.mubr.bf16.gmra.mrb[0].mxu0 %v630
    %v1500 = vpop.f32.mrb[0].mxu0
    %v1501 = vadd.f32 0.0, %v1500
    %v1502 = vpop.f32.mrb[0].mxu0
    %v1503 = vpop.f32.mrb[0].mxu0
    %v1504 = vadd.f32 0.0, %v1503
    %v1505 = vpop.f32.mrb[0].mxu0
    %1506 = vmatprep.mubr.bf16.mxu0 %v731
    %1507 = vmatmul.mubr.bf16.gmra.mrb[0].mxu0 %v632
    %v1508 = vpop.f32.mrb[0].mxu0
    %v1509 = vadd.f32 0.0, %v1508
    %v1510 = vpop.f32.mrb[0].mxu0
    %v1511 = vpop.f32.mrb[0].mxu0
    %v1512 = vadd.f32 0.0, %v1511
    %v1513 = vpop.f32.mrb[0].mxu0
    %1514 = vmatprep.mubr.bf16.mxu0 %v734
    %1515 = vmatmul.mubr.bf16.gmra.mrb[0].mxu0 %v634
    %v1516 = vpop.f32.mrb[0].mxu0
    %v1517 = vadd.f32 0.0, %v1516
    %v1518 = vpop.f32.mrb[0].mxu0
    %v1519 = vpop.f32.mrb[0].mxu0
    %v1520 = vadd.f32 0.0, %v1519
    %v1521 = vpop.f32.mrb[0].mxu0
    %1522 = vmatprep.mubr.bf16.mxu0 %v737
    %1523 = vmatmul.mubr.bf16.gmra.mrb[0].mxu0 %v636
    %v1524 = vpop.f32.mrb[0].mxu0
    %v1525 = vadd.f32 0.0, %v1524
    %v1526 = vpop.f32.mrb[0].mxu0
    %v1527 = vpop.f32.mrb[0].mxu0
    %v1528 = vadd.f32 0.0, %v1527
    %v1529 = vpop.f32.mrb[0].mxu0
    %1530 = vdwg.mxu0
    %vm1539 = vcmask 1045504
    %v1540 = vrot.slane %v1469, 2
    %v1541 = vrot.slane %v1472, 2
    %v1542 = vsel %vm1539, %v1540, %v1541
    %v1543 = vrot.slane %v1477, 2
    %v1544 = vsel %vm1539, %v1541, %v1543
    %v1545 = vrot.slane %v1480, 2
    %v1546 = vsel %vm1539, %v1543, %v1545
    %v1547 = vrot.slane %v1485, 2
    %v1548 = vsel %vm1539, %v1545, %v1547
    %v1549 = vrot.slane %v1488, 2
    %v1550 = vsel %vm1539, %v1547, %v1549
    %v1551 = vrot.slane %v1493, 2
    %v1552 = vsel %vm1539, %v1549, %v1551
    %v1553 = vrot.slane %v1496, 2
    %v1554 = vsel %vm1539, %v1551, %v1553
    %v1563 = vadd.f32 %v1307, %v1542
    %v1564 = vadd.f32 %v1308, %v1544
    %v1565 = vadd.f32 %v1309, %v1546
    %v1566 = vadd.f32 %v1310, %v1548
    %v1567 = vadd.f32 %v1311, %v1550
    %v1568 = vadd.f32 %v1312, %v1552
    %v1569 = vadd.f32 %v1313, %v1554
    %v1570 = vadd.f32 %v1314, %v1553
    %v1579 = vrot.slane %v1501, 2
    %v1580 = vrot.slane %v1504, 2
    %v1581 = vsel %vm1539, %v1579, %v1580
    %v1582 = vrot.slane %v1509, 2
    %v1583 = vsel %vm1539, %v1580, %v1582
    %v1584 = vrot.slane %v1512, 2
    %v1585 = vsel %vm1539, %v1582, %v1584
    %v1586 = vrot.slane %v1517, 2
    %v1587 = vsel %vm1539, %v1584, %v1586
    %v1588 = vrot.slane %v1520, 2
    %v1589 = vsel %vm1539, %v1586, %v1588
    %v1590 = vrot.slane %v1525, 2
    %v1591 = vsel %vm1539, %v1588, %v1590
    %v1592 = vrot.slane %v1528, 2
    %v1593 = vsel %vm1539, %v1590, %v1592
    %v1602 = vadd.f32 %v1346, %v1581
    %v1603 = vadd.f32 %v1347, %v1583
    %v1604 = vadd.f32 %v1348, %v1585
    %v1605 = vadd.f32 %v1349, %v1587
    %v1606 = vadd.f32 %v1350, %v1589
    %v1607 = vadd.f32 %v1351, %v1591
    %v1608 = vadd.f32 %v1352, %v1593
    %v1609 = vadd.f32 %v1353, %v1592
    %s1610 = scalar_lea.vmem %s2, 304
    %v1611 = vld [vmem:[%s1610] sm:$0xf]
    %v1612 = vld [vmem:[%s1610 + $0x4] sm:$0xf]
    %v1613 = vld [vmem:[%s1610 + $0x8] sm:$0xf]
    %v1614 = vld [vmem:[%s1610 + $0xc] sm:$0xf]
    %v1615 = vld [vmem:[%s1610 + $0x10] sm:$0xf]
    %v1616 = vld [vmem:[%s1610 + $0x14] sm:$0xf]
    %v1617 = vld [vmem:[%s1610 + $0x18] sm:$0xf]
    %v1618 = vld [vmem:[%s1610 + $0x1c] sm:$0xf]
    %v1619 = vld [vmem:[%s1610 + $0x20] sm:$0xf]
    %v1620 = vld [vmem:[%s1610 + $0x24] sm:$0xf]
    %v1621 = vld [vmem:[%s1610 + $0x28] sm:$0xf]
    %v1622 = vld [vmem:[%s1610 + $0x2c] sm:$0xf]
    %v1623 = vld [vmem:[%s1610 + $0x30] sm:$0xf]
    %v1624 = vld [vmem:[%s1610 + $0x34] sm:$0xf]
    %v1625 = vld [vmem:[%s1610 + $0x38] sm:$0xf]
    %v1626 = vld [vmem:[%s1610 + $0x3c] sm:$0xf]
    %v1627 = vld [vmem:[%s1610 + $0x40] sm:$0xf]
    %v1628 = vld [vmem:[%s1610 + $0x44] sm:$0xf]
    %v1629 = vld [vmem:[%s1610 + $0x48] sm:$0x7]
    %v1649 = vunpack.c.l.b16 %v1611
    %v1650 = vunpack.c.l.b16 %v1612
    %v1651 = vunpack.c.l.b16 %v1613
    %v1652 = vunpack.c.l.b16 %v1614
    %v1653 = vunpack.c.l.b16 %v1615
    %v1654 = vunpack.c.l.b16 %v1616
    %v1655 = vunpack.c.l.b16 %v1617
    %v1656 = vunpack.c.l.b16 %v1618
    %v1657 = vunpack.c.l.b16 %v1619
    %v1658 = vunpack.c.l.b16 %v1620
    %v1659 = vunpack.c.l.b16 %v1621
    %v1660 = vunpack.c.l.b16 %v1622
    %v1661 = vunpack.c.l.b16 %v1623
    %v1662 = vunpack.c.l.b16 %v1624
    %v1663 = vunpack.c.l.b16 %v1625
    %v1664 = vunpack.c.l.b16 %v1626
    %v1665 = vunpack.c.l.b16 %v1627
    %v1666 = vunpack.c.l.b16 %v1628
    %v1667 = vunpack.c.l.b16 %v1629
    %v1668 = vpack.c.b16 %v1650, %v1649
    %v1669 = vpack.c.b16 %v1652, %v1651
    %v1670 = vpack.c.b16 %v1654, %v1653
    %v1671 = vpack.c.b16 %v1656, %v1655
    %v1672 = vpack.c.b16 %v1658, %v1657
    %v1673 = vpack.c.b16 %v1660, %v1659
    %v1674 = vpack.c.b16 %v1662, %v1661
    %v1675 = vpack.c.b16 %v1664, %v1663
    %v1676 = vpack.c.b16 %v1666, %v1665
    %v1677 = vpack.c.b16 %v1667, %v1667
    %v1688 = vsel %vm739, %v1677, 0
    %1690 = vmatprep.subr.bf16.mxu0 0
    %1691 = vmatpush1.bf16.msra.mxu0 %v1668
    %1692 = vmatprep.subr.bf16.mxu0 0
    %1693 = vmatpush1.bf16.msra.mxu0 %v1669
    %1694 = vmatprep.subr.bf16.mxu0 0
    %1695 = vmatpush1.bf16.msra.mxu0 %v1670
    %1696 = vmatprep.subr.bf16.mxu0 0
    %1697 = vmatpush1.bf16.msra.mxu0 %v1671
    %1698 = vmatprep.subr.bf16.mxu0 0
    %1699 = vmatpush1.bf16.msra.mxu0 %v1672
    %1700 = vmatprep.subr.bf16.mxu0 0
    %1701 = vmatpush1.bf16.msra.mxu0 %v1673
    %1702 = vmatprep.subr.bf16.mxu0 0
    %1703 = vmatpush1.bf16.msra.mxu0 %v1674
    %1704 = vmatprep.subr.bf16.mxu0 0
    %1705 = vmatpush1.bf16.msra.mxu0 %v1675
    %1706 = vmatprep.subr.bf16.mxu0 0
    %1707 = vmatpush1.bf16.msra.mxu0 %v1676
    %1708 = vmatprep.subr.bf16.mxu0 0
    %1709 = vmatpush1.bf16.msra.mxu0 %v1688
    %1710 = vmatprep.subr.bf16.mxu0 0
    %1711 = vmatpush1.bf16.msra.mxu0 0
    %1712 = vmatprep.subr.bf16.mxu0 0
    %1713 = vmatpush1.bf16.msra.mxu0 0
    %1714 = vmatprep.subr.bf16.mxu0 0
    %1715 = vmatpush1.bf16.msra.mxu0 0
    %1716 = vmatprep.subr.bf16.mxu0 0
    %1717 = vmatpush1.bf16.msra.mxu0 0
    %1718 = vmatprep.subr.bf16.mxu0 0
    %1719 = vmatpush1.bf16.msra.mxu0 0
    %1720 = vmatprep.subr.bf16.mxu0 0
    %1721 = vmatpush1.bf16.msra.mxu0 0
    %1722 = vmatprep.mubr.bf16.mxu0 %v716
    %1723 = vmatmul.mubr.bf16.gmra.mrb[0].mxu0 %v622
    %v1724 = vpop.f32.mrb[0].mxu0
    %v1725 = vadd.f32 0.0, %v1724
    %v1726 = vpop.f32.mrb[0].mxu0
    %v1727 = vpop.f32.mrb[0].mxu0
    %v1728 = vadd.f32 0.0, %v1727
    %v1729 = vpop.f32.mrb[0].mxu0
    %1730 = vmatprep.mubr.bf16.mxu0 %v719
    %1731 = vmatmul.mubr.bf16.gmra.mrb[0].mxu0 %v624
    %v1732 = vpop.f32.mrb[0].mxu0
    %v1733 = vadd.f32 0.0, %v1732
    %v1734 = vpop.f32.mrb[0].mxu0
    %v1735 = vpop.f32.mrb[0].mxu0
    %v1736 = vadd.f32 0.0, %v1735
    %v1737 = vpop.f32.mrb[0].mxu0
    %1738 = vmatprep.mubr.bf16.mxu0 %v722
    %1739 = vmatmul.mubr.bf16.gmra.mrb[0].mxu0 %v626
    %v1740 = vpop.f32.mrb[0].mxu0
    %v1741 = vadd.f32 0.0, %v1740
    %v1742 = vpop.f32.mrb[0].mxu0
    %v1743 = vpop.f32.mrb[0].mxu0
    %v1744 = vadd.f32 0.0, %v1743
    %v1745 = vpop.f32.mrb[0].mxu0
    %1746 = vmatprep.mubr.bf16.mxu0 %v725
    %1747 = vmatmul.mubr.bf16.gmra.mrb[0].mxu0 %v628
    %v1748 = vpop.f32.mrb[0].mxu0
    %v1749 = vadd.f32 0.0, %v1748
    %v1750 = vpop.f32.mrb[0].mxu0
    %v1751 = vpop.f32.mrb[0].mxu0
    %v1752 = vadd.f32 0.0, %v1751
    %v1753 = vpop.f32.mrb[0].mxu0
    %1754 = vmatprep.mubr.bf16.mxu0 %v728
    %1755 = vmatmul.mubr.bf16.gmra.mrb[0].mxu0 %v630
    %v1756 = vpop.f32.mrb[0].mxu0
    %v1757 = vadd.f32 0.0, %v1756
    %v1758 = vpop.f32.mrb[0].mxu0
    %v1759 = vpop.f32.mrb[0].mxu0
    %v1760 = vadd.f32 0.0, %v1759
    %v1761 = vpop.f32.mrb[0].mxu0
    %1762 = vmatprep.mubr.bf16.mxu0 %v731
    %1763 = vmatmul.mubr.bf16.gmra.mrb[0].mxu0 %v632
    %v1764 = vpop.f32.mrb[0].mxu0
    %v1765 = vadd.f32 0.0, %v1764
    %v1766 = vpop.f32.mrb[0].mxu0
    %v1767 = vpop.f32.mrb[0].mxu0
    %v1768 = vadd.f32 0.0, %v1767
    %v1769 = vpop.f32.mrb[0].mxu0
    %1770 = vmatprep.mubr.bf16.mxu0 %v734
    %1771 = vmatmul.mubr.bf16.gmra.mrb[0].mxu0 %v634
    %v1772 = vpop.f32.mrb[0].mxu0
    %v1773 = vadd.f32 0.0, %v1772
    %v1774 = vpop.f32.mrb[0].mxu0
    %v1775 = vpop.f32.mrb[0].mxu0
    %v1776 = vadd.f32 0.0, %v1775
    %v1777 = vpop.f32.mrb[0].mxu0
    %1778 = vmatprep.mubr.bf16.mxu0 %v737
    %1779 = vmatmul.mubr.bf16.gmra.mrb[0].mxu0 %v636
    %v1780 = vpop.f32.mrb[0].mxu0
    %v1781 = vadd.f32 0.0, %v1780
    %v1782 = vpop.f32.mrb[0].mxu0
    %v1783 = vpop.f32.mrb[0].mxu0
    %v1784 = vadd.f32 0.0, %v1783
    %v1785 = vpop.f32.mrb[0].mxu0
    %1786 = vdwg.mxu0
    %vm1795 = vcmask 1044480
    %v1796 = vrot.slane %v1725, 3
    %v1797 = vrot.slane %v1728, 3
    %v1798 = vsel %vm1795, %v1796, %v1797
    %v1799 = vrot.slane %v1733, 3
    %v1800 = vsel %vm1795, %v1797, %v1799
    %v1801 = vrot.slane %v1736, 3
    %v1802 = vsel %vm1795, %v1799, %v1801
    %v1803 = vrot.slane %v1741, 3
    %v1804 = vsel %vm1795, %v1801, %v1803
    %v1805 = vrot.slane %v1744, 3
    %v1806 = vsel %vm1795, %v1803, %v1805
    %v1807 = vrot.slane %v1749, 3
    %v1808 = vsel %vm1795, %v1805, %v1807
    %v1809 = vrot.slane %v1752, 3
    %v1810 = vsel %vm1795, %v1807, %v1809
    %v1819 = vadd.f32 %v1563, %v1798
    %v1820 = vadd.f32 %v1564, %v1800
    %v1821 = vadd.f32 %v1565, %v1802
    %v1822 = vadd.f32 %v1566, %v1804
    %v1823 = vadd.f32 %v1567, %v1806
    %v1824 = vadd.f32 %v1568, %v1808
    %v1825 = vadd.f32 %v1569, %v1810
    %v1826 = vadd.f32 %v1570, %v1809
    %v1835 = vrot.slane %v1757, 3
    %v1836 = vrot.slane %v1760, 3
    %v1837 = vsel %vm1795, %v1835, %v1836
    %v1838 = vrot.slane %v1765, 3
    %v1839 = vsel %vm1795, %v1836, %v1838
    %v1840 = vrot.slane %v1768, 3
    %v1841 = vsel %vm1795, %v1838, %v1840
    %v1842 = vrot.slane %v1773, 3
    %v1843 = vsel %vm1795, %v1840, %v1842
    %v1844 = vrot.slane %v1776, 3
    %v1845 = vsel %vm1795, %v1842, %v1844
    %v1846 = vrot.slane %v1781, 3
    %v1847 = vsel %vm1795, %v1844, %v1846
    %v1848 = vrot.slane %v1784, 3
    %v1849 = vsel %vm1795, %v1846, %v1848
    %v1858 = vadd.f32 %v1602, %v1837
    %v1859 = vadd.f32 %v1603, %v1839
    %v1860 = vadd.f32 %v1604, %v1841
    %v1861 = vadd.f32 %v1605, %v1843
    %v1862 = vadd.f32 %v1606, %v1845
    %v1863 = vadd.f32 %v1607, %v1847
    %v1864 = vadd.f32 %v1608, %v1849
    %v1865 = vadd.f32 %v1609, %v1848
    %s1866 = scalar_lea.vmem %s2, 380
    %v1867 = vld [vmem:[%s1866] sm:$0xf]
    %v1868 = vld [vmem:[%s1866 + $0x4] sm:$0xf]
    %v1869 = vld [vmem:[%s1866 + $0x8] sm:$0xf]
    %v1870 = vld [vmem:[%s1866 + $0xc] sm:$0xf]
    %v1871 = vld [vmem:[%s1866 + $0x10] sm:$0xf]
    %v1872 = vld [vmem:[%s1866 + $0x14] sm:$0xf]
    %v1873 = vld [vmem:[%s1866 + $0x18] sm:$0xf]
    %v1874 = vld [vmem:[%s1866 + $0x1c] sm:$0xf]
    %v1875 = vld [vmem:[%s1866 + $0x20] sm:$0xf]
    %v1876 = vld [vmem:[%s1866 + $0x24] sm:$0xf]
    %v1877 = vld [vmem:[%s1866 + $0x28] sm:$0xf]
    %v1878 = vld [vmem:[%s1866 + $0x2c] sm:$0xf]
    %v1879 = vld [vmem:[%s1866 + $0x30] sm:$0xf]
    %v1880 = vld [vmem:[%s1866 + $0x34] sm:$0xf]
    %v1881 = vld [vmem:[%s1866 + $0x38] sm:$0xf]
    %v1882 = vld [vmem:[%s1866 + $0x3c] sm:$0xf]
    %v1883 = vld [vmem:[%s1866 + $0x40] sm:$0xf]
    %v1884 = vld [vmem:[%s1866 + $0x44] sm:$0xf]
    %v1885 = vld [vmem:[%s1866 + $0x48] sm:$0x7]
    %v1905 = vunpack.c.l.b16 %v1867
    %v1906 = vunpack.c.l.b16 %v1868
    %v1907 = vunpack.c.l.b16 %v1869
    %v1908 = vunpack.c.l.b16 %v1870
    %v1909 = vunpack.c.l.b16 %v1871
    %v1910 = vunpack.c.l.b16 %v1872
    %v1911 = vunpack.c.l.b16 %v1873
    %v1912 = vunpack.c.l.b16 %v1874
    %v1913 = vunpack.c.l.b16 %v1875
    %v1914 = vunpack.c.l.b16 %v1876
    %v1915 = vunpack.c.l.b16 %v1877
    %v1916 = vunpack.c.l.b16 %v1878
    %v1917 = vunpack.c.l.b16 %v1879
    %v1918 = vunpack.c.l.b16 %v1880
    %v1919 = vunpack.c.l.b16 %v1881
    %v1920 = vunpack.c.l.b16 %v1882
    %v1921 = vunpack.c.l.b16 %v1883
    %v1922 = vunpack.c.l.b16 %v1884
    %v1923 = vunpack.c.l.b16 %v1885
    %v1924 = vpack.c.b16 %v1906, %v1905
    %v1925 = vpack.c.b16 %v1908, %v1907
    %v1926 = vpack.c.b16 %v1910, %v1909
    %v1927 = vpack.c.b16 %v1912, %v1911
    %v1928 = vpack.c.b16 %v1914, %v1913
    %v1929 = vpack.c.b16 %v1916, %v1915
    %v1930 = vpack.c.b16 %v1918, %v1917
    %v1931 = vpack.c.b16 %v1920, %v1919
    %v1932 = vpack.c.b16 %v1922, %v1921
    %v1933 = vpack.c.b16 %v1923, %v1923
    %v1944 = vsel %vm739, %v1933, 0
    %1946 = vmatprep.subr.bf16.mxu0 0
    %1947 = vmatpush1.bf16.msra.mxu0 %v1924
    %1948 = vmatprep.subr.bf16.mxu0 0
    %1949 = vmatpush1.bf16.msra.mxu0 %v1925
    %1950 = vmatprep.subr.bf16.mxu0 0
    %1951 = vmatpush1.bf16.msra.mxu0 %v1926
    %1952 = vmatprep.subr.bf16.mxu0 0
    %1953 = vmatpush1.bf16.msra.mxu0 %v1927
    %1954 = vmatprep.subr.bf16.mxu0 0
    %1955 = vmatpush1.bf16.msra.mxu0 %v1928
    %1956 = vmatprep.subr.bf16.mxu0 0
    %1957 = vmatpush1.bf16.msra.mxu0 %v1929
    %1958 = vmatprep.subr.bf16.mxu0 0
    %1959 = vmatpush1.bf16.msra.mxu0 %v1930
    %1960 = vmatprep.subr.bf16.mxu0 0
    %1961 = vmatpush1.bf16.msra.mxu0 %v1931
    %1962 = vmatprep.subr.bf16.mxu0 0
    %1963 = vmatpush1.bf16.msra.mxu0 %v1932
    %1964 = vmatprep.subr.bf16.mxu0 0
    %1965 = vmatpush1.bf16.msra.mxu0 %v1944
    %1966 = vmatprep.subr.bf16.mxu0 0
    %1967 = vmatpush1.bf16.msra.mxu0 0
    %1968 = vmatprep.subr.bf16.mxu0 0
    %1969 = vmatpush1.bf16.msra.mxu0 0
    %1970 = vmatprep.subr.bf16.mxu0 0
    %1971 = vmatpush1.bf16.msra.mxu0 0
    %1972 = vmatprep.subr.bf16.mxu0 0
    %1973 = vmatpush1.bf16.msra.mxu0 0
    %1974 = vmatprep.subr.bf16.mxu0 0
    %1975 = vmatpush1.bf16.msra.mxu0 0
    %1976 = vmatprep.subr.bf16.mxu0 0
    %1977 = vmatpush1.bf16.msra.mxu0 0
    %1978 = vmatprep.mubr.bf16.mxu0 %v716
    %1979 = vmatmul.mubr.bf16.gmra.mrb[0].mxu0 %v622
    %v1980 = vpop.f32.mrb[0].mxu0
    %v1981 = vadd.f32 0.0, %v1980
    %v1982 = vpop.f32.mrb[0].mxu0
    %v1983 = vpop.f32.mrb[0].mxu0
    %v1984 = vadd.f32 0.0, %v1983
    %v1985 = vpop.f32.mrb[0].mxu0
    %1986 = vmatprep.mubr.bf16.mxu0 %v719
    %1987 = vmatmul.mubr.bf16.gmra.mrb[0].mxu0 %v624
    %v1988 = vpop.f32.mrb[0].mxu0
    %v1989 = vadd.f32 0.0, %v1988
    %v1990 = vpop.f32.mrb[0].mxu0
    %v1991 = vpop.f32.mrb[0].mxu0
    %v1992 = vadd.f32 0.0, %v1991
    %v1993 = vpop.f32.mrb[0].mxu0
    %1994 = vmatprep.mubr.bf16.mxu0 %v722
    %1995 = vmatmul.mubr.bf16.gmra.mrb[0].mxu0 %v626
    %v1996 = vpop.f32.mrb[0].mxu0
    %v1997 = vadd.f32 0.0, %v1996
    %v1998 = vpop.f32.mrb[0].mxu0
    %v1999 = vpop.f32.mrb[0].mxu0
    %v2000 = vadd.f32 0.0, %v1999
    %v2001 = vpop.f32.mrb[0].mxu0
    %2002 = vmatprep.mubr.bf16.mxu0 %v725
    %2003 = vmatmul.mubr.bf16.gmra.mrb[0].mxu0 %v628
    %v2004 = vpop.f32.mrb[0].mxu0
    %v2005 = vadd.f32 0.0, %v2004
    %v2006 = vpop.f32.mrb[0].mxu0
    %v2007 = vpop.f32.mrb[0].mxu0
    %v2008 = vadd.f32 0.0, %v2007
    %v2009 = vpop.f32.mrb[0].mxu0
    %2010 = vmatprep.mubr.bf16.mxu0 %v728
    %2011 = vmatmul.mubr.bf16.gmra.mrb[0].mxu0 %v630
    %v2012 = vpop.f32.mrb[0].mxu0
    %v2013 = vadd.f32 0.0, %v2012
    %v2014 = vpop.f32.mrb[0].mxu0
    %v2015 = vpop.f32.mrb[0].mxu0
    %v2016 = vadd.f32 0.0, %v2015
    %v2017 = vpop.f32.mrb[0].mxu0
    %2018 = vmatprep.mubr.bf16.mxu0 %v731
    %2019 = vmatmul.mubr.bf16.gmra.mrb[0].mxu0 %v632
    %v2020 = vpop.f32.mrb[0].mxu0
    %v2021 = vadd.f32 0.0, %v2020
    %v2022 = vpop.f32.mrb[0].mxu0
    %v2023 = vpop.f32.mrb[0].mxu0
    %v2024 = vadd.f32 0.0, %v2023
    %v2025 = vpop.f32.mrb[0].mxu0
    %2026 = vmatprep.mubr.bf16.mxu0 %v734
    %2027 = vmatmul.mubr.bf16.gmra.mrb[0].mxu0 %v634
    %v2028 = vpop.f32.mrb[0].mxu0
    %v2029 = vadd.f32 0.0, %v2028
    %v2030 = vpop.f32.mrb[0].mxu0
    %v2031 = vpop.f32.mrb[0].mxu0
    %v2032 = vadd.f32 0.0, %v2031
    %v2033 = vpop.f32.mrb[0].mxu0
    %2034 = vmatprep.mubr.bf16.mxu0 %v737
    %2035 = vmatmul.mubr.bf16.gmra.mrb[0].mxu0 %v636
    %v2036 = vpop.f32.mrb[0].mxu0
    %v2037 = vadd.f32 0.0, %v2036
    %v2038 = vpop.f32.mrb[0].mxu0
    %v2039 = vpop.f32.mrb[0].mxu0
    %v2040 = vadd.f32 0.0, %v2039
    %v2041 = vpop.f32.mrb[0].mxu0
    %2042 = vdwg.mxu0
    %vm2051 = vcmask 1043456
    %v2052 = vrot.slane %v1981, 4
    %v2053 = vrot.slane %v1984, 4
    %v2054 = vsel %vm2051, %v2052, %v2053
    %v2055 = vrot.slane %v1989, 4
    %v2056 = vsel %vm2051, %v2053, %v2055
    %v2057 = vrot.slane %v1992, 4
    %v2058 = vsel %vm2051, %v2055, %v2057
    %v2059 = vrot.slane %v1997, 4
    %v2060 = vsel %vm2051, %v2057, %v2059
    %v2061 = vrot.slane %v2000, 4
    %v2062 = vsel %vm2051, %v2059, %v2061
    %v2063 = vrot.slane %v2005, 4
    %v2064 = vsel %vm2051, %v2061, %v2063
    %v2065 = vrot.slane %v2008, 4
    %v2066 = vsel %vm2051, %v2063, %v2065
    %v2075 = vadd.f32 %v1819, %v2054
    %v2076 = vadd.f32 %v1820, %v2056
    %v2077 = vadd.f32 %v1821, %v2058
    %v2078 = vadd.f32 %v1822, %v2060
    %v2079 = vadd.f32 %v1823, %v2062
    %v2080 = vadd.f32 %v1824, %v2064
    %v2081 = vadd.f32 %v1825, %v2066
    %v2082 = vadd.f32 %v1826, %v2065
    %v2091 = vrot.slane %v2013, 4
    %v2092 = vrot.slane %v2016, 4
    %v2093 = vsel %vm2051, %v2091, %v2092
    %v2094 = vrot.slane %v2021, 4
    %v2095 = vsel %vm2051, %v2092, %v2094
    %v2096 = vrot.slane %v2024, 4
    %v2097 = vsel %vm2051, %v2094, %v2096
    %v2098 = vrot.slane %v2029, 4
    %v2099 = vsel %vm2051, %v2096, %v2098
    %v2100 = vrot.slane %v2032, 4
    %v2101 = vsel %vm2051, %v2098, %v2100
    %v2102 = vrot.slane %v2037, 4
    %v2103 = vsel %vm2051, %v2100, %v2102
    %v2104 = vrot.slane %v2040, 4
    %v2105 = vsel %vm2051, %v2102, %v2104
    %v2114 = vadd.f32 %v1858, %v2093
    %v2115 = vadd.f32 %v1859, %v2095
    %v2116 = vadd.f32 %v1860, %v2097
    %v2117 = vadd.f32 %v1861, %v2099
    %v2118 = vadd.f32 %v1862, %v2101
    %v2119 = vadd.f32 %v1863, %v2103
    %v2120 = vadd.f32 %v1864, %v2105
    %v2121 = vadd.f32 %v1865, %v2104
    %s2122 = scalar_lea.vmem %s2, 456
    %v2123 = vld [vmem:[%s2122] sm:$0xf]
    %v2124 = vld [vmem:[%s2122 + $0x4] sm:$0xf]
    %v2125 = vld [vmem:[%s2122 + $0x8] sm:$0xf]
    %v2126 = vld [vmem:[%s2122 + $0xc] sm:$0xf]
    %v2127 = vld [vmem:[%s2122 + $0x10] sm:$0xf]
    %v2128 = vld [vmem:[%s2122 + $0x14] sm:$0xf]
    %v2129 = vld [vmem:[%s2122 + $0x18] sm:$0xf]
    %v2130 = vld [vmem:[%s2122 + $0x1c] sm:$0xf]
    %v2131 = vld [vmem:[%s2122 + $0x20] sm:$0xf]
    %v2132 = vld [vmem:[%s2122 + $0x24] sm:$0xf]
    %v2133 = vld [vmem:[%s2122 + $0x28] sm:$0xf]
    %v2134 = vld [vmem:[%s2122 + $0x2c] sm:$0xf]
    %v2135 = vld [vmem:[%s2122 + $0x30] sm:$0xf]
    %v2136 = vld [vmem:[%s2122 + $0x34] sm:$0xf]
    %v2137 = vld [vmem:[%s2122 + $0x38] sm:$0xf]
    %v2138 = vld [vmem:[%s2122 + $0x3c] sm:$0xf]
    %v2139 = vld [vmem:[%s2122 + $0x40] sm:$0xf]
    %v2140 = vld [vmem:[%s2122 + $0x44] sm:$0xf]
    %v2141 = vld [vmem:[%s2122 + $0x48] sm:$0x7]
    %v2161 = vunpack.c.l.b16 %v2123
    %v2162 = vunpack.c.l.b16 %v2124
    %v2163 = vunpack.c.l.b16 %v2125
    %v2164 = vunpack.c.l.b16 %v2126
    %v2165 = vunpack.c.l.b16 %v2127
    %v2166 = vunpack.c.l.b16 %v2128
    %v2167 = vunpack.c.l.b16 %v2129
    %v2168 = vunpack.c.l.b16 %v2130
    %v2169 = vunpack.c.l.b16 %v2131
    %v2170 = vunpack.c.l.b16 %v2132
    %v2171 = vunpack.c.l.b16 %v2133
    %v2172 = vunpack.c.l.b16 %v2134
    %v2173 = vunpack.c.l.b16 %v2135
    %v2174 = vunpack.c.l.b16 %v2136
    %v2175 = vunpack.c.l.b16 %v2137
    %v2176 = vunpack.c.l.b16 %v2138
    %v2177 = vunpack.c.l.b16 %v2139
    %v2178 = vunpack.c.l.b16 %v2140
    %v2179 = vunpack.c.l.b16 %v2141
    %v2180 = vpack.c.b16 %v2162, %v2161
    %v2181 = vpack.c.b16 %v2164, %v2163
    %v2182 = vpack.c.b16 %v2166, %v2165
    %v2183 = vpack.c.b16 %v2168, %v2167
    %v2184 = vpack.c.b16 %v2170, %v2169
    %v2185 = vpack.c.b16 %v2172, %v2171
    %v2186 = vpack.c.b16 %v2174, %v2173
    %v2187 = vpack.c.b16 %v2176, %v2175
    %v2188 = vpack.c.b16 %v2178, %v2177
    %v2189 = vpack.c.b16 %v2179, %v2179
    %v2200 = vsel %vm739, %v2189, 0
    %2202 = vmatprep.subr.bf16.mxu0 0
    %2203 = vmatpush1.bf16.msra.mxu0 %v2180
    %2204 = vmatprep.subr.bf16.mxu0 0
    %2205 = vmatpush1.bf16.msra.mxu0 %v2181
    %2206 = vmatprep.subr.bf16.mxu0 0
    %2207 = vmatpush1.bf16.msra.mxu0 %v2182
    %2208 = vmatprep.subr.bf16.mxu0 0
    %2209 = vmatpush1.bf16.msra.mxu0 %v2183
    %2210 = vmatprep.subr.bf16.mxu0 0
    %2211 = vmatpush1.bf16.msra.mxu0 %v2184
    %2212 = vmatprep.subr.bf16.mxu0 0
    %2213 = vmatpush1.bf16.msra.mxu0 %v2185
    %2214 = vmatprep.subr.bf16.mxu0 0
    %2215 = vmatpush1.bf16.msra.mxu0 %v2186
    %2216 = vmatprep.subr.bf16.mxu0 0
    %2217 = vmatpush1.bf16.msra.mxu0 %v2187
    %2218 = vmatprep.subr.bf16.mxu0 0
    %2219 = vmatpush1.bf16.msra.mxu0 %v2188
    %2220 = vmatprep.subr.bf16.mxu0 0
    %2221 = vmatpush1.bf16.msra.mxu0 %v2200
    %2222 = vmatprep.subr.bf16.mxu0 0
    %2223 = vmatpush1.bf16.msra.mxu0 0
    %2224 = vmatprep.subr.bf16.mxu0 0
    %2225 = vmatpush1.bf16.msra.mxu0 0
    %2226 = vmatprep.subr.bf16.mxu0 0
    %2227 = vmatpush1.bf16.msra.mxu0 0
    %2228 = vmatprep.subr.bf16.mxu0 0
    %2229 = vmatpush1.bf16.msra.mxu0 0
    %2230 = vmatprep.subr.bf16.mxu0 0
    %2231 = vmatpush1.bf16.msra.mxu0 0
    %2232 = vmatprep.subr.bf16.mxu0 0
    %2233 = vmatpush1.bf16.msra.mxu0 0
    %2234 = vmatprep.mubr.bf16.mxu0 %v716
    %2235 = vmatmul.mubr.bf16.gmra.mrb[0].mxu0 %v622
    %v2236 = vpop.f32.mrb[0].mxu0
    %v2237 = vadd.f32 0.0, %v2236
    %v2238 = vpop.f32.mrb[0].mxu0
    %v2239 = vpop.f32.mrb[0].mxu0
    %v2240 = vadd.f32 0.0, %v2239
    %v2241 = vpop.f32.mrb[0].mxu0
    %2242 = vmatprep.mubr.bf16.mxu0 %v719
    %2243 = vmatmul.mubr.bf16.gmra.mrb[0].mxu0 %v624
    %v2244 = vpop.f32.mrb[0].mxu0
    %v2245 = vadd.f32 0.0, %v2244
    %v2246 = vpop.f32.mrb[0].mxu0
    %v2247 = vpop.f32.mrb[0].mxu0
    %v2248 = vadd.f32 0.0, %v2247
    %v2249 = vpop.f32.mrb[0].mxu0
    %2250 = vmatprep.mubr.bf16.mxu0 %v722
    %2251 = vmatmul.mubr.bf16.gmra.mrb[0].mxu0 %v626
    %v2252 = vpop.f32.mrb[0].mxu0
    %v2253 = vadd.f32 0.0, %v2252
    %v2254 = vpop.f32.mrb[0].mxu0
    %v2255 = vpop.f32.mrb[0].mxu0
    %v2256 = vadd.f32 0.0, %v2255
    %v2257 = vpop.f32.mrb[0].mxu0
    %2258 = vmatprep.mubr.bf16.mxu0 %v725
    %2259 = vmatmul.mubr.bf16.gmra.mrb[0].mxu0 %v628
    %v2260 = vpop.f32.mrb[0].mxu0
    %v2261 = vadd.f32 0.0, %v2260
    %v2262 = vpop.f32.mrb[0].mxu0
    %v2263 = vpop.f32.mrb[0].mxu0
    %v2264 = vadd.f32 0.0, %v2263
    %v2265 = vpop.f32.mrb[0].mxu0
    %2266 = vmatprep.mubr.bf16.mxu0 %v728
    %2267 = vmatmul.mubr.bf16.gmra.mrb[0].mxu0 %v630
    %v2268 = vpop.f32.mrb[0].mxu0
    %v2269 = vadd.f32 0.0, %v2268
    %v2270 = vpop.f32.mrb[0].mxu0
    %v2271 = vpop.f32.mrb[0].mxu0
    %v2272 = vadd.f32 0.0, %v2271
    %v2273 = vpop.f32.mrb[0].mxu0
    %2274 = vmatprep.mubr.bf16.mxu0 %v731
    %2275 = vmatmul.mubr.bf16.gmra.mrb[0].mxu0 %v632
    %v2276 = vpop.f32.mrb[0].mxu0
    %v2277 = vadd.f32 0.0, %v2276
    %v2278 = vpop.f32.mrb[0].mxu0
    %v2279 = vpop.f32.mrb[0].mxu0
    %v2280 = vadd.f32 0.0, %v2279
    %v2281 = vpop.f32.mrb[0].mxu0
    %2282 = vmatprep.mubr.bf16.mxu0 %v734
    %2283 = vmatmul.mubr.bf16.gmra.mrb[0].mxu0 %v634
    %v2284 = vpop.f32.mrb[0].mxu0
    %v2285 = vadd.f32 0.0, %v2284
    %v2286 = vpop.f32.mrb[0].mxu0
    %v2287 = vpop.f32.mrb[0].mxu0
    %v2288 = vadd.f32 0.0, %v2287
    %v2289 = vpop.f32.mrb[0].mxu0
    %2290 = vmatprep.mubr.bf16.mxu0 %v737
    %2291 = vmatmul.mubr.bf16.gmra.mrb[0].mxu0 %v636
    %v2292 = vpop.f32.mrb[0].mxu0
    %v2293 = vadd.f32 0.0, %v2292
    %v2294 = vpop.f32.mrb[0].mxu0
    %v2295 = vpop.f32.mrb[0].mxu0
    %v2296 = vadd.f32 0.0, %v2295
    %v2297 = vpop.f32.mrb[0].mxu0
    %2298 = vdwg.mxu0
    %v2307 = vrot.slane %v2237, 5
    %v2308 = vrot.slane %v2240, 5
    %v2309 = vsel %vm739, %v2307, %v2308
    %v2310 = vrot.slane %v2245, 5
    %v2311 = vsel %vm739, %v2308, %v2310
    %v2312 = vrot.slane %v2248, 5
    %v2313 = vsel %vm739, %v2310, %v2312
    %v2314 = vrot.slane %v2253, 5
    %v2315 = vsel %vm739, %v2312, %v2314
    %v2316 = vrot.slane %v2256, 5
    %v2317 = vsel %vm739, %v2314, %v2316
    %v2318 = vrot.slane %v2261, 5
    %v2319 = vsel %vm739, %v2316, %v2318
    %v2320 = vrot.slane %v2264, 5
    %v2321 = vsel %vm739, %v2318, %v2320
    %v2330 = vsel %vm739, %v2320, 0.0
    %v2331 = vadd.f32 %v2075, %v2309
    %v2332 = vadd.f32 %v2076, %v2311
    %v2333 = vadd.f32 %v2077, %v2313
    %v2334 = vadd.f32 %v2078, %v2315
    %v2335 = vadd.f32 %v2079, %v2317
    %v2336 = vadd.f32 %v2080, %v2319
    %v2337 = vadd.f32 %v2081, %v2321
    %v2338 = vadd.f32 %v2082, %v2330
    %v2347 = vrot.slane %v2269, 5
    %v2348 = vrot.slane %v2272, 5
    %v2349 = vsel %vm739, %v2347, %v2348
    %v2350 = vrot.slane %v2277, 5
    %v2351 = vsel %vm739, %v2348, %v2350
    %v2352 = vrot.slane %v2280, 5
    %v2353 = vsel %vm739, %v2350, %v2352
    %v2354 = vrot.slane %v2285, 5
    %v2355 = vsel %vm739, %v2352, %v2354
    %v2356 = vrot.slane %v2288, 5
    %v2357 = vsel %vm739, %v2354, %v2356
    %v2358 = vrot.slane %v2293, 5
    %v2359 = vsel %vm739, %v2356, %v2358
    %v2360 = vrot.slane %v2296, 5
    %v2361 = vsel %vm739, %v2358, %v2360
    %v2370 = vsel %vm739, %v2360, 0.0
    %v2371 = vadd.f32 %v2114, %v2349
    %v2372 = vadd.f32 %v2115, %v2351
    %v2373 = vadd.f32 %v2116, %v2353
    %v2374 = vadd.f32 %v2117, %v2355
    %v2375 = vadd.f32 %v2118, %v2357
    %v2376 = vadd.f32 %v2119, %v2359
    %v2377 = vadd.f32 %v2120, %v2361
    %v2378 = vadd.f32 %v2121, %v2370
    %v2379 = vld [vmem:[%s3] sm:$0x1]
    %v2381 = vlaneseq
    %v2382 = vshrl.u32 %v2381, 7
    %v2383 = vsub.s32 0, %v2382
    %v2384 = vrot.slane %v2379, %v2383
    %v2386 = vadd.f32 %v2331, %v2384
    %v2387 = vadd.f32 %v2332, %v2384
    %v2388 = vadd.f32 %v2333, %v2384
    %v2389 = vadd.f32 %v2334, %v2384
    %v2390 = vadd.f32 %v2335, %v2384
    %v2391 = vadd.f32 %v2336, %v2384
    %v2392 = vadd.f32 %v2337, %v2384
    %v2393 = vadd.f32 %v2338, %v2384
    %v2394 = vmax.f32 %v2386, 0.0
    %v2395 = vmax.f32 %v2387, 0.0
    %v2396 = vmax.f32 %v2388, 0.0
    %v2397 = vmax.f32 %v2389, 0.0
    %v2398 = vmax.f32 %v2390, 0.0
    %v2399 = vmax.f32 %v2391, 0.0
    %v2400 = vmax.f32 %v2392, 0.0
    %v2401 = vmax.f32 %v2393, 0.0
    %2402 = vst [vmem:[#allocation2] sm:$0xff] %v2394
    %2403 = vst [vmem:[#allocation2 + $0x8] sm:$0xff] %v2395
    %2404 = vst [vmem:[#allocation2 + $0x10] sm:$0xff] %v2396
    %2405 = vst [vmem:[#allocation2 + $0x18] sm:$0xff] %v2397
    %2406 = vst [vmem:[#allocation2 + $0x20] sm:$0xff] %v2398
    %2407 = vst [vmem:[#allocation2 + $0x28] sm:$0xff] %v2399
    %2408 = vst [vmem:[#allocation2 + $0x30] sm:$0xff] %v2400
    %2409 = vst [vmem:[#allocation2 + $0x38] sm:$0xf] %v2401
    %v2411 = vrot.slane %v2394, 1
    %v2413 = vmax.f32 %v2394, %v2411
    %s2414 = scalar_lea.vmem [#allocation2], 2
    %v2415 = vld [vmem:[%s2414] ss:$3 sm:$0xff]
    %s2416 = scalar_lea.vmem [#allocation2], 26
    %v2417 = vld [vmem:[%s2416] ss:$3 sm:$0xff]
    %s2418 = scalar_lea.vmem [#allocation2], 50
    %v2419 = vld [vmem:[%s2418] ss:$3 sm:$0x7]
    %s2420 = scalar_lea.vmem [#allocation2], 3
    %v2421 = vld [vmem:[%s2420] ss:$3 sm:$0xff]
    %s2422 = scalar_lea.vmem [#allocation2], 27
    %v2423 = vld [vmem:[%s2422] ss:$3 sm:$0xff]
    %s2424 = scalar_lea.vmem [#allocation2], 51
    %v2425 = vld [vmem:[%s2424] ss:$3 sm:$0x7]
    %s2426 = scalar_lea.vmem [#allocation2], 4
    %v2427 = vld [vmem:[%s2426] ss:$3 sm:$0xff]
    %s2428 = scalar_lea.vmem [#allocation2], 28
    %v2429 = vld [vmem:[%s2428] ss:$3 sm:$0xff]
    %s2430 = scalar_lea.vmem [#allocation2], 52
    %v2431 = vld [vmem:[%s2430] ss:$3 sm:$0x7]
    %v2432 = vmax.f32 %v2415, %v2421
    %v2433 = vmax.f32 %v2417, %v2423
    %v2434 = vmax.f32 %v2419, %v2425
    %v2435 = vmax.f32 %v2432, %v2427
    %v2436 = vmax.f32 %v2433, %v2429
    %v2437 = vmax.f32 %v2434, %v2431
    %v2441 = vrot.slane %v2435, 7
    %v2442 = vrot.slane %v2436, 7
    %v2443 = vsel %vm848, %v2441, %v2442
    %v2444 = vrot.slane %v2437, 7
    %v2445 = vsel %vm848, %v2442, %v2444
    %v2447 = vsel %vm848, %v2413, %v2441
    %v2449 = vrot.slane %v2447, 7
    %v2450 = vrot.slane %v2443, 7
    %v2451 = vsel %vm848, %v2449, %v2450
    %v2452 = vrot.slane %v2445, 7
    %v2453 = vsel %vm848, %v2450, %v2452
    %v2457 = vsel %vm848, 0.0, %v2449
    %v2458 = vsel %vm1795, %v2453, 0.0
    %v2461 = vrot.slane %v2457, 1
    %v2462 = vrot.slane %v2451, 1
    %v2463 = vsel %vm1283, %v2461, %v2462
    %v2464 = vrot.slane %v2458, 1
    %v2465 = vsel %vm1283, %v2462, %v2464
    %v2468 = vrot.slane %v2457, 2
    %v2469 = vrot.slane %v2451, 2
    %v2470 = vsel %vm1539, %v2468, %v2469
    %v2471 = vrot.slane %v2458, 2
    %v2472 = vsel %vm1539, %v2469, %v2471
    %v2475 = vrot.slane %v2457, 3
    %v2476 = vrot.slane %v2451, 3
    %v2477 = vsel %vm1795, %v2475, %v2476
    %v2478 = vrot.slane %v2458, 3
    %v2479 = vsel %vm1795, %v2476, %v2478
    %v2482 = vrot.slane %v2457, 4
    %v2483 = vrot.slane %v2451, 4
    %v2484 = vsel %vm2051, %v2482, %v2483
    %v2485 = vrot.slane %v2458, 4
    %v2486 = vsel %vm2051, %v2483, %v2485
    %v2489 = vrot.slane %v2457, 5
    %v2490 = vrot.slane %v2451, 5
    %v2491 = vsel %vm739, %v2489, %v2490
    %v2492 = vrot.slane %v2458, 5
    %v2493 = vsel %vm739, %v2490, %v2492
    %vm2496 = vcmask 1041408
    %v2497 = vrot.slane %v2457, 6
    %v2498 = vrot.slane %v2451, 6
    %v2499 = vsel %vm2496, %v2497, %v2498
    %v2500 = vrot.slane %v2458, 6
    %v2501 = vsel %vm2496, %v2498, %v2500
    %v2504 = vld [vmem:[%s3] sm:$0x1]
    %v2506 = vlaneseq
    %v2507 = vshrl.u32 %v2506, 7
    %v2508 = vsub.s32 0, %v2507
    %v2509 = vrot.slane %v2504, %v2508
    %v2511 = vadd.f32 %v2371, %v2509
    %v2512 = vadd.f32 %v2372, %v2509
    %v2513 = vadd.f32 %v2373, %v2509
    %v2514 = vadd.f32 %v2374, %v2509
    %v2515 = vadd.f32 %v2375, %v2509
    %v2516 = vadd.f32 %v2376, %v2509
    %v2517 = vadd.f32 %v2377, %v2509
    %v2518 = vadd.f32 %v2378, %v2509
    %v2519 = vmax.f32 %v2511, 0.0
    %v2520 = vmax.f32 %v2512, 0.0
    %v2521 = vmax.f32 %v2513, 0.0
    %v2522 = vmax.f32 %v2514, 0.0
    %v2523 = vmax.f32 %v2515, 0.0
    %v2524 = vmax.f32 %v2516, 0.0
    %v2525 = vmax.f32 %v2517, 0.0
    %v2526 = vmax.f32 %v2518, 0.0
    %2527 = vst [vmem:[#allocation3] sm:$0xff] %v2519
    %2528 = vst [vmem:[#allocation3 + $0x8] sm:$0xff] %v2520
    %2529 = vst [vmem:[#allocation3 + $0x10] sm:$0xff] %v2521
    %2530 = vst [vmem:[#allocation3 + $0x18] sm:$0xff] %v2522
    %2531 = vst [vmem:[#allocation3 + $0x20] sm:$0xff] %v2523
    %2532 = vst [vmem:[#allocation3 + $0x28] sm:$0xff] %v2524
    %2533 = vst [vmem:[#allocation3 + $0x30] sm:$0xff] %v2525
    %2534 = vst [vmem:[#allocation3 + $0x38] sm:$0xf] %v2526
    %v2536 = vrot.slane %v2519, 1
    %v2538 = vmax.f32 %v2519, %v2536
    %s2539 = scalar_lea.vmem [#allocation3], 2
    %v2540 = vld [vmem:[%s2539] ss:$3 sm:$0xff]
    %s2541 = scalar_lea.vmem [#allocation3], 26
    %v2542 = vld [vmem:[%s2541] ss:$3 sm:$0xff]
    %s2543 = scalar_lea.vmem [#allocation3], 50
    %v2544 = vld [vmem:[%s2543] ss:$3 sm:$0x7]
    %s2545 = scalar_lea.vmem [#allocation3], 3
    %v2546 = vld [vmem:[%s2545] ss:$3 sm:$0xff]
    %s2547 = scalar_lea.vmem [#allocation3], 27
    %v2548 = vld [vmem:[%s2547] ss:$3 sm:$0xff]
    %s2549 = scalar_lea.vmem [#allocation3], 51
    %v2550 = vld [vmem:[%s2549] ss:$3 sm:$0x7]
    %s2551 = scalar_lea.vmem [#allocation3], 4
    %v2552 = vld [vmem:[%s2551] ss:$3 sm:$0xff]
    %s2553 = scalar_lea.vmem [#allocation3], 28
    %v2554 = vld [vmem:[%s2553] ss:$3 sm:$0xff]
    %s2555 = scalar_lea.vmem [#allocation3], 52
    %v2556 = vld [vmem:[%s2555] ss:$3 sm:$0x7]
    %v2557 = vmax.f32 %v2540, %v2546
    %v2558 = vmax.f32 %v2542, %v2548
    %v2559 = vmax.f32 %v2544, %v2550
    %v2560 = vmax.f32 %v2557, %v2552
    %v2561 = vmax.f32 %v2558, %v2554
    %v2562 = vmax.f32 %v2559, %v2556
    %v2566 = vrot.slane %v2560, 7
    %v2567 = vrot.slane %v2561, 7
    %v2568 = vsel %vm848, %v2566, %v2567
    %v2569 = vrot.slane %v2562, 7
    %v2570 = vsel %vm848, %v2567, %v2569
    %v2572 = vsel %vm848, %v2538, %v2566
    %v2574 = vrot.slane %v2572, 7
    %v2575 = vrot.slane %v2568, 7
    %v2576 = vsel %vm848, %v2574, %v2575
    %v2577 = vrot.slane %v2570, 7
    %v2578 = vsel %vm848, %v2575, %v2577
    %v2582 = vsel %vm848, 0.0, %v2574
    %v2583 = vsel %vm1795, %v2578, 0.0
    %v2586 = vrot.slane %v2582, 1
    %v2587 = vrot.slane %v2576, 1
    %v2588 = vsel %vm1283, %v2586, %v2587
    %v2589 = vrot.slane %v2583, 1
    %v2590 = vsel %vm1283, %v2587, %v2589
    %v2593 = vrot.slane %v2582, 2
    %v2594 = vrot.slane %v2576, 2
    %v2595 = vsel %vm1539, %v2593, %v2594
    %v2596 = vrot.slane %v2583, 2
    %v2597 = vsel %vm1539, %v2594, %v2596
    %v2600 = vrot.slane %v2582, 3
    %v2601 = vrot.slane %v2576, 3
    %v2602 = vsel %vm1795, %v2600, %v2601
    %v2603 = vrot.slane %v2583, 3
    %v2604 = vsel %vm1795, %v2601, %v2603
    %v2607 = vrot.slane %v2582, 4
    %v2608 = vrot.slane %v2576, 4
    %v2609 = vsel %vm2051, %v2607, %v2608
    %v2610 = vrot.slane %v2583, 4
    %v2611 = vsel %vm2051, %v2608, %v2610
    %v2614 = vrot.slane %v2582, 5
    %v2615 = vrot.slane %v2576, 5
    %v2616 = vsel %vm739, %v2614, %v2615
    %v2617 = vrot.slane %v2583, 5
    %v2618 = vsel %vm739, %v2615, %v2617
    %v2621 = vrot.slane %v2582, 6
    %v2622 = vrot.slane %v2576, 6
    %v2623 = vsel %vm2496, %v2621, %v2622
    %v2624 = vrot.slane %v2583, 6
    %v2625 = vsel %vm2496, %v2622, %v2624
    %v2628 = vpack.c.bf16 %v2451, %v2457
    %v2629 = vpack.c.bf16 %v2465, %v2463
    %v2630 = vpack.c.bf16 %v2472, %v2470
    %v2631 = vpack.c.bf16 %v2479, %v2477
    %v2632 = vpack.c.bf16 %v2486, %v2484
    %v2633 = vpack.c.bf16 %v2493, %v2491
    %v2634 = vpack.c.bf16 %v2501, %v2499
    %v2635 = vpack.c.bf16 %v2576, %v2582
    %v2636 = vpack.c.bf16 %v2590, %v2588
    %v2637 = vpack.c.bf16 %v2597, %v2595
    %v2638 = vpack.c.bf16 %v2604, %v2602
    %v2639 = vpack.c.bf16 %v2611, %v2609
    %v2640 = vpack.c.bf16 %v2618, %v2616
    %v2641 = vpack.c.bf16 %v2625, %v2623
    %v2642 = vld [vmem:[#allocation4] sm:$0xf]
    %v2643 = vld [vmem:[#allocation4 + $0x4] sm:$0xf]
    %v2644 = vld [vmem:[#allocation4 + $0x8] sm:$0xf]
    %v2645 = vld [vmem:[#allocation4 + $0xc] sm:$0xf]
    %v2646 = vld [vmem:[#allocation4 + $0x10] sm:$0xf]
    %v2647 = vld [vmem:[#allocation4 + $0x14] sm:$0xf]
    %v2648 = vld [vmem:[#allocation4 + $0x18] sm:$0xf]
    %v2649 = vld [vmem:[#allocation4 + $0x1c] sm:$0xf]
    %v2650 = vld [vmem:[#allocation4 + $0x20] sm:$0xf]
    %v2651 = vld [vmem:[#allocation4 + $0x24] sm:$0xf]
    %v2652 = vld [vmem:[#allocation4 + $0x28] sm:$0xf]
    %v2653 = vld [vmem:[#allocation4 + $0x2c] sm:$0xf]
    %v2654 = vld [vmem:[#allocation4 + $0x30] sm:$0xf]
    %v2655 = vld [vmem:[#allocation4 + $0x34] sm:$0xf]
    %v2656 = vld [vmem:[#allocation4 + $0x38] sm:$0xf]
    %v2657 = vld [vmem:[#allocation4 + $0x3c] sm:$0xf]
    %v2658 = vld [vmem:[#allocation4 + $0x40] sm:$0xf]
    %v2659 = vld [vmem:[#allocation4 + $0x44] sm:$0xf]
    %v2660 = vld [vmem:[#allocation4 + $0x48] sm:$0xf]
    %v2661 = vld [vmem:[#allocation4 + $0x4c] sm:$0xf]
    %v2662 = vld [vmem:[#allocation4 + $0x50] sm:$0xf]
    %v2663 = vld [vmem:[#allocation4 + $0x54] sm:$0xf]
    %v2664 = vld [vmem:[#allocation4 + $0x58] sm:$0xf]
    %v2665 = vld [vmem:[#allocation4 + $0x5c] sm:$0xf]
    %v2666 = vld [vmem:[#allocation4 + $0x60] sm:$0xf]
    %v2667 = vld [vmem:[#allocation4 + $0x64] sm:$0xf]
    %v2668 = vld [vmem:[#allocation4 + $0x68] sm:$0xf]
    %v2669 = vld [vmem:[#allocation4 + $0x6c] sm:$0xf]
    %v2670 = vld [vmem:[#allocation4 + $0x70] sm:$0xf]
    %v2671 = vld [vmem:[#allocation4 + $0x74] sm:$0xf]
    %v2672 = vld [vmem:[#allocation4 + $0x78] sm:$0xf]
    %v2673 = vld [vmem:[#allocation4 + $0x7c] sm:$0xf]
    %v2674 = vld [vmem:[#allocation4 + $0x80] sm:$0xf]
    %v2675 = vld [vmem:[#allocation4 + $0x84] sm:$0xf]
    %v2676 = vld [vmem:[#allocation4 + $0x88] sm:$0xf]
    %v2677 = vld [vmem:[#allocation4 + $0x8c] sm:$0xf]
    %v2678 = vld [vmem:[#allocation4 + $0x90] sm:$0xf]
    %v2679 = vld [vmem:[#allocation4 + $0x94] sm:$0xf]
    %v2680 = vld [vmem:[#allocation4 + $0x98] sm:$0xf]
    %v2681 = vld [vmem:[#allocation4 + $0x9c] sm:$0xf]
    %v2682 = vld [vmem:[#allocation4 + $0xa0] sm:$0xf]
    %v2683 = vld [vmem:[#allocation4 + $0xa4] sm:$0xf]
    %v2684 = vld [vmem:[#allocation4 + $0xa8] sm:$0xf]
    %v2685 = vld [vmem:[#allocation4 + $0xac] sm:$0xf]
    %v2686 = vld [vmem:[#allocation4 + $0xb0] sm:$0xf]
    %v2687 = vld [vmem:[#allocation4 + $0xb4] sm:$0xf]
    %v2688 = vld [vmem:[#allocation4 + $0xb8] sm:$0xf]
    %v2689 = vld [vmem:[#allocation4 + $0xbc] sm:$0xf]
    %v2690 = vld [vmem:[#allocation4 + $0xc0] sm:$0xf]
    %v2691 = vld [vmem:[#allocation4 + $0xc4] sm:$0xf]
    %v2692 = vld [vmem:[#allocation4 + $0xc8] sm:$0xf]
    %v2693 = vld [vmem:[#allocation4 + $0xcc] sm:$0xf]
    %v2694 = vld [vmem:[#allocation4 + $0xd0] sm:$0xf]
    %v2695 = vld [vmem:[#allocation4 + $0xd4] sm:$0xf]
    %v2696 = vld [vmem:[#allocation4 + $0xd8] sm:$0xf]
    %v2697 = vld [vmem:[#allocation4 + $0xdc] sm:$0xf]
    %v2698 = vld [vmem:[#allocation4 + $0xe0] sm:$0xf]
    %v2699 = vld [vmem:[#allocation4 + $0xe4] sm:$0xf]
    %v2700 = vld [vmem:[#allocation4 + $0xe8] sm:$0xf]
    %v2701 = vld [vmem:[#allocation4 + $0xec] sm:$0xf]
    %v2702 = vld [vmem:[#allocation4 + $0xf0] sm:$0xf]
    %v2703 = vld [vmem:[#allocation4 + $0xf4] sm:$0xf]
    %v2704 = vld [vmem:[#allocation4 + $0xf8] sm:$0xf]
    %v2705 = vld [vmem:[#allocation4 + $0xfc] sm:$0xf]
    %v2706 = vld [vmem:[#allocation4 + $0x100] sm:$0xf]
    %v2707 = vld [vmem:[#allocation4 + $0x104] sm:$0xf]
    %v2708 = vld [vmem:[#allocation4 + $0x108] sm:$0xf]
    %v2709 = vld [vmem:[#allocation4 + $0x10c] sm:$0xf]
    %v2710 = vld [vmem:[#allocation4 + $0x110] sm:$0xf]
    %v2711 = vld [vmem:[#allocation4 + $0x114] sm:$0xf]
    %v2712 = vld [vmem:[#allocation4 + $0x118] sm:$0xf]
    %v2713 = vld [vmem:[#allocation4 + $0x11c] sm:$0xf]
    %v2714 = vld [vmem:[#allocation4 + $0x120] sm:$0xf]
    %v2715 = vld [vmem:[#allocation4 + $0x124] sm:$0xf]
    %v2716 = vld [vmem:[#allocation4 + $0x128] sm:$0xf]
    %v2717 = vld [vmem:[#allocation4 + $0x12c] sm:$0xf]
    %v2718 = vld [vmem:[#allocation4 + $0x130] sm:$0xf]
    %v2719 = vld [vmem:[#allocation4 + $0x134] sm:$0xf]
    %v2720 = vld [vmem:[#allocation4 + $0x138] sm:$0xf]
    %v2721 = vld [vmem:[#allocation4 + $0x13c] sm:$0xf]
    %v2722 = vld [vmem:[#allocation4 + $0x140] sm:$0xf]
    %v2723 = vld [vmem:[#allocation4 + $0x144] sm:$0xf]
    %v2724 = vld [vmem:[#allocation4 + $0x148] sm:$0xf]
    %v2725 = vld [vmem:[#allocation4 + $0x14c] sm:$0xf]
    %v2726 = vld [vmem:[#allocation4 + $0x150] sm:$0xf]
    %v2727 = vld [vmem:[#allocation4 + $0x154] sm:$0xf]
    %v2728 = vld [vmem:[#allocation4 + $0x158] sm:$0xf]
    %v2729 = vld [vmem:[#allocation4 + $0x15c] sm:$0xf]
    %v2730 = vld [vmem:[#allocation4 + $0x160] sm:$0xf]
    %v2731 = vld [vmem:[#allocation4 + $0x164] sm:$0xf]
    %v2732 = vld [vmem:[#allocation4 + $0x168] sm:$0xf]
    %v2733 = vld [vmem:[#allocation4 + $0x16c] sm:$0xf]
    %v2734 = vld [vmem:[#allocation4 + $0x170] sm:$0xf]
    %v2735 = vld [vmem:[#allocation4 + $0x174] sm:$0xf]
    %v2736 = vld [vmem:[#allocation4 + $0x178] sm:$0xf]
    %v2737 = vld [vmem:[#allocation4 + $0x17c] sm:$0xf]
    %v2738 = vld [vmem:[#allocation4 + $0x180] sm:$0xf]
    %v2739 = vld [vmem:[#allocation4 + $0x184] sm:$0xf]
    %v2740 = vld [vmem:[#allocation4 + $0x188] sm:$0xf]
    %v2741 = vld [vmem:[#allocation4 + $0x18c] sm:$0xf]
    %v2742 = vld [vmem:[#allocation4 + $0x190] sm:$0xf]
    %v2743 = vld [vmem:[#allocation4 + $0x194] sm:$0xf]
    %v2744 = vld [vmem:[#allocation4 + $0x198] sm:$0xf]
    %v2745 = vld [vmem:[#allocation4 + $0x19c] sm:$0xf]
    %v2746 = vld [vmem:[#allocation4 + $0x1a0] sm:$0xf]
    %v2747 = vld [vmem:[#allocation4 + $0x1a4] sm:$0xf]
    %v2748 = vld [vmem:[#allocation4 + $0x1a8] sm:$0xf]
    %v2749 = vld [vmem:[#allocation4 + $0x1ac] sm:$0xf]
    %v2750 = vld [vmem:[#allocation4 + $0x1b0] sm:$0xf]
    %v2751 = vld [vmem:[#allocation4 + $0x1b4] sm:$0xf]
    %v2752 = vld [vmem:[#allocation4 + $0x1b8] sm:$0xf]
    %v2753 = vld [vmem:[#allocation4 + $0x1bc] sm:$0xf]
    %v2754 = vld [vmem:[%s5] sm:$0x1]
    %v2756 = vlaneseq
    %v2757 = vshrl.u32 %v2756, 7
    %v2758 = vsub.s32 0, %v2757
    %v2759 = vrot.slane %v2754, %v2758
    %v2873 = vunpack.c.l.b16 %v2642
    %v2874 = vunpack.c.l.b16 %v2643
    %v2875 = vunpack.c.l.b16 %v2644
    %v2876 = vunpack.c.l.b16 %v2645
    %v2877 = vunpack.c.l.b16 %v2646
    %v2878 = vunpack.c.l.b16 %v2647
    %v2879 = vunpack.c.l.b16 %v2648
    %v2880 = vunpack.c.l.b16 %v2649
    %v2881 = vunpack.c.l.b16 %v2650
    %v2882 = vunpack.c.l.b16 %v2651
    %v2883 = vunpack.c.l.b16 %v2652
    %v2884 = vunpack.c.l.b16 %v2653
    %v2885 = vunpack.c.l.b16 %v2654
    %v2886 = vunpack.c.l.b16 %v2655
    %v2887 = vunpack.c.l.b16 %v2656
    %v2888 = vunpack.c.l.b16 %v2657
    %v2889 = vunpack.c.l.b16 %v2658
    %v2890 = vunpack.c.l.b16 %v2659
    %v2891 = vunpack.c.l.b16 %v2660
    %v2892 = vunpack.c.l.b16 %v2661
    %v2893 = vunpack.c.l.b16 %v2662
    %v2894 = vunpack.c.l.b16 %v2663
    %v2895 = vunpack.c.l.b16 %v2664
    %v2896 = vunpack.c.l.b16 %v2665
    %v2897 = vunpack.c.l.b16 %v2666
    %v2898 = vunpack.c.l.b16 %v2667
    %v2899 = vunpack.c.l.b16 %v2668
    %v2900 = vunpack.c.l.b16 %v2669
    %v2901 = vunpack.c.l.b16 %v2670
    %v2902 = vunpack.c.l.b16 %v2671
    %v2903 = vunpack.c.l.b16 %v2672
    %v2904 = vunpack.c.l.b16 %v2673
    %v2905 = vunpack.c.l.b16 %v2674
    %v2906 = vunpack.c.l.b16 %v2675
    %v2907 = vunpack.c.l.b16 %v2676
    %v2908 = vunpack.c.l.b16 %v2677
    %v2909 = vunpack.c.l.b16 %v2678
    %v2910 = vunpack.c.l.b16 %v2679
    %v2911 = vunpack.c.l.b16 %v2680
    %v2912 = vunpack.c.l.b16 %v2681
    %v2913 = vunpack.c.l.b16 %v2682
    %v2914 = vunpack.c.l.b16 %v2683
    %v2915 = vunpack.c.l.b16 %v2684
    %v2916 = vunpack.c.l.b16 %v2685
    %v2917 = vunpack.c.l.b16 %v2686
    %v2918 = vunpack.c.l.b16 %v2687
    %v2919 = vunpack.c.l.b16 %v2688
    %v2920 = vunpack.c.l.b16 %v2689
    %v2921 = vunpack.c.l.b16 %v2690
    %v2922 = vunpack.c.l.b16 %v2691
    %v2923 = vunpack.c.l.b16 %v2692
    %v2924 = vunpack.c.l.b16 %v2693
    %v2925 = vunpack.c.l.b16 %v2694
    %v2926 = vunpack.c.l.b16 %v2695
    %v2927 = vunpack.c.l.b16 %v2696
    %v2928 = vunpack.c.l.b16 %v2697
    %v2929 = vunpack.c.l.b16 %v2698
    %v2930 = vunpack.c.l.b16 %v2699
    %v2931 = vunpack.c.l.b16 %v2700
    %v2932 = vunpack.c.l.b16 %v2701
    %v2933 = vunpack.c.l.b16 %v2702
    %v2934 = vunpack.c.l.b16 %v2703
    %v2935 = vunpack.c.l.b16 %v2704
    %v2936 = vunpack.c.l.b16 %v2705
    %v2937 = vunpack.c.l.b16 %v2706
    %v2938 = vunpack.c.l.b16 %v2707
    %v2939 = vunpack.c.l.b16 %v2708
    %v2940 = vunpack.c.l.b16 %v2709
    %v2941 = vunpack.c.l.b16 %v2710
    %v2942 = vunpack.c.l.b16 %v2711
    %v2943 = vunpack.c.l.b16 %v2712
    %v2944 = vunpack.c.l.b16 %v2713
    %v2945 = vunpack.c.l.b16 %v2714
    %v2946 = vunpack.c.l.b16 %v2715
    %v2947 = vunpack.c.l.b16 %v2716
    %v2948 = vunpack.c.l.b16 %v2717
    %v2949 = vunpack.c.l.b16 %v2718
    %v2950 = vunpack.c.l.b16 %v2719
    %v2951 = vunpack.c.l.b16 %v2720
    %v2952 = vunpack.c.l.b16 %v2721
    %v2953 = vunpack.c.l.b16 %v2722
    %v2954 = vunpack.c.l.b16 %v2723
    %v2955 = vunpack.c.l.b16 %v2724
    %v2956 = vunpack.c.l.b16 %v2725
    %v2957 = vunpack.c.l.b16 %v2726
    %v2958 = vunpack.c.l.b16 %v2727
    %v2959 = vunpack.c.l.b16 %v2728
    %v2960 = vunpack.c.l.b16 %v2729
    %v2961 = vunpack.c.l.b16 %v2730
    %v2962 = vunpack.c.l.b16 %v2731
    %v2963 = vunpack.c.l.b16 %v2732
    %v2964 = vunpack.c.l.b16 %v2733
    %v2965 = vunpack.c.l.b16 %v2734
    %v2966 = vunpack.c.l.b16 %v2735
    %v2967 = vunpack.c.l.b16 %v2736
    %v2968 = vunpack.c.l.b16 %v2737
    %v2969 = vunpack.c.l.b16 %v2738
    %v2970 = vunpack.c.l.b16 %v2739
    %v2971 = vunpack.c.l.b16 %v2740
    %v2972 = vunpack.c.l.b16 %v2741
    %v2973 = vunpack.c.l.b16 %v2742
    %v2974 = vunpack.c.l.b16 %v2743
    %v2975 = vunpack.c.l.b16 %v2744
    %v2976 = vunpack.c.l.b16 %v2745
    %v2977 = vunpack.c.l.b16 %v2746
    %v2978 = vunpack.c.l.b16 %v2747
    %v2979 = vunpack.c.l.b16 %v2748
    %v2980 = vunpack.c.l.b16 %v2749
    %v2981 = vunpack.c.l.b16 %v2750
    %v2982 = vunpack.c.l.b16 %v2751
    %v2983 = vunpack.c.l.b16 %v2752
    %v2984 = vunpack.c.l.b16 %v2753
    %v2985 = vpack.c.b16 %v2874, %v2873
    %v2986 = vpack.c.b16 %v2876, %v2875
    %v2987 = vpack.c.b16 %v2878, %v2877
    %v2988 = vpack.c.b16 %v2880, %v2879
    %v2989 = vpack.c.b16 %v2882, %v2881
    %v2990 = vpack.c.b16 %v2884, %v2883
    %v2991 = vpack.c.b16 %v2886, %v2885
    %v2992 = vpack.c.b16 %v2888, %v2887
    %v2993 = vpack.c.b16 %v2890, %v2889
    %v2994 = vpack.c.b16 %v2892, %v2891
    %v2995 = vpack.c.b16 %v2894, %v2893
    %v2996 = vpack.c.b16 %v2896, %v2895
    %v2997 = vpack.c.b16 %v2898, %v2897
    %v2998 = vpack.c.b16 %v2900, %v2899
    %v2999 = vpack.c.b16 %v2902, %v2901
    %v3000 = vpack.c.b16 %v2904, %v2903
    %v3001 = vpack.c.b16 %v2906, %v2905
    %v3002 = vpack.c.b16 %v2908, %v2907
    %v3003 = vpack.c.b16 %v2910, %v2909
    %v3004 = vpack.c.b16 %v2912, %v2911
    %v3005 = vpack.c.b16 %v2914, %v2913
    %v3006 = vpack.c.b16 %v2916, %v2915
    %v3007 = vpack.c.b16 %v2918, %v2917
    %v3008 = vpack.c.b16 %v2920, %v2919
    %v3009 = vpack.c.b16 %v2922, %v2921
    %v3010 = vpack.c.b16 %v2924, %v2923
    %v3011 = vpack.c.b16 %v2926, %v2925
    %v3012 = vpack.c.b16 %v2928, %v2927
    %v3013 = vpack.c.b16 %v2930, %v2929
    %v3014 = vpack.c.b16 %v2932, %v2931
    %v3015 = vpack.c.b16 %v2934, %v2933
    %v3016 = vpack.c.b16 %v2936, %v2935
    %v3017 = vpack.c.b16 %v2938, %v2937
    %v3018 = vpack.c.b16 %v2940, %v2939
    %v3019 = vpack.c.b16 %v2942, %v2941
    %v3020 = vpack.c.b16 %v2944, %v2943
    %v3021 = vpack.c.b16 %v2946, %v2945
    %v3022 = vpack.c.b16 %v2948, %v2947
    %v3023 = vpack.c.b16 %v2950, %v2949
    %v3024 = vpack.c.b16 %v2952, %v2951
    %v3025 = vpack.c.b16 %v2954, %v2953
    %v3026 = vpack.c.b16 %v2956, %v2955
    %v3027 = vpack.c.b16 %v2958, %v2957
    %v3028 = vpack.c.b16 %v2960, %v2959
    %v3029 = vpack.c.b16 %v2962, %v2961
    %v3030 = vpack.c.b16 %v2964, %v2963
    %v3031 = vpack.c.b16 %v2966, %v2965
    %v3032 = vpack.c.b16 %v2968, %v2967
    %v3033 = vpack.c.b16 %v2970, %v2969
    %v3034 = vpack.c.b16 %v2972, %v2971
    %v3035 = vpack.c.b16 %v2974, %v2973
    %v3036 = vpack.c.b16 %v2976, %v2975
    %v3037 = vpack.c.b16 %v2978, %v2977
    %v3038 = vpack.c.b16 %v2980, %v2979
    %v3039 = vpack.c.b16 %v2982, %v2981
    %v3040 = vpack.c.b16 %v2984, %v2983
    %3097 = vmatprep.subr.bf16.mxu0 0
    %3098 = vmatpush1.bf16.msra.mxu0 %v2985
    %3099 = vmatprep.subr.bf16.mxu0 0
    %3100 = vmatpush1.bf16.msra.mxu0 %v2986
    %3101 = vmatprep.subr.bf16.mxu0 0
    %3102 = vmatpush1.bf16.msra.mxu0 %v2987
    %3103 = vmatprep.subr.bf16.mxu0 0
    %3104 = vmatpush1.bf16.msra.mxu0 %v2988
    %3105 = vmatprep.subr.bf16.mxu0 0
    %3106 = vmatpush1.bf16.msra.mxu0 %v2989
    %3107 = vmatprep.subr.bf16.mxu0 0
    %3108 = vmatpush1.bf16.msra.mxu0 %v2990
    %3109 = vmatprep.subr.bf16.mxu0 0
    %3110 = vmatpush1.bf16.msra.mxu0 %v2991
    %3111 = vmatprep.subr.bf16.mxu0 0
    %3112 = vmatpush1.bf16.msra.mxu0 %v2992
    %3113 = vmatprep.subr.bf16.mxu0 0
    %3114 = vmatpush1.bf16.msra.mxu0 %v2993
    %3115 = vmatprep.subr.bf16.mxu0 0
    %3116 = vmatpush1.bf16.msra.mxu0 %v2994
    %3117 = vmatprep.subr.bf16.mxu0 0
    %3118 = vmatpush1.bf16.msra.mxu0 %v2995
    %3119 = vmatprep.subr.bf16.mxu0 0
    %3120 = vmatpush1.bf16.msra.mxu0 %v2996
    %3121 = vmatprep.subr.bf16.mxu0 0
    %3122 = vmatpush1.bf16.msra.mxu0 %v2997
    %3123 = vmatprep.subr.bf16.mxu0 0
    %3124 = vmatpush1.bf16.msra.mxu0 %v2998
    %3125 = vmatprep.subr.bf16.mxu0 0
    %3126 = vmatpush1.bf16.msra.mxu0 %v2999
    %3127 = vmatprep.subr.bf16.mxu0 0
    %3128 = vmatpush1.bf16.msra.mxu0 %v3000
    %3129 = vmatprep.mubr.bf16.mxu0 %v2629
    %3130 = vmatmul.mubr.bf16.gmra.mrb[0].mxu0 %v2628
    %v3131 = vpop.f32.mrb[0].mxu0
    %v3132 = vadd.f32 %v2759, %v3131
    %v3133 = vpop.f32.mrb[0].mxu0
    %v3134 = vpop.f32.mrb[0].mxu0
    %v3135 = vadd.f32 %v2759, %v3134
    %v3136 = vpop.f32.mrb[0].mxu0
    %3137 = vmatprep.mubr.bf16.mxu0 %v2636
    %3138 = vmatmul.mubr.bf16.gmra.mrb[0].mxu0 %v2635
    %v3139 = vpop.f32.mrb[0].mxu0
    %v3140 = vadd.f32 %v2759, %v3139
    %v3141 = vpop.f32.mrb[0].mxu0
    %v3142 = vpop.f32.mrb[0].mxu0
    %v3143 = vadd.f32 %v2759, %v3142
    %v3144 = vpop.f32.mrb[0].mxu0
    %3145 = vdwg.mxu0
    %3146 = vmatprep.subr.bf16.mxu0 0
    %3147 = vmatpush1.bf16.msra.mxu0 %v3001
    %3148 = vmatprep.subr.bf16.mxu0 0
    %3149 = vmatpush1.bf16.msra.mxu0 %v3002
    %3150 = vmatprep.subr.bf16.mxu0 0
    %3151 = vmatpush1.bf16.msra.mxu0 %v3003
    %3152 = vmatprep.subr.bf16.mxu0 0
    %3153 = vmatpush1.bf16.msra.mxu0 %v3004
    %3154 = vmatprep.subr.bf16.mxu0 0
    %3155 = vmatpush1.bf16.msra.mxu0 %v3005
    %3156 = vmatprep.subr.bf16.mxu0 0
    %3157 = vmatpush1.bf16.msra.mxu0 %v3006
    %3158 = vmatprep.subr.bf16.mxu0 0
    %3159 = vmatpush1.bf16.msra.mxu0 %v3007
    %3160 = vmatprep.subr.bf16.mxu0 0
    %3161 = vmatpush1.bf16.msra.mxu0 %v3008
    %3162 = vmatprep.subr.bf16.mxu0 0
    %3163 = vmatpush1.bf16.msra.mxu0 %v3009
    %3164 = vmatprep.subr.bf16.mxu0 0
    %3165 = vmatpush1.bf16.msra.mxu0 %v3010
    %3166 = vmatprep.subr.bf16.mxu0 0
    %3167 = vmatpush1.bf16.msra.mxu0 %v3011
    %3168 = vmatprep.subr.bf16.mxu0 0
    %3169 = vmatpush1.bf16.msra.mxu0 %v3012
    %3170 = vmatprep.subr.bf16.mxu0 0
    %3171 = vmatpush1.bf16.msra.mxu0 %v3013
    %3172 = vmatprep.subr.bf16.mxu0 0
    %3173 = vmatpush1.bf16.msra.mxu0 %v3014
    %3174 = vmatprep.subr.bf16.mxu0 0
    %3175 = vmatpush1.bf16.msra.mxu0 %v3015
    %3176 = vmatprep.subr.bf16.mxu0 0
    %3177 = vmatpush1.bf16.msra.mxu0 %v3016
    %3178 = vmatprep.mubr.bf16.mxu0 %v2631
    %3179 = vmatmul.mubr.bf16.gmra.mrb[0].mxu0 %v2630
    %v3180 = vpop.f32.mrb[0].mxu0
    %v3181 = vadd.f32 %v3132, %v3180
    %v3182 = vpop.f32.mrb[0].mxu0
    %v3183 = vpop.f32.mrb[0].mxu0
    %v3184 = vadd.f32 %v3135, %v3183
    %v3185 = vpop.f32.mrb[0].mxu0
    %3186 = vmatprep.mubr.bf16.mxu0 %v2638
    %3187 = vmatmul.mubr.bf16.gmra.mrb[0].mxu0 %v2637
    %v3188 = vpop.f32.mrb[0].mxu0
    %v3189 = vadd.f32 %v3140, %v3188
    %v3190 = vpop.f32.mrb[0].mxu0
    %v3191 = vpop.f32.mrb[0].mxu0
    %v3192 = vadd.f32 %v3143, %v3191
    %v3193 = vpop.f32.mrb[0].mxu0
    %3194 = vdwg.mxu0
    %3195 = vmatprep.subr.bf16.mxu0 0
    %3196 = vmatpush1.bf16.msra.mxu0 %v3017
    %3197 = vmatprep.subr.bf16.mxu0 0
    %3198 = vmatpush1.bf16.msra.mxu0 %v3018
    %3199 = vmatprep.subr.bf16.mxu0 0
    %3200 = vmatpush1.bf16.msra.mxu0 %v3019
    %3201 = vmatprep.subr.bf16.mxu0 0
    %3202 = vmatpush1.bf16.msra.mxu0 %v3020
    %3203 = vmatprep.subr.bf16.mxu0 0
    %3204 = vmatpush1.bf16.msra.mxu0 %v3021
    %3205 = vmatprep.subr.bf16.mxu0 0
    %3206 = vmatpush1.bf16.msra.mxu0 %v3022
    %3207 = vmatprep.subr.bf16.mxu0 0
    %3208 = vmatpush1.bf16.msra.mxu0 %v3023
    %3209 = vmatprep.subr.bf16.mxu0 0
    %3210 = vmatpush1.bf16.msra.mxu0 %v3024
    %3211 = vmatprep.subr.bf16.mxu0 0
    %3212 = vmatpush1.bf16.msra.mxu0 %v3025
    %3213 = vmatprep.subr.bf16.mxu0 0
    %3214 = vmatpush1.bf16.msra.mxu0 %v3026
    %3215 = vmatprep.subr.bf16.mxu0 0
    %3216 = vmatpush1.bf16.msra.mxu0 %v3027
    %3217 = vmatprep.subr.bf16.mxu0 0
    %3218 = vmatpush1.bf16.msra.mxu0 %v3028
    %3219 = vmatprep.subr.bf16.mxu0 0
    %3220 = vmatpush1.bf16.msra.mxu0 %v3029
    %3221 = vmatprep.subr.bf16.mxu0 0
    %3222 = vmatpush1.bf16.msra.mxu0 %v3030
    %3223 = vmatprep.subr.bf16.mxu0 0
    %3224 = vmatpush1.bf16.msra.mxu0 %v3031
    %3225 = vmatprep.subr.bf16.mxu0 0
    %3226 = vmatpush1.bf16.msra.mxu0 %v3032
    %3227 = vmatprep.mubr.bf16.mxu0 %v2633
    %3228 = vmatmul.mubr.bf16.gmra.mrb[0].mxu0 %v2632
    %v3229 = vpop.f32.mrb[0].mxu0
    %v3230 = vadd.f32 %v3181, %v3229
    %v3231 = vpop.f32.mrb[0].mxu0
    %v3232 = vpop.f32.mrb[0].mxu0
    %v3233 = vadd.f32 %v3184, %v3232
    %v3234 = vpop.f32.mrb[0].mxu0
    %3235 = vmatprep.mubr.bf16.mxu0 %v2640
    %3236 = vmatmul.mubr.bf16.gmra.mrb[0].mxu0 %v2639
    %v3237 = vpop.f32.mrb[0].mxu0
    %v3238 = vadd.f32 %v3189, %v3237
    %v3239 = vpop.f32.mrb[0].mxu0
    %v3240 = vpop.f32.mrb[0].mxu0
    %v3241 = vadd.f32 %v3192, %v3240
    %v3242 = vpop.f32.mrb[0].mxu0
    %3243 = vdwg.mxu0
    %3244 = vmatprep.subr.bf16.mxu0 0
    %3245 = vmatpush1.bf16.msra.mxu0 %v3033
    %3246 = vmatprep.subr.bf16.mxu0 0
    %3247 = vmatpush1.bf16.msra.mxu0 %v3034
    %3248 = vmatprep.subr.bf16.mxu0 0
    %3249 = vmatpush1.bf16.msra.mxu0 %v3035
    %3250 = vmatprep.subr.bf16.mxu0 0
    %3251 = vmatpush1.bf16.msra.mxu0 %v3036
    %3252 = vmatprep.subr.bf16.mxu0 0
    %3253 = vmatpush1.bf16.msra.mxu0 %v3037
    %3254 = vmatprep.subr.bf16.mxu0 0
    %3255 = vmatpush1.bf16.msra.mxu0 %v3038
    %3256 = vmatprep.subr.bf16.mxu0 0
    %3257 = vmatpush1.bf16.msra.mxu0 %v3039
    %3258 = vmatprep.subr.bf16.mxu0 0
    %3259 = vmatpush1.bf16.msra.mxu0 %v3040
    %3260 = vmatprep.subr.bf16.mxu0 0
    %3261 = vmatpush1.bf16.msra.mxu0 0
    %3262 = vmatprep.subr.bf16.mxu0 0
    %3263 = vmatpush1.bf16.msra.mxu0 0
    %3264 = vmatprep.subr.bf16.mxu0 0
    %3265 = vmatpush1.bf16.msra.mxu0 0
    %3266 = vmatprep.subr.bf16.mxu0 0
    %3267 = vmatpush1.bf16.msra.mxu0 0
    %3268 = vmatprep.subr.bf16.mxu0 0
    %3269 = vmatpush1.bf16.msra.mxu0 0
    %3270 = vmatprep.subr.bf16.mxu0 0
    %3271 = vmatpush1.bf16.msra.mxu0 0
    %3272 = vmatprep.subr.bf16.mxu0 0
    %3273 = vmatpush1.bf16.msra.mxu0 0
    %3274 = vmatprep.subr.bf16.mxu0 0
    %3275 = vmatpush1.bf16.msra.mxu0 0
    %3276 = vmatprep.mubr.bf16.mxu0 0
    %3277 = vmatmul.mubr.bf16.gmra.mrb[0].mxu0 %v2634
    %v3278 = vpop.f32.mrb[0].mxu0
    %v3279 = vadd.f32 %v3230, %v3278
    %v3280 = vpop.f32.mrb[0].mxu0
    %v3281 = vpop.f32.mrb[0].mxu0
    %v3282 = vadd.f32 %v3233, %v3281
    %v3283 = vpop.f32.mrb[0].mxu0
    %3284 = vmatprep.mubr.bf16.mxu0 0
    %3285 = vmatmul.mubr.bf16.gmra.mrb[0].mxu0 %v2641
    %v3286 = vpop.f32.mrb[0].mxu0
    %v3287 = vadd.f32 %v3238, %v3286
    %v3288 = vpop.f32.mrb[0].mxu0
    %v3289 = vpop.f32.mrb[0].mxu0
    %v3290 = vadd.f32 %v3241, %v3289
    %v3291 = vpop.f32.mrb[0].mxu0
    %3292 = vdwg.mxu0
    %v3293 = vmax.f32 %v3279, 0.0
    %v3294 = vmax.f32 %v3282, 0.0
    %v3295 = vmax.f32 %v3287, 0.0
    %v3296 = vmax.f32 %v3290, 0.0
    %3297 = vst [vmem:[#allocation2] sm:$0xff] %v3293
    %3298 = vst [vmem:[#allocation2 + $0x8] sm:$0xff] %v3294
    %v3300 = vrot.slane %v3293, 1
    %v3302 = vmax.f32 %v3293, %v3300
    %v3303 = vld [vmem:[%s2414] ss:$3 sm:$0xf]
    %v3304 = vld [vmem:[%s2420] ss:$3 sm:$0xf]
    %v3305 = vld [vmem:[%s2426] ss:$3 sm:$0xf]
    %v3306 = vmax.f32 %v3303, %v3304
    %v3307 = vmax.f32 %v3306, %v3305
    %v3309 = vrot.slane %v3294, 1
    %v3311 = vmax.f32 %v3294, %v3309
    %v3313 = vrot.slane %v3307, 7
    %v3316 = vrot.slane %v3311, 1
    %v3318 = vsel %vm848, %v3302, %v3313
    %v3319 = vsel %vm1795, %v3318, %v3316
    %3320 = vst [vmem:[#allocation3] sm:$0xff] %v3295
    %3321 = vst [vmem:[#allocation3 + $0x8] sm:$0xff] %v3296
    %v3323 = vrot.slane %v3295, 1
    %v3325 = vmax.f32 %v3295, %v3323
    %v3326 = vld [vmem:[%s2539] ss:$3 sm:$0xf]
    %v3327 = vld [vmem:[%s2545] ss:$3 sm:$0xf]
    %v3328 = vld [vmem:[%s2551] ss:$3 sm:$0xf]
    %v3329 = vmax.f32 %v3326, %v3327
    %v3330 = vmax.f32 %v3329, %v3328
    %v3332 = vrot.slane %v3296, 1
    %v3334 = vmax.f32 %v3296, %v3332
    %v3336 = vrot.slane %v3330, 7
    %v3339 = vrot.slane %v3334, 1
    %v3341 = vsel %vm848, %v3325, %v3336
    %v3342 = vsel %vm1795, %v3341, %v3339
    %v3344 = vrot.slane %v3342, 2
    %v3346 = vsel %vm1539, %v3319, %v3344
    %v3348 = vrot.slane %v3346, 7
    %v3350 = vsel %vm848, 0.0, %v3348
    %v3351 = vsel %vm1283, %v3350, 0.0
    %v3353 = vrot.slane %v3351, 1
    %v3355 = vrot.slane %v3351, 2
    %v3357 = vrot.slane %v3346, 5
    %v3358 = vrot.slane %v3344, 5
    %v3359 = vsel %vm739, %v3357, %v3358
    %v3361 = vsel %vm848, 0.0, %v3359
    %v3362 = vsel %vm1283, %v3361, 0.0
    %v3364 = vrot.slane %v3362, 1
    %v3365 = vrot.slane %v3362, 2
    %v3366 = vrot.slane %v3364, 2
    %v3367 = vrot.slane %v3365, 2
    %v3371 = vsel %vm1539, %v3351, %v3365
    %v3372 = vsel %vm1539, %v3353, %v3366
    %v3373 = vsel %vm1539, %v3355, %v3367
    %v3374 = vpack.c.bf16 %v3365, %v3371
    %v3375 = vpack.c.bf16 %v3366, %v3372
    %v3376 = vpack.c.bf16 %v3367, %v3373
    %v3377 = vld [vmem:[%s6] sm:$0xf]
    %v3378 = vld [vmem:[%s6 + $0x4] sm:$0xf]
    %v3379 = vld [vmem:[%s6 + $0x8] sm:$0xf]
    %v3380 = vld [vmem:[%s6 + $0xc] sm:$0xf]
    %v3381 = vld [vmem:[%s6 + $0x10] sm:$0xf]
    %v3382 = vld [vmem:[%s6 + $0x14] sm:$0xf]
    %v3383 = vld [vmem:[%s6 + $0x18] sm:$0xf]
    %v3384 = vld [vmem:[%s6 + $0x1c] sm:$0xf]
    %v3385 = vld [vmem:[%s6 + $0x20] sm:$0xf]
    %v3386 = vld [vmem:[%s6 + $0x24] sm:$0xf]
    %v3387 = vld [vmem:[%s6 + $0x28] sm:$0xf]
    %v3388 = vld [vmem:[%s6 + $0x2c] sm:$0xf]
    %v3389 = vld [vmem:[%s6 + $0x30] sm:$0xf]
    %v3390 = vld [vmem:[%s6 + $0x34] sm:$0xf]
    %v3391 = vld [vmem:[%s6 + $0x38] sm:$0xf]
    %v3392 = vld [vmem:[%s6 + $0x3c] sm:$0xf]
    %v3393 = vld [vmem:[%s6 + $0x40] sm:$0xf]
    %v3394 = vld [vmem:[%s6 + $0x44] sm:$0xf]
    %v3395 = vld [vmem:[%s6 + $0x48] sm:$0xf]
    %v3396 = vld [vmem:[%s6 + $0x4c] sm:$0xf]
    %v3397 = vld [vmem:[%s6 + $0x50] sm:$0xf]
    %v3398 = vld [vmem:[%s6 + $0x54] sm:$0xf]
    %v3399 = vld [vmem:[%s6 + $0x58] sm:$0xf]
    %v3400 = vld [vmem:[%s6 + $0x5c] sm:$0xf]
    %v3401 = vld [vmem:[%s6 + $0x60] sm:$0xf]
    %v3402 = vld [vmem:[%s6 + $0x64] sm:$0xf]
    %v3403 = vld [vmem:[%s6 + $0x68] sm:$0xf]
    %v3404 = vld [vmem:[%s6 + $0x6c] sm:$0xf]
    %v3405 = vld [vmem:[%s6 + $0x70] sm:$0xf]
    %v3406 = vld [vmem:[%s6 + $0x74] sm:$0xf]
    %v3407 = vld [vmem:[%s6 + $0x78] sm:$0xf]
    %v3408 = vld [vmem:[%s6 + $0x7c] sm:$0xf]
    %v3409 = vld [vmem:[%s6 + $0x80] sm:$0xf]
    %v3410 = vld [vmem:[%s6 + $0x84] sm:$0xf]
    %v3411 = vld [vmem:[%s6 + $0x88] sm:$0xf]
    %v3412 = vld [vmem:[%s6 + $0x8c] sm:$0xf]
    %v3413 = vld [vmem:[%s6 + $0x90] sm:$0xf]
    %v3414 = vld [vmem:[%s6 + $0x94] sm:$0xf]
    %v3415 = vld [vmem:[%s6 + $0x98] sm:$0xf]
    %v3416 = vld [vmem:[%s6 + $0x9c] sm:$0xf]
    %v3417 = vld [vmem:[%s6 + $0xa0] sm:$0xf]
    %v3418 = vld [vmem:[%s6 + $0xa4] sm:$0xf]
    %v3419 = vld [vmem:[%s6 + $0xa8] sm:$0xf]
    %v3420 = vld [vmem:[%s6 + $0xac] sm:$0xf]
    %v3421 = vld [vmem:[%s6 + $0xb0] sm:$0xf]
    %v3422 = vld [vmem:[%s6 + $0xb4] sm:$0xf]
    %v3423 = vld [vmem:[%s6 + $0xb8] sm:$0xf]
    %v3424 = vld [vmem:[%s6 + $0xbc] sm:$0xf]
    %v3425 = vld [vmem:[%s7] sm:$0x1]
    %v3427 = vlaneseq
    %v3428 = vshrl.u32 %v3427, 7
    %v3429 = vsub.s32 0, %v3428
    %v3430 = vrot.slane %v3425, %v3429
    %v3480 = vunpack.c.l.b16 %v3377
    %v3481 = vunpack.c.l.b16 %v3378
    %v3482 = vunpack.c.l.b16 %v3379
    %v3483 = vunpack.c.l.b16 %v3380
    %v3484 = vunpack.c.l.b16 %v3381
    %v3485 = vunpack.c.l.b16 %v3382
    %v3486 = vunpack.c.l.b16 %v3383
    %v3487 = vunpack.c.l.b16 %v3384
    %v3488 = vunpack.c.l.b16 %v3385
    %v3489 = vunpack.c.l.b16 %v3386
    %v3490 = vunpack.c.l.b16 %v3387
    %v3491 = vunpack.c.l.b16 %v3388
    %v3492 = vunpack.c.l.b16 %v3389
    %v3493 = vunpack.c.l.b16 %v3390
    %v3494 = vunpack.c.l.b16 %v3391
    %v3495 = vunpack.c.l.b16 %v3392
    %v3496 = vunpack.c.l.b16 %v3393
    %v3497 = vunpack.c.l.b16 %v3394
    %v3498 = vunpack.c.l.b16 %v3395
    %v3499 = vunpack.c.l.b16 %v3396
    %v3500 = vunpack.c.l.b16 %v3397
    %v3501 = vunpack.c.l.b16 %v3398
    %v3502 = vunpack.c.l.b16 %v3399
    %v3503 = vunpack.c.l.b16 %v3400
    %v3504 = vunpack.c.l.b16 %v3401
    %v3505 = vunpack.c.l.b16 %v3402
    %v3506 = vunpack.c.l.b16 %v3403
    %v3507 = vunpack.c.l.b16 %v3404
    %v3508 = vunpack.c.l.b16 %v3405
    %v3509 = vunpack.c.l.b16 %v3406
    %v3510 = vunpack.c.l.b16 %v3407
    %v3511 = vunpack.c.l.b16 %v3408
    %v3512 = vunpack.c.l.b16 %v3409
    %v3513 = vunpack.c.l.b16 %v3410
    %v3514 = vunpack.c.l.b16 %v3411
    %v3515 = vunpack.c.l.b16 %v3412
    %v3516 = vunpack.c.l.b16 %v3413
    %v3517 = vunpack.c.l.b16 %v3414
    %v3518 = vunpack.c.l.b16 %v3415
    %v3519 = vunpack.c.l.b16 %v3416
    %v3520 = vunpack.c.l.b16 %v3417
    %v3521 = vunpack.c.l.b16 %v3418
    %v3522 = vunpack.c.l.b16 %v3419
    %v3523 = vunpack.c.l.b16 %v3420
    %v3524 = vunpack.c.l.b16 %v3421
    %v3525 = vunpack.c.l.b16 %v3422
    %v3526 = vunpack.c.l.b16 %v3423
    %v3527 = vunpack.c.l.b16 %v3424
    %v3528 = vpack.c.b16 %v3481, %v3480
    %v3529 = vpack.c.b16 %v3483, %v3482
    %v3530 = vpack.c.b16 %v3485, %v3484
    %v3531 = vpack.c.b16 %v3487, %v3486
    %v3532 = vpack.c.b16 %v3489, %v3488
    %v3533 = vpack.c.b16 %v3491, %v3490
    %v3534 = vpack.c.b16 %v3493, %v3492
    %v3535 = vpack.c.b16 %v3495, %v3494
    %v3536 = vpack.c.b16 %v3497, %v3496
    %v3537 = vpack.c.b16 %v3499, %v3498
    %v3538 = vpack.c.b16 %v3501, %v3500
    %v3539 = vpack.c.b16 %v3503, %v3502
    %v3540 = vpack.c.b16 %v3505, %v3504
    %v3541 = vpack.c.b16 %v3507, %v3506
    %v3542 = vpack.c.b16 %v3509, %v3508
    %v3543 = vpack.c.b16 %v3511, %v3510
    %v3544 = vpack.c.b16 %v3513, %v3512
    %v3545 = vpack.c.b16 %v3515, %v3514
    %v3546 = vpack.c.b16 %v3517, %v3516
    %v3547 = vpack.c.b16 %v3519, %v3518
    %v3548 = vpack.c.b16 %v3521, %v3520
    %v3549 = vpack.c.b16 %v3523, %v3522
    %v3550 = vpack.c.b16 %v3525, %v3524
    %v3551 = vpack.c.b16 %v3527, %v3526
    %3576 = vmatprep.subr.bf16.mxu0 0
    %3577 = vmatpush1.bf16.msra.mxu0 %v3528
    %3578 = vmatprep.subr.bf16.mxu0 0
    %3579 = vmatpush1.bf16.msra.mxu0 %v3529
    %3580 = vmatprep.subr.bf16.mxu0 0
    %3581 = vmatpush1.bf16.msra.mxu0 %v3530
    %3582 = vmatprep.subr.bf16.mxu0 0
    %3583 = vmatpush1.bf16.msra.mxu0 %v3531
    %3584 = vmatprep.subr.bf16.mxu0 0
    %3585 = vmatpush1.bf16.msra.mxu0 %v3532
    %3586 = vmatprep.subr.bf16.mxu0 0
    %3587 = vmatpush1.bf16.msra.mxu0 %v3533
    %3588 = vmatprep.subr.bf16.mxu0 0
    %3589 = vmatpush1.bf16.msra.mxu0 %v3534
    %3590 = vmatprep.subr.bf16.mxu0 0
    %3591 = vmatpush1.bf16.msra.mxu0 %v3535
    %3592 = vmatprep.subr.bf16.mxu0 0
    %3593 = vmatpush1.bf16.msra.mxu0 %v3536
    %3594 = vmatprep.subr.bf16.mxu0 0
    %3595 = vmatpush1.bf16.msra.mxu0 %v3537
    %3596 = vmatprep.subr.bf16.mxu0 0
    %3597 = vmatpush1.bf16.msra.mxu0 %v3538
    %3598 = vmatprep.subr.bf16.mxu0 0
    %3599 = vmatpush1.bf16.msra.mxu0 %v3539
    %3600 = vmatprep.subr.bf16.mxu0 0
    %3601 = vmatpush1.bf16.msra.mxu0 %v3540
    %3602 = vmatprep.subr.bf16.mxu0 0
    %3603 = vmatpush1.bf16.msra.mxu0 %v3541
    %3604 = vmatprep.subr.bf16.mxu0 0
    %3605 = vmatpush1.bf16.msra.mxu0 %v3542
    %3606 = vmatprep.subr.bf16.mxu0 0
    %3607 = vmatpush1.bf16.msra.mxu0 %v3543
    %3608 = vmatprep.mubr.bf16.mxu0 %v3375
    %3609 = vmatmul.mubr.bf16.gmra.mrb[0].mxu0 %v3374
    %v3610 = vpop.f32.mrb[0].mxu0
    %v3611 = vadd.f32 %v3430, %v3610
    %v3612 = vpop.f32.mrb[0].mxu0
    %v3613 = vpop.f32.mrb[0].mxu0
    %v3614 = vadd.f32 %v3430, %v3613
    %v3615 = vpop.f32.mrb[0].mxu0
    %3616 = vdwg.mxu0
    %3617 = vmatprep.subr.bf16.mxu0 0
    %3618 = vmatpush1.bf16.msra.mxu0 %v3544
    %3619 = vmatprep.subr.bf16.mxu0 0
    %3620 = vmatpush1.bf16.msra.mxu0 %v3545
    %3621 = vmatprep.subr.bf16.mxu0 0
    %3622 = vmatpush1.bf16.msra.mxu0 %v3546
    %3623 = vmatprep.subr.bf16.mxu0 0
    %3624 = vmatpush1.bf16.msra.mxu0 %v3547
    %3625 = vmatprep.subr.bf16.mxu0 0
    %3626 = vmatpush1.bf16.msra.mxu0 %v3548
    %3627 = vmatprep.subr.bf16.mxu0 0
    %3628 = vmatpush1.bf16.msra.mxu0 %v3549
    %3629 = vmatprep.subr.bf16.mxu0 0
    %3630 = vmatpush1.bf16.msra.mxu0 %v3550
    %3631 = vmatprep.subr.bf16.mxu0 0
    %3632 = vmatpush1.bf16.msra.mxu0 %v3551
    %3633 = vmatprep.subr.bf16.mxu0 0
    %3634 = vmatpush1.bf16.msra.mxu0 0
    %3635 = vmatprep.subr.bf16.mxu0 0
    %3636 = vmatpush1.bf16.msra.mxu0 0
    %3637 = vmatprep.subr.bf16.mxu0 0
    %3638 = vmatpush1.bf16.msra.mxu0 0
    %3639 = vmatprep.subr.bf16.mxu0 0
    %3640 = vmatpush1.bf16.msra.mxu0 0
    %3641 = vmatprep.subr.bf16.mxu0 0
    %3642 = vmatpush1.bf16.msra.mxu0 0
    %3643 = vmatprep.subr.bf16.mxu0 0
    %3644 = vmatpush1.bf16.msra.mxu0 0
    %3645 = vmatprep.subr.bf16.mxu0 0
    %3646 = vmatpush1.bf16.msra.mxu0 0
    %3647 = vmatprep.subr.bf16.mxu0 0
    %3648 = vmatpush1.bf16.msra.mxu0 0
    %3649 = vmatprep.mubr.bf16.mxu0 0
    %3650 = vmatmul.mubr.bf16.gmra.mrb[0].mxu0 %v3376
    %v3651 = vpop.f32.mrb[0].mxu0
    %v3652 = vadd.f32 %v3611, %v3651
    %v3653 = vpop.f32.mrb[0].mxu0
    %v3654 = vpop.f32.mrb[0].mxu0
    %v3655 = vadd.f32 %v3614, %v3654
    %v3656 = vpop.f32.mrb[0].mxu0
    %3657 = vdwg.mxu0
    %v3658 = vmax.f32 %v3652, 0.0
    %v3659 = vmax.f32 %v3655, 0.0
    %v3661 = vrot.slane %v3658, 7
    %v3663 = vsel %vm848, 0.0, %v3661
    %v3664 = vsel %vm1283, %v3663, 0.0
    %v3666 = vrot.slane %v3664, 1
    %v3668 = vrot.slane %v3664, 2
    %v3671 = vrot.slane %v3658, 5
    %v3672 = vrot.slane %v3659, 5
    %v3673 = vsel %vm739, %v3671, %v3672
    %v3675 = vsel %vm848, 0.0, %v3673
    %v3676 = vsel %vm1283, %v3675, 0.0
    %v3678 = vrot.slane %v3676, 1
    %v3679 = vrot.slane %v3676, 2
    %v3680 = vrot.slane %v3678, 2
    %v3681 = vrot.slane %v3679, 2
    %v3685 = vsel %vm1539, %v3664, %v3679
    %v3686 = vsel %vm1539, %v3666, %v3680
    %v3687 = vsel %vm1539, %v3668, %v3681
    %v3688 = vpack.c.bf16 %v3679, %v3685
    %v3689 = vpack.c.bf16 %v3680, %v3686
    %v3690 = vpack.c.bf16 %v3681, %v3687
    %v3691 = vld [vmem:[#allocation7] sm:$0xf]
    %v3692 = vld [vmem:[#allocation7 + $0x4] sm:$0xf]
    %v3693 = vld [vmem:[#allocation7 + $0x8] sm:$0xf]
    %v3694 = vld [vmem:[#allocation7 + $0xc] sm:$0xf]
    %v3695 = vld [vmem:[#allocation7 + $0x10] sm:$0xf]
    %v3696 = vld [vmem:[#allocation7 + $0x14] sm:$0xf]
    %v3697 = vld [vmem:[#allocation7 + $0x18] sm:$0xf]
    %v3698 = vld [vmem:[#allocation7 + $0x1c] sm:$0xf]
    %v3699 = vld [vmem:[#allocation7 + $0x20] sm:$0xf]
    %v3700 = vld [vmem:[#allocation7 + $0x24] sm:$0xf]
    %v3701 = vld [vmem:[#allocation7 + $0x28] sm:$0xf]
    %v3702 = vld [vmem:[#allocation7 + $0x2c] sm:$0xf]
    %v3703 = vld [vmem:[#allocation7 + $0x30] sm:$0xf]
    %v3704 = vld [vmem:[#allocation7 + $0x34] sm:$0xf]
    %v3705 = vld [vmem:[#allocation7 + $0x38] sm:$0xf]
    %v3706 = vld [vmem:[#allocation7 + $0x3c] sm:$0xf]
    %v3707 = vld [vmem:[#allocation7 + $0x40] sm:$0xf]
    %v3708 = vld [vmem:[#allocation7 + $0x44] sm:$0xf]
    %v3709 = vld [vmem:[#allocation7 + $0x48] sm:$0xf]
    %v3710 = vld [vmem:[#allocation7 + $0x4c] sm:$0xf]
    %v3711 = vld [vmem:[#allocation7 + $0x50] sm:$0xf]
    %v3712 = vld [vmem:[#allocation7 + $0x54] sm:$0xf]
    %v3713 = vld [vmem:[#allocation7 + $0x58] sm:$0xf]
    %v3714 = vld [vmem:[#allocation7 + $0x5c] sm:$0xf]
    %v3715 = vld [vmem:[#allocation7 + $0x60] sm:$0xf]
    %v3716 = vld [vmem:[#allocation7 + $0x64] sm:$0xf]
    %v3717 = vld [vmem:[#allocation7 + $0x68] sm:$0xf]
    %v3718 = vld [vmem:[#allocation7 + $0x6c] sm:$0xf]
    %v3719 = vld [vmem:[#allocation7 + $0x70] sm:$0xf]
    %v3720 = vld [vmem:[#allocation7 + $0x74] sm:$0xf]
    %v3721 = vld [vmem:[#allocation7 + $0x78] sm:$0xf]
    %v3722 = vld [vmem:[#allocation7 + $0x7c] sm:$0xf]
    %v3723 = vld [vmem:[#allocation7 + $0x80] sm:$0xf]
    %v3724 = vld [vmem:[#allocation7 + $0x84] sm:$0xf]
    %v3725 = vld [vmem:[#allocation7 + $0x88] sm:$0xf]
    %v3726 = vld [vmem:[#allocation7 + $0x8c] sm:$0xf]
    %v3727 = vld [vmem:[#allocation7 + $0x90] sm:$0xf]
    %v3728 = vld [vmem:[#allocation7 + $0x94] sm:$0xf]
    %v3729 = vld [vmem:[#allocation7 + $0x98] sm:$0xf]
    %v3730 = vld [vmem:[#allocation7 + $0x9c] sm:$0xf]
    %v3731 = vld [vmem:[#allocation7 + $0xa0] sm:$0xf]
    %v3732 = vld [vmem:[#allocation7 + $0xa4] sm:$0xf]
    %v3733 = vld [vmem:[#allocation7 + $0xa8] sm:$0xf]
    %v3734 = vld [vmem:[#allocation7 + $0xac] sm:$0xf]
    %v3735 = vld [vmem:[#allocation7 + $0xb0] sm:$0xf]
    %v3736 = vld [vmem:[#allocation7 + $0xb4] sm:$0xf]
    %v3737 = vld [vmem:[#allocation7 + $0xb8] sm:$0xf]
    %v3738 = vld [vmem:[#allocation7 + $0xbc] sm:$0xf]
    %v3739 = vld [vmem:[%s9] sm:$0x1]
    %v3741 = vlaneseq
    %v3742 = vshrl.u32 %v3741, 7
    %v3743 = vsub.s32 0, %v3742
    %v3744 = vrot.slane %v3739, %v3743
    %v3794 = vunpack.c.l.b16 %v3691
    %v3795 = vunpack.c.l.b16 %v3692
    %v3796 = vunpack.c.l.b16 %v3693
    %v3797 = vunpack.c.l.b16 %v3694
    %v3798 = vunpack.c.l.b16 %v3695
    %v3799 = vunpack.c.l.b16 %v3696
    %v3800 = vunpack.c.l.b16 %v3697
    %v3801 = vunpack.c.l.b16 %v3698
    %v3802 = vunpack.c.l.b16 %v3699
    %v3803 = vunpack.c.l.b16 %v3700
    %v3804 = vunpack.c.l.b16 %v3701
    %v3805 = vunpack.c.l.b16 %v3702
    %v3806 = vunpack.c.l.b16 %v3703
    %v3807 = vunpack.c.l.b16 %v3704
    %v3808 = vunpack.c.l.b16 %v3705
    %v3809 = vunpack.c.l.b16 %v3706
    %v3810 = vunpack.c.l.b16 %v3707
    %v3811 = vunpack.c.l.b16 %v3708
    %v3812 = vunpack.c.l.b16 %v3709
    %v3813 = vunpack.c.l.b16 %v3710
    %v3814 = vunpack.c.l.b16 %v3711
    %v3815 = vunpack.c.l.b16 %v3712
    %v3816 = vunpack.c.l.b16 %v3713
    %v3817 = vunpack.c.l.b16 %v3714
    %v3818 = vunpack.c.l.b16 %v3715
    %v3819 = vunpack.c.l.b16 %v3716
    %v3820 = vunpack.c.l.b16 %v3717
    %v3821 = vunpack.c.l.b16 %v3718
    %v3822 = vunpack.c.l.b16 %v3719
    %v3823 = vunpack.c.l.b16 %v3720
    %v3824 = vunpack.c.l.b16 %v3721
    %v3825 = vunpack.c.l.b16 %v3722
    %v3826 = vunpack.c.l.b16 %v3723
    %v3827 = vunpack.c.l.b16 %v3724
    %v3828 = vunpack.c.l.b16 %v3725
    %v3829 = vunpack.c.l.b16 %v3726
    %v3830 = vunpack.c.l.b16 %v3727
    %v3831 = vunpack.c.l.b16 %v3728
    %v3832 = vunpack.c.l.b16 %v3729
    %v3833 = vunpack.c.l.b16 %v3730
    %v3834 = vunpack.c.l.b16 %v3731
    %v3835 = vunpack.c.l.b16 %v3732
    %v3836 = vunpack.c.l.b16 %v3733
    %v3837 = vunpack.c.l.b16 %v3734
    %v3838 = vunpack.c.l.b16 %v3735
    %v3839 = vunpack.c.l.b16 %v3736
    %v3840 = vunpack.c.l.b16 %v3737
    %v3841 = vunpack.c.l.b16 %v3738
    %v3842 = vpack.c.b16 %v3795, %v3794
    %v3843 = vpack.c.b16 %v3797, %v3796
    %v3844 = vpack.c.b16 %v3799, %v3798
    %v3845 = vpack.c.b16 %v3801, %v3800
    %v3846 = vpack.c.b16 %v3803, %v3802
    %v3847 = vpack.c.b16 %v3805, %v3804
    %v3848 = vpack.c.b16 %v3807, %v3806
    %v3849 = vpack.c.b16 %v3809, %v3808
    %v3850 = vpack.c.b16 %v3811, %v3810
    %v3851 = vpack.c.b16 %v3813, %v3812
    %v3852 = vpack.c.b16 %v3815, %v3814
    %v3853 = vpack.c.b16 %v3817, %v3816
    %v3854 = vpack.c.b16 %v3819, %v3818
    %v3855 = vpack.c.b16 %v3821, %v3820
    %v3856 = vpack.c.b16 %v3823, %v3822
    %v3857 = vpack.c.b16 %v3825, %v3824
    %v3858 = vpack.c.b16 %v3827, %v3826
    %v3859 = vpack.c.b16 %v3829, %v3828
    %v3860 = vpack.c.b16 %v3831, %v3830
    %v3861 = vpack.c.b16 %v3833, %v3832
    %v3862 = vpack.c.b16 %v3835, %v3834
    %v3863 = vpack.c.b16 %v3837, %v3836
    %v3864 = vpack.c.b16 %v3839, %v3838
    %v3865 = vpack.c.b16 %v3841, %v3840
    %3890 = vmatprep.subr.bf16.mxu0 0
    %3891 = vmatpush1.bf16.msra.mxu0 %v3842
    %3892 = vmatprep.subr.bf16.mxu0 0
    %3893 = vmatpush1.bf16.msra.mxu0 %v3843
    %3894 = vmatprep.subr.bf16.mxu0 0
    %3895 = vmatpush1.bf16.msra.mxu0 %v3844
    %3896 = vmatprep.subr.bf16.mxu0 0
    %3897 = vmatpush1.bf16.msra.mxu0 %v3845
    %3898 = vmatprep.subr.bf16.mxu0 0
    %3899 = vmatpush1.bf16.msra.mxu0 %v3846
    %3900 = vmatprep.subr.bf16.mxu0 0
    %3901 = vmatpush1.bf16.msra.mxu0 %v3847
    %3902 = vmatprep.subr.bf16.mxu0 0
    %3903 = vmatpush1.bf16.msra.mxu0 %v3848
    %3904 = vmatprep.subr.bf16.mxu0 0
    %3905 = vmatpush1.bf16.msra.mxu0 %v3849
    %3906 = vmatprep.subr.bf16.mxu0 0
    %3907 = vmatpush1.bf16.msra.mxu0 %v3850
    %3908 = vmatprep.subr.bf16.mxu0 0
    %3909 = vmatpush1.bf16.msra.mxu0 %v3851
    %3910 = vmatprep.subr.bf16.mxu0 0
    %3911 = vmatpush1.bf16.msra.mxu0 %v3852
    %3912 = vmatprep.subr.bf16.mxu0 0
    %3913 = vmatpush1.bf16.msra.mxu0 %v3853
    %3914 = vmatprep.subr.bf16.mxu0 0
    %3915 = vmatpush1.bf16.msra.mxu0 %v3854
    %3916 = vmatprep.subr.bf16.mxu0 0
    %3917 = vmatpush1.bf16.msra.mxu0 %v3855
    %3918 = vmatprep.subr.bf16.mxu0 0
    %3919 = vmatpush1.bf16.msra.mxu0 %v3856
    %3920 = vmatprep.subr.bf16.mxu0 0
    %3921 = vmatpush1.bf16.msra.mxu0 %v3857
    %3922 = vmatprep.mubr.bf16.mxu0 %v3689
    %3923 = vmatmul.mubr.bf16.gmra.mrb[0].mxu0 %v3688
    %v3924 = vpop.f32.mrb[0].mxu0
    %v3925 = vadd.f32 %v3744, %v3924
    %v3926 = vpop.f32.mrb[0].mxu0
    %v3927 = vpop.f32.mrb[0].mxu0
    %v3928 = vadd.f32 %v3744, %v3927
    %v3929 = vpop.f32.mrb[0].mxu0
    %3930 = vdwg.mxu0
    %3931 = vmatprep.subr.bf16.mxu0 0
    %3932 = vmatpush1.bf16.msra.mxu0 %v3858
    %3933 = vmatprep.subr.bf16.mxu0 0
    %3934 = vmatpush1.bf16.msra.mxu0 %v3859
    %3935 = vmatprep.subr.bf16.mxu0 0
    %3936 = vmatpush1.bf16.msra.mxu0 %v3860
    %3937 = vmatprep.subr.bf16.mxu0 0
    %3938 = vmatpush1.bf16.msra.mxu0 %v3861
    %3939 = vmatprep.subr.bf16.mxu0 0
    %3940 = vmatpush1.bf16.msra.mxu0 %v3862
    %3941 = vmatprep.subr.bf16.mxu0 0
    %3942 = vmatpush1.bf16.msra.mxu0 %v3863
    %3943 = vmatprep.subr.bf16.mxu0 0
    %3944 = vmatpush1.bf16.msra.mxu0 %v3864
    %3945 = vmatprep.subr.bf16.mxu0 0
    %3946 = vmatpush1.bf16.msra.mxu0 %v3865
    %3947 = vmatprep.subr.bf16.mxu0 0
    %3948 = vmatpush1.bf16.msra.mxu0 0
    %3949 = vmatprep.subr.bf16.mxu0 0
    %3950 = vmatpush1.bf16.msra.mxu0 0
    %3951 = vmatprep.subr.bf16.mxu0 0
    %3952 = vmatpush1.bf16.msra.mxu0 0
    %3953 = vmatprep.subr.bf16.mxu0 0
    %3954 = vmatpush1.bf16.msra.mxu0 0
    %3955 = vmatprep.subr.bf16.mxu0 0
    %3956 = vmatpush1.bf16.msra.mxu0 0
    %3957 = vmatprep.subr.bf16.mxu0 0
    %3958 = vmatpush1.bf16.msra.mxu0 0
    %3959 = vmatprep.subr.bf16.mxu0 0
    %3960 = vmatpush1.bf16.msra.mxu0 0
    %3961 = vmatprep.subr.bf16.mxu0 0
    %3962 = vmatpush1.bf16.msra.mxu0 0
    %3963 = vmatprep.mubr.bf16.mxu0 0
    %3964 = vmatmul.mubr.bf16.gmra.mrb[0].mxu0 %v3690
    %v3965 = vpop.f32.mrb[0].mxu0
    %v3966 = vadd.f32 %v3925, %v3965
    %v3967 = vpop.f32.mrb[0].mxu0
    %v3968 = vpop.f32.mrb[0].mxu0
    %v3969 = vadd.f32 %v3928, %v3968
    %v3970 = vpop.f32.mrb[0].mxu0
    %3971 = vdwg.mxu0
    %v3972 = vmax.f32 %v3966, 0.0
    %v3973 = vmax.f32 %v3969, 0.0
    %v3975 = vrot.slane %v3972, 7
    %v3977 = vsel %vm848, 0.0, %v3975
    %v3978 = vsel %vm1283, %v3977, 0.0
    %v3980 = vrot.slane %v3978, 1
    %v3982 = vrot.slane %v3978, 2
    %v3985 = vrot.slane %v3972, 5
    %v3986 = vrot.slane %v3973, 5
    %v3987 = vsel %vm739, %v3985, %v3986
    %v3989 = vsel %vm848, 0.0, %v3987
    %v3990 = vsel %vm1283, %v3989, 0.0
    %v3992 = vrot.slane %v3990, 1
    %v3993 = vrot.slane %v3990, 2
    %v3994 = vrot.slane %v3992, 2
    %v3995 = vrot.slane %v3993, 2
    %v3999 = vsel %vm1539, %v3978, %v3993
    %v4000 = vsel %vm1539, %v3980, %v3994
    %v4001 = vsel %vm1539, %v3982, %v3995
    %v4002 = vpack.c.bf16 %v3993, %v3999
    %v4003 = vpack.c.bf16 %v3994, %v4000
    %v4004 = vpack.c.bf16 %v3995, %v4001
    %v4005 = vld [vmem:[#allocation9] sm:$0xf]
    %v4006 = vld [vmem:[#allocation9 + $0x4] sm:$0xf]
    %v4007 = vld [vmem:[#allocation9 + $0x8] sm:$0xf]
    %v4008 = vld [vmem:[#allocation9 + $0xc] sm:$0xf]
    %v4009 = vld [vmem:[#allocation9 + $0x10] sm:$0xf]
    %v4010 = vld [vmem:[#allocation9 + $0x14] sm:$0xf]
    %v4011 = vld [vmem:[#allocation9 + $0x18] sm:$0xf]
    %v4012 = vld [vmem:[#allocation9 + $0x1c] sm:$0xf]
    %v4013 = vld [vmem:[#allocation9 + $0x20] sm:$0xf]
    %v4014 = vld [vmem:[#allocation9 + $0x24] sm:$0xf]
    %v4015 = vld [vmem:[#allocation9 + $0x28] sm:$0xf]
    %v4016 = vld [vmem:[#allocation9 + $0x2c] sm:$0xf]
    %v4017 = vld [vmem:[#allocation9 + $0x30] sm:$0xf]
    %v4018 = vld [vmem:[#allocation9 + $0x34] sm:$0xf]
    %v4019 = vld [vmem:[#allocation9 + $0x38] sm:$0xf]
    %v4020 = vld [vmem:[#allocation9 + $0x3c] sm:$0xf]
    %v4021 = vld [vmem:[#allocation9 + $0x40] sm:$0xf]
    %v4022 = vld [vmem:[#allocation9 + $0x44] sm:$0xf]
    %v4023 = vld [vmem:[#allocation9 + $0x48] sm:$0xf]
    %v4024 = vld [vmem:[#allocation9 + $0x4c] sm:$0xf]
    %v4025 = vld [vmem:[#allocation9 + $0x50] sm:$0xf]
    %v4026 = vld [vmem:[#allocation9 + $0x54] sm:$0xf]
    %v4027 = vld [vmem:[#allocation9 + $0x58] sm:$0xf]
    %v4028 = vld [vmem:[#allocation9 + $0x5c] sm:$0xf]
    %v4029 = vld [vmem:[#allocation9 + $0x60] sm:$0xf]
    %v4030 = vld [vmem:[#allocation9 + $0x64] sm:$0xf]
    %v4031 = vld [vmem:[#allocation9 + $0x68] sm:$0xf]
    %v4032 = vld [vmem:[#allocation9 + $0x6c] sm:$0xf]
    %v4033 = vld [vmem:[#allocation9 + $0x70] sm:$0xf]
    %v4034 = vld [vmem:[#allocation9 + $0x74] sm:$0xf]
    %v4035 = vld [vmem:[#allocation9 + $0x78] sm:$0xf]
    %v4036 = vld [vmem:[#allocation9 + $0x7c] sm:$0xf]
    %v4037 = vld [vmem:[#allocation9 + $0x80] sm:$0xf]
    %v4038 = vld [vmem:[#allocation9 + $0x84] sm:$0xf]
    %v4039 = vld [vmem:[#allocation9 + $0x88] sm:$0xf]
    %v4040 = vld [vmem:[#allocation9 + $0x8c] sm:$0xf]
    %v4041 = vld [vmem:[#allocation9 + $0x90] sm:$0xf]
    %v4042 = vld [vmem:[#allocation9 + $0x94] sm:$0xf]
    %v4043 = vld [vmem:[#allocation9 + $0x98] sm:$0xf]
    %v4044 = vld [vmem:[#allocation9 + $0x9c] sm:$0xf]
    %v4045 = vld [vmem:[#allocation9 + $0xa0] sm:$0xf]
    %v4046 = vld [vmem:[#allocation9 + $0xa4] sm:$0xf]
    %v4047 = vld [vmem:[#allocation9 + $0xa8] sm:$0xf]
    %v4048 = vld [vmem:[#allocation9 + $0xac] sm:$0xf]
    %v4049 = vld [vmem:[#allocation9 + $0xb0] sm:$0xf]
    %v4050 = vld [vmem:[#allocation9 + $0xb4] sm:$0xf]
    %v4051 = vld [vmem:[#allocation9 + $0xb8] sm:$0xf]
    %v4052 = vld [vmem:[#allocation9 + $0xbc] sm:$0xf]
    %v4053 = vld [vmem:[%s11] sm:$0x1]
    %v4055 = vlaneseq
    %v4056 = vshrl.u32 %v4055, 7
    %v4057 = vsub.s32 0, %v4056
    %v4058 = vrot.slane %v4053, %v4057
    %v4108 = vunpack.c.l.b16 %v4005
    %v4109 = vunpack.c.l.b16 %v4006
    %v4110 = vunpack.c.l.b16 %v4007
    %v4111 = vunpack.c.l.b16 %v4008
    %v4112 = vunpack.c.l.b16 %v4009
    %v4113 = vunpack.c.l.b16 %v4010
    %v4114 = vunpack.c.l.b16 %v4011
    %v4115 = vunpack.c.l.b16 %v4012
    %v4116 = vunpack.c.l.b16 %v4013
    %v4117 = vunpack.c.l.b16 %v4014
    %v4118 = vunpack.c.l.b16 %v4015
    %v4119 = vunpack.c.l.b16 %v4016
    %v4120 = vunpack.c.l.b16 %v4017
    %v4121 = vunpack.c.l.b16 %v4018
    %v4122 = vunpack.c.l.b16 %v4019
    %v4123 = vunpack.c.l.b16 %v4020
    %v4124 = vunpack.c.l.b16 %v4021
    %v4125 = vunpack.c.l.b16 %v4022
    %v4126 = vunpack.c.l.b16 %v4023
    %v4127 = vunpack.c.l.b16 %v4024
    %v4128 = vunpack.c.l.b16 %v4025
    %v4129 = vunpack.c.l.b16 %v4026
    %v4130 = vunpack.c.l.b16 %v4027
    %v4131 = vunpack.c.l.b16 %v4028
    %v4132 = vunpack.c.l.b16 %v4029
    %v4133 = vunpack.c.l.b16 %v4030
    %v4134 = vunpack.c.l.b16 %v4031
    %v4135 = vunpack.c.l.b16 %v4032
    %v4136 = vunpack.c.l.b16 %v4033
    %v4137 = vunpack.c.l.b16 %v4034
    %v4138 = vunpack.c.l.b16 %v4035
    %v4139 = vunpack.c.l.b16 %v4036
    %v4140 = vunpack.c.l.b16 %v4037
    %v4141 = vunpack.c.l.b16 %v4038
    %v4142 = vunpack.c.l.b16 %v4039
    %v4143 = vunpack.c.l.b16 %v4040
    %v4144 = vunpack.c.l.b16 %v4041
    %v4145 = vunpack.c.l.b16 %v4042
    %v4146 = vunpack.c.l.b16 %v4043
    %v4147 = vunpack.c.l.b16 %v4044
    %v4148 = vunpack.c.l.b16 %v4045
    %v4149 = vunpack.c.l.b16 %v4046
    %v4150 = vunpack.c.l.b16 %v4047
    %v4151 = vunpack.c.l.b16 %v4048
    %v4152 = vunpack.c.l.b16 %v4049
    %v4153 = vunpack.c.l.b16 %v4050
    %v4154 = vunpack.c.l.b16 %v4051
    %v4155 = vunpack.c.l.b16 %v4052
    %v4156 = vpack.c.b16 %v4109, %v4108
    %v4157 = vpack.c.b16 %v4111, %v4110
    %v4158 = vpack.c.b16 %v4113, %v4112
    %v4159 = vpack.c.b16 %v4115, %v4114
    %v4160 = vpack.c.b16 %v4117, %v4116
    %v4161 = vpack.c.b16 %v4119, %v4118
    %v4162 = vpack.c.b16 %v4121, %v4120
    %v4163 = vpack.c.b16 %v4123, %v4122
    %v4164 = vpack.c.b16 %v4125, %v4124
    %v4165 = vpack.c.b16 %v4127, %v4126
    %v4166 = vpack.c.b16 %v4129, %v4128
    %v4167 = vpack.c.b16 %v4131, %v4130
    %v4168 = vpack.c.b16 %v4133, %v4132
    %v4169 = vpack.c.b16 %v4135, %v4134
    %v4170 = vpack.c.b16 %v4137, %v4136
    %v4171 = vpack.c.b16 %v4139, %v4138
    %v4172 = vpack.c.b16 %v4141, %v4140
    %v4173 = vpack.c.b16 %v4143, %v4142
    %v4174 = vpack.c.b16 %v4145, %v4144
    %v4175 = vpack.c.b16 %v4147, %v4146
    %v4176 = vpack.c.b16 %v4149, %v4148
    %v4177 = vpack.c.b16 %v4151, %v4150
    %v4178 = vpack.c.b16 %v4153, %v4152
    %v4179 = vpack.c.b16 %v4155, %v4154
    %4204 = vmatprep.subr.bf16.mxu0 0
    %4205 = vmatpush1.bf16.msra.mxu0 %v4156
    %4206 = vmatprep.subr.bf16.mxu0 0
    %4207 = vmatpush1.bf16.msra.mxu0 %v4157
    %4208 = vmatprep.subr.bf16.mxu0 0
    %4209 = vmatpush1.bf16.msra.mxu0 %v4158
    %4210 = vmatprep.subr.bf16.mxu0 0
    %4211 = vmatpush1.bf16.msra.mxu0 %v4159
    %4212 = vmatprep.subr.bf16.mxu0 0
    %4213 = vmatpush1.bf16.msra.mxu0 %v4160
    %4214 = vmatprep.subr.bf16.mxu0 0
    %4215 = vmatpush1.bf16.msra.mxu0 %v4161
    %4216 = vmatprep.subr.bf16.mxu0 0
    %4217 = vmatpush1.bf16.msra.mxu0 %v4162
    %4218 = vmatprep.subr.bf16.mxu0 0
    %4219 = vmatpush1.bf16.msra.mxu0 %v4163
    %4220 = vmatprep.subr.bf16.mxu0 0
    %4221 = vmatpush1.bf16.msra.mxu0 %v4164
    %4222 = vmatprep.subr.bf16.mxu0 0
    %4223 = vmatpush1.bf16.msra.mxu0 %v4165
    %4224 = vmatprep.subr.bf16.mxu0 0
    %4225 = vmatpush1.bf16.msra.mxu0 %v4166
    %4226 = vmatprep.subr.bf16.mxu0 0
    %4227 = vmatpush1.bf16.msra.mxu0 %v4167
    %4228 = vmatprep.subr.bf16.mxu0 0
    %4229 = vmatpush1.bf16.msra.mxu0 %v4168
    %4230 = vmatprep.subr.bf16.mxu0 0
    %4231 = vmatpush1.bf16.msra.mxu0 %v4169
    %4232 = vmatprep.subr.bf16.mxu0 0
    %4233 = vmatpush1.bf16.msra.mxu0 %v4170
    %4234 = vmatprep.subr.bf16.mxu0 0
    %4235 = vmatpush1.bf16.msra.mxu0 %v4171
    %4236 = vmatprep.mubr.bf16.mxu0 %v4003
    %4237 = vmatmul.mubr.bf16.gmra.mrb[0].mxu0 %v4002
    %v4238 = vpop.f32.mrb[0].mxu0
    %v4239 = vadd.f32 %v4058, %v4238
    %v4240 = vpop.f32.mrb[0].mxu0
    %v4241 = vpop.f32.mrb[0].mxu0
    %v4242 = vadd.f32 %v4058, %v4241
    %v4243 = vpop.f32.mrb[0].mxu0
    %4244 = vdwg.mxu0
    %4245 = vmatprep.subr.bf16.mxu0 0
    %4246 = vmatpush1.bf16.msra.mxu0 %v4172
    %4247 = vmatprep.subr.bf16.mxu0 0
    %4248 = vmatpush1.bf16.msra.mxu0 %v4173
    %4249 = vmatprep.subr.bf16.mxu0 0
    %4250 = vmatpush1.bf16.msra.mxu0 %v4174
    %4251 = vmatprep.subr.bf16.mxu0 0
    %4252 = vmatpush1.bf16.msra.mxu0 %v4175
    %4253 = vmatprep.subr.bf16.mxu0 0
    %4254 = vmatpush1.bf16.msra.mxu0 %v4176
    %4255 = vmatprep.subr.bf16.mxu0 0
    %4256 = vmatpush1.bf16.msra.mxu0 %v4177
    %4257 = vmatprep.subr.bf16.mxu0 0
    %4258 = vmatpush1.bf16.msra.mxu0 %v4178
    %4259 = vmatprep.subr.bf16.mxu0 0
    %4260 = vmatpush1.bf16.msra.mxu0 %v4179
    %4261 = vmatprep.subr.bf16.mxu0 0
    %4262 = vmatpush1.bf16.msra.mxu0 0
    %4263 = vmatprep.subr.bf16.mxu0 0
    %4264 = vmatpush1.bf16.msra.mxu0 0
    %4265 = vmatprep.subr.bf16.mxu0 0
    %4266 = vmatpush1.bf16.msra.mxu0 0
    %4267 = vmatprep.subr.bf16.mxu0 0
    %4268 = vmatpush1.bf16.msra.mxu0 0
    %4269 = vmatprep.subr.bf16.mxu0 0
    %4270 = vmatpush1.bf16.msra.mxu0 0
    %4271 = vmatprep.subr.bf16.mxu0 0
    %4272 = vmatpush1.bf16.msra.mxu0 0
    %4273 = vmatprep.subr.bf16.mxu0 0
    %4274 = vmatpush1.bf16.msra.mxu0 0
    %4275 = vmatprep.subr.bf16.mxu0 0
    %4276 = vmatpush1.bf16.msra.mxu0 0
    %4277 = vmatprep.mubr.bf16.mxu0 0
    %4278 = vmatmul.mubr.bf16.gmra.mrb[0].mxu0 %v4004
    %v4279 = vpop.f32.mrb[0].mxu0
    %v4280 = vadd.f32 %v4239, %v4279
    %v4281 = vpop.f32.mrb[0].mxu0
    %v4282 = vpop.f32.mrb[0].mxu0
    %v4283 = vadd.f32 %v4242, %v4282
    %v4284 = vpop.f32.mrb[0].mxu0
    %4285 = vdwg.mxu0
    %v4286 = vmax.f32 %v4280, 0.0
    %v4287 = vmax.f32 %v4283, 0.0
    %v4289 = vrot.slane %v4286, 7
    %v4291 = vsel %vm848, 0.0, %v4289
    %v4292 = vsel %vm1283, %v4291, 0.0
    %v4294 = vrot.slane %v4292, 1
    %v4296 = vrot.slane %v4292, 2
    %v4299 = vrot.slane %v4286, 5
    %v4300 = vrot.slane %v4287, 5
    %v4301 = vsel %vm739, %v4299, %v4300
    %v4303 = vsel %vm848, 0.0, %v4301
    %v4304 = vsel %vm1283, %v4303, 0.0
    %v4306 = vrot.slane %v4304, 1
    %v4307 = vrot.slane %v4304, 2
    %v4308 = vrot.slane %v4306, 2
    %v4309 = vrot.slane %v4307, 2
    %v4313 = vsel %vm1539, %v4292, %v4307
    %v4314 = vsel %vm1539, %v4294, %v4308
    %v4315 = vsel %vm1539, %v4296, %v4309
    %v4316 = vpack.c.bf16 %v4307, %v4313
    %v4317 = vpack.c.bf16 %v4308, %v4314
    %v4318 = vpack.c.bf16 %v4309, %v4315
    %v4319 = vld [vmem:[#allocation10] sm:$0xf]
    %v4320 = vld [vmem:[#allocation10 + $0x4] sm:$0xf]
    %v4321 = vld [vmem:[#allocation10 + $0x8] sm:$0xf]
    %v4322 = vld [vmem:[#allocation10 + $0xc] sm:$0xf]
    %v4323 = vld [vmem:[#allocation10 + $0x10] sm:$0xf]
    %v4324 = vld [vmem:[#allocation10 + $0x14] sm:$0xf]
    %v4325 = vld [vmem:[#allocation10 + $0x18] sm:$0xf]
    %v4326 = vld [vmem:[#allocation10 + $0x1c] sm:$0xf]
    %v4327 = vld [vmem:[#allocation10 + $0x20] sm:$0xf]
    %v4328 = vld [vmem:[#allocation10 + $0x24] sm:$0xf]
    %v4329 = vld [vmem:[#allocation10 + $0x28] sm:$0xf]
    %v4330 = vld [vmem:[#allocation10 + $0x2c] sm:$0xf]
    %v4331 = vld [vmem:[#allocation10 + $0x30] sm:$0xf]
    %v4332 = vld [vmem:[#allocation10 + $0x34] sm:$0xf]
    %v4333 = vld [vmem:[#allocation10 + $0x38] sm:$0xf]
    %v4334 = vld [vmem:[#allocation10 + $0x3c] sm:$0xf]
    %v4335 = vld [vmem:[#allocation10 + $0x40] sm:$0xf]
    %v4336 = vld [vmem:[#allocation10 + $0x44] sm:$0xf]
    %v4337 = vld [vmem:[#allocation10 + $0x48] sm:$0xf]
    %v4338 = vld [vmem:[#allocation10 + $0x4c] sm:$0xf]
    %v4339 = vld [vmem:[#allocation10 + $0x50] sm:$0xf]
    %v4340 = vld [vmem:[#allocation10 + $0x54] sm:$0xf]
    %v4341 = vld [vmem:[#allocation10 + $0x58] sm:$0xf]
    %v4342 = vld [vmem:[#allocation10 + $0x5c] sm:$0xf]
    %v4343 = vld [vmem:[#allocation10 + $0x60] sm:$0xf]
    %v4344 = vld [vmem:[#allocation10 + $0x64] sm:$0xf]
    %v4345 = vld [vmem:[#allocation10 + $0x68] sm:$0xf]
    %v4346 = vld [vmem:[#allocation10 + $0x6c] sm:$0xf]
    %v4347 = vld [vmem:[#allocation10 + $0x70] sm:$0xf]
    %v4348 = vld [vmem:[#allocation10 + $0x74] sm:$0xf]
    %v4349 = vld [vmem:[#allocation10 + $0x78] sm:$0xf]
    %v4350 = vld [vmem:[#allocation10 + $0x7c] sm:$0xf]
    %v4351 = vld [vmem:[#allocation10 + $0x80] sm:$0xf]
    %v4352 = vld [vmem:[#allocation10 + $0x84] sm:$0xf]
    %v4353 = vld [vmem:[#allocation10 + $0x88] sm:$0xf]
    %v4354 = vld [vmem:[#allocation10 + $0x8c] sm:$0xf]
    %v4355 = vld [vmem:[#allocation10 + $0x90] sm:$0xf]
    %v4356 = vld [vmem:[#allocation10 + $0x94] sm:$0xf]
    %v4357 = vld [vmem:[#allocation10 + $0x98] sm:$0xf]
    %v4358 = vld [vmem:[#allocation10 + $0x9c] sm:$0xf]
    %v4359 = vld [vmem:[#allocation10 + $0xa0] sm:$0xf]
    %v4360 = vld [vmem:[#allocation10 + $0xa4] sm:$0xf]
    %v4361 = vld [vmem:[#allocation10 + $0xa8] sm:$0xf]
    %v4362 = vld [vmem:[#allocation10 + $0xac] sm:$0xf]
    %v4363 = vld [vmem:[#allocation10 + $0xb0] sm:$0xf]
    %v4364 = vld [vmem:[#allocation10 + $0xb4] sm:$0xf]
    %v4365 = vld [vmem:[#allocation10 + $0xb8] sm:$0xf]
    %v4366 = vld [vmem:[#allocation10 + $0xbc] sm:$0xf]
    %v4367 = vld [vmem:[%s13] sm:$0x1]
    %v4369 = vlaneseq
    %v4370 = vshrl.u32 %v4369, 7
    %v4371 = vsub.s32 0, %v4370
    %v4372 = vrot.slane %v4367, %v4371
    %v4422 = vunpack.c.l.b16 %v4319
    %v4423 = vunpack.c.l.b16 %v4320
    %v4424 = vunpack.c.l.b16 %v4321
    %v4425 = vunpack.c.l.b16 %v4322
    %v4426 = vunpack.c.l.b16 %v4323
    %v4427 = vunpack.c.l.b16 %v4324
    %v4428 = vunpack.c.l.b16 %v4325
    %v4429 = vunpack.c.l.b16 %v4326
    %v4430 = vunpack.c.l.b16 %v4327
    %v4431 = vunpack.c.l.b16 %v4328
    %v4432 = vunpack.c.l.b16 %v4329
    %v4433 = vunpack.c.l.b16 %v4330
    %v4434 = vunpack.c.l.b16 %v4331
    %v4435 = vunpack.c.l.b16 %v4332
    %v4436 = vunpack.c.l.b16 %v4333
    %v4437 = vunpack.c.l.b16 %v4334
    %v4438 = vunpack.c.l.b16 %v4335
    %v4439 = vunpack.c.l.b16 %v4336
    %v4440 = vunpack.c.l.b16 %v4337
    %v4441 = vunpack.c.l.b16 %v4338
    %v4442 = vunpack.c.l.b16 %v4339
    %v4443 = vunpack.c.l.b16 %v4340
    %v4444 = vunpack.c.l.b16 %v4341
    %v4445 = vunpack.c.l.b16 %v4342
    %v4446 = vunpack.c.l.b16 %v4343
    %v4447 = vunpack.c.l.b16 %v4344
    %v4448 = vunpack.c.l.b16 %v4345
    %v4449 = vunpack.c.l.b16 %v4346
    %v4450 = vunpack.c.l.b16 %v4347
    %v4451 = vunpack.c.l.b16 %v4348
    %v4452 = vunpack.c.l.b16 %v4349
    %v4453 = vunpack.c.l.b16 %v4350
    %v4454 = vunpack.c.l.b16 %v4351
    %v4455 = vunpack.c.l.b16 %v4352
    %v4456 = vunpack.c.l.b16 %v4353
    %v4457 = vunpack.c.l.b16 %v4354
    %v4458 = vunpack.c.l.b16 %v4355
    %v4459 = vunpack.c.l.b16 %v4356
    %v4460 = vunpack.c.l.b16 %v4357
    %v4461 = vunpack.c.l.b16 %v4358
    %v4462 = vunpack.c.l.b16 %v4359
    %v4463 = vunpack.c.l.b16 %v4360
    %v4464 = vunpack.c.l.b16 %v4361
    %v4465 = vunpack.c.l.b16 %v4362
    %v4466 = vunpack.c.l.b16 %v4363
    %v4467 = vunpack.c.l.b16 %v4364
    %v4468 = vunpack.c.l.b16 %v4365
    %v4469 = vunpack.c.l.b16 %v4366
    %v4470 = vpack.c.b16 %v4423, %v4422
    %v4471 = vpack.c.b16 %v4425, %v4424
    %v4472 = vpack.c.b16 %v4427, %v4426
    %v4473 = vpack.c.b16 %v4429, %v4428
    %v4474 = vpack.c.b16 %v4431, %v4430
    %v4475 = vpack.c.b16 %v4433, %v4432
    %v4476 = vpack.c.b16 %v4435, %v4434
    %v4477 = vpack.c.b16 %v4437, %v4436
    %v4478 = vpack.c.b16 %v4439, %v4438
    %v4479 = vpack.c.b16 %v4441, %v4440
    %v4480 = vpack.c.b16 %v4443, %v4442
    %v4481 = vpack.c.b16 %v4445, %v4444
    %v4482 = vpack.c.b16 %v4447, %v4446
    %v4483 = vpack.c.b16 %v4449, %v4448
    %v4484 = vpack.c.b16 %v4451, %v4450
    %v4485 = vpack.c.b16 %v4453, %v4452
    %v4486 = vpack.c.b16 %v4455, %v4454
    %v4487 = vpack.c.b16 %v4457, %v4456
    %v4488 = vpack.c.b16 %v4459, %v4458
    %v4489 = vpack.c.b16 %v4461, %v4460
    %v4490 = vpack.c.b16 %v4463, %v4462
    %v4491 = vpack.c.b16 %v4465, %v4464
    %v4492 = vpack.c.b16 %v4467, %v4466
    %v4493 = vpack.c.b16 %v4469, %v4468
    %4518 = vmatprep.subr.bf16.mxu0 0
    %4519 = vmatpush1.bf16.msra.mxu0 %v4470
    %4520 = vmatprep.subr.bf16.mxu0 0
    %4521 = vmatpush1.bf16.msra.mxu0 %v4471
    %4522 = vmatprep.subr.bf16.mxu0 0
    %4523 = vmatpush1.bf16.msra.mxu0 %v4472
    %4524 = vmatprep.subr.bf16.mxu0 0
    %4525 = vmatpush1.bf16.msra.mxu0 %v4473
    %4526 = vmatprep.subr.bf16.mxu0 0
    %4527 = vmatpush1.bf16.msra.mxu0 %v4474
    %4528 = vmatprep.subr.bf16.mxu0 0
    %4529 = vmatpush1.bf16.msra.mxu0 %v4475
    %4530 = vmatprep.subr.bf16.mxu0 0
    %4531 = vmatpush1.bf16.msra.mxu0 %v4476
    %4532 = vmatprep.subr.bf16.mxu0 0
    %4533 = vmatpush1.bf16.msra.mxu0 %v4477
    %4534 = vmatprep.subr.bf16.mxu0 0
    %4535 = vmatpush1.bf16.msra.mxu0 %v4478
    %4536 = vmatprep.subr.bf16.mxu0 0
    %4537 = vmatpush1.bf16.msra.mxu0 %v4479
    %4538 = vmatprep.subr.bf16.mxu0 0
    %4539 = vmatpush1.bf16.msra.mxu0 %v4480
    %4540 = vmatprep.subr.bf16.mxu0 0
    %4541 = vmatpush1.bf16.msra.mxu0 %v4481
    %4542 = vmatprep.subr.bf16.mxu0 0
    %4543 = vmatpush1.bf16.msra.mxu0 %v4482
    %4544 = vmatprep.subr.bf16.mxu0 0
    %4545 = vmatpush1.bf16.msra.mxu0 %v4483
    %4546 = vmatprep.subr.bf16.mxu0 0
    %4547 = vmatpush1.bf16.msra.mxu0 %v4484
    %4548 = vmatprep.subr.bf16.mxu0 0
    %4549 = vmatpush1.bf16.msra.mxu0 %v4485
    %4550 = vmatprep.mubr.bf16.mxu0 %v4317
    %4551 = vmatmul.mubr.bf16.gmra.mrb[0].mxu0 %v4316
    %v4552 = vpop.f32.mrb[0].mxu0
    %v4553 = vadd.f32 %v4372, %v4552
    %v4554 = vpop.f32.mrb[0].mxu0
    %v4555 = vpop.f32.mrb[0].mxu0
    %v4556 = vadd.f32 %v4372, %v4555
    %v4557 = vpop.f32.mrb[0].mxu0
    %4558 = vdwg.mxu0
    %4559 = vmatprep.subr.bf16.mxu0 0
    %4560 = vmatpush1.bf16.msra.mxu0 %v4486
    %4561 = vmatprep.subr.bf16.mxu0 0
    %4562 = vmatpush1.bf16.msra.mxu0 %v4487
    %4563 = vmatprep.subr.bf16.mxu0 0
    %4564 = vmatpush1.bf16.msra.mxu0 %v4488
    %4565 = vmatprep.subr.bf16.mxu0 0
    %4566 = vmatpush1.bf16.msra.mxu0 %v4489
    %4567 = vmatprep.subr.bf16.mxu0 0
    %4568 = vmatpush1.bf16.msra.mxu0 %v4490
    %4569 = vmatprep.subr.bf16.mxu0 0
    %4570 = vmatpush1.bf16.msra.mxu0 %v4491
    %4571 = vmatprep.subr.bf16.mxu0 0
    %4572 = vmatpush1.bf16.msra.mxu0 %v4492
    %4573 = vmatprep.subr.bf16.mxu0 0
    %4574 = vmatpush1.bf16.msra.mxu0 %v4493
    %4575 = vmatprep.subr.bf16.mxu0 0
    %4576 = vmatpush1.bf16.msra.mxu0 0
    %4577 = vmatprep.subr.bf16.mxu0 0
    %4578 = vmatpush1.bf16.msra.mxu0 0
    %4579 = vmatprep.subr.bf16.mxu0 0
    %4580 = vmatpush1.bf16.msra.mxu0 0
    %4581 = vmatprep.subr.bf16.mxu0 0
    %4582 = vmatpush1.bf16.msra.mxu0 0
    %4583 = vmatprep.subr.bf16.mxu0 0
    %4584 = vmatpush1.bf16.msra.mxu0 0
    %4585 = vmatprep.subr.bf16.mxu0 0
    %4586 = vmatpush1.bf16.msra.mxu0 0
    %4587 = vmatprep.subr.bf16.mxu0 0
    %4588 = vmatpush1.bf16.msra.mxu0 0
    %4589 = vmatprep.subr.bf16.mxu0 0
    %4590 = vmatpush1.bf16.msra.mxu0 0
    %4591 = vmatprep.mubr.bf16.mxu0 0
    %4592 = vmatmul.mubr.bf16.gmra.mrb[0].mxu0 %v4318
    %v4593 = vpop.f32.mrb[0].mxu0
    %v4594 = vadd.f32 %v4553, %v4593
    %v4595 = vpop.f32.mrb[0].mxu0
    %v4596 = vpop.f32.mrb[0].mxu0
    %v4597 = vadd.f32 %v4556, %v4596
    %v4598 = vpop.f32.mrb[0].mxu0
    %4599 = vdwg.mxu0
    %v4600 = vmax.f32 %v4594, 0.0
    %v4601 = vmax.f32 %v4597, 0.0
    %v4602 = vsel %vm1539, %v4600, -inf
    %v4603 = vrot.slane %v4602, 4
    %v4604 = vmax.f32 %v4602, %v4603
    %v4605 = vrot.slane %v4604, 2
    %v4606 = vmax.f32 %v4604, %v4605
    %v4607 = vrot.slane %v4606, 1
    %v4608 = vmax.f32 %v4606, %v4607
    %vm4609 = vcmask 1047558
    %v4610 = vsel %vm4609, %v4600, -inf
    %v4611 = vsel %vm2051, %v4601, -inf
    %v4612 = vmax.f32 %v4610, %v4611
    %v4613 = vrot.slane %v4612, 4
    %v4614 = vmax.f32 %v4612, %v4613
    %v4615 = vrot.slane %v4614, 2
    %v4616 = vmax.f32 %v4614, %v4615
    %v4617 = vrot.slane %v4616, 1
    %v4618 = vmax.f32 %v4616, %v4617
    %v4619 = vsel %vm848, %v4608, %v4618
    %v4620 = vpack.c.bf16 %v4619, %v4619
    %v4621 = vld [vmem:[#allocation12] sm:$0xf]
    %v4622 = vld [vmem:[#allocation12 + $0x4] sm:$0xf]
    %v4623 = vld [vmem:[#allocation12 + $0x8] sm:$0xf]
    %v4624 = vld [vmem:[#allocation12 + $0xc] sm:$0xf]
    %v4625 = vld [vmem:[#allocation12 + $0x10] sm:$0xf]
    %v4626 = vld [vmem:[#allocation12 + $0x14] sm:$0xf]
    %v4627 = vld [vmem:[#allocation12 + $0x18] sm:$0xf]
    %v4628 = vld [vmem:[#allocation12 + $0x1c] sm:$0xf]
    %v4629 = vld [vmem:[#allocation12 + $0x20] sm:$0xf]
    %v4630 = vld [vmem:[#allocation12 + $0x24] sm:$0xf]
    %v4631 = vld [vmem:[#allocation12 + $0x28] sm:$0xf]
    %v4632 = vld [vmem:[#allocation12 + $0x2c] sm:$0xf]
    %v4633 = vld [vmem:[#allocation12 + $0x30] sm:$0xf]
    %v4634 = vld [vmem:[#allocation12 + $0x34] sm:$0xf]
    %v4635 = vld [vmem:[#allocation12 + $0x38] sm:$0xf]
    %v4636 = vld [vmem:[#allocation12 + $0x3c] sm:$0xf]
    %v4637 = vld [vmem:[#allocation13] sm:$0x1]
    %v4639 = vlaneseq
    %v4640 = vshrl.u32 %v4639, 7
    %v4641 = vsub.s32 0, %v4640
    %v4642 = vrot.slane %v4637, %v4641
    %v4660 = vunpack.c.l.b16 %v4621
    %v4661 = vunpack.c.l.b16 %v4622
    %v4662 = vunpack.c.l.b16 %v4623
    %v4663 = vunpack.c.l.b16 %v4624
    %v4664 = vunpack.c.l.b16 %v4625
    %v4665 = vunpack.c.l.b16 %v4626
    %v4666 = vunpack.c.l.b16 %v4627
    %v4667 = vunpack.c.l.b16 %v4628
    %v4668 = vunpack.c.l.b16 %v4629
    %v4669 = vunpack.c.l.b16 %v4630
    %v4670 = vunpack.c.l.b16 %v4631
    %v4671 = vunpack.c.l.b16 %v4632
    %v4672 = vunpack.c.l.b16 %v4633
    %v4673 = vunpack.c.l.b16 %v4634
    %v4674 = vunpack.c.l.b16 %v4635
    %v4675 = vunpack.c.l.b16 %v4636
    %v4676 = vpack.c.b16 %v4661, %v4660
    %v4677 = vpack.c.b16 %v4663, %v4662
    %v4678 = vpack.c.b16 %v4665, %v4664
    %v4679 = vpack.c.b16 %v4667, %v4666
    %v4680 = vpack.c.b16 %v4669, %v4668
    %v4681 = vpack.c.b16 %v4671, %v4670
    %v4682 = vpack.c.b16 %v4673, %v4672
    %v4683 = vpack.c.b16 %v4675, %v4674
    %4692 = vmatprep.subr.bf16.mxu0 0
    %4693 = vmatpush1.bf16.msra.mxu0 %v4676
    %4694 = vmatprep.subr.bf16.mxu0 0
    %4695 = vmatpush1.bf16.msra.mxu0 %v4677
    %4696 = vmatprep.subr.bf16.mxu0 0
    %4697 = vmatpush1.bf16.msra.mxu0 %v4678
    %4698 = vmatprep.subr.bf16.mxu0 0
    %4699 = vmatpush1.bf16.msra.mxu0 %v4679
    %4700 = vmatprep.subr.bf16.mxu0 0
    %4701 = vmatpush1.bf16.msra.mxu0 %v4680
    %4702 = vmatprep.subr.bf16.mxu0 0
    %4703 = vmatpush1.bf16.msra.mxu0 %v4681
    %4704 = vmatprep.subr.bf16.mxu0 0
    %4705 = vmatpush1.bf16.msra.mxu0 %v4682
    %4706 = vmatprep.subr.bf16.mxu0 0
    %4707 = vmatpush1.bf16.msra.mxu0 %v4683
    %4708 = vmatprep.subr.bf16.mxu0 0
    %4709 = vmatpush1.bf16.msra.mxu0 0
    %4710 = vmatprep.subr.bf16.mxu0 0
    %4711 = vmatpush1.bf16.msra.mxu0 0
    %4712 = vmatprep.subr.bf16.mxu0 0
    %4713 = vmatpush1.bf16.msra.mxu0 0
    %4714 = vmatprep.subr.bf16.mxu0 0
    %4715 = vmatpush1.bf16.msra.mxu0 0
    %4716 = vmatprep.subr.bf16.mxu0 0
    %4717 = vmatpush1.bf16.msra.mxu0 0
    %4718 = vmatprep.subr.bf16.mxu0 0
    %4719 = vmatpush1.bf16.msra.mxu0 0
    %4720 = vmatprep.subr.bf16.mxu0 0
    %4721 = vmatpush1.bf16.msra.mxu0 0
    %4722 = vmatprep.subr.bf16.mxu0 0
    %4723 = vmatpush1.bf16.msra.mxu0 0
    %4724 = vmatprep.mubr.bf16.mxu0 0
    %4725 = vmatmul.mubr.bf16.gmra.mrb[0].mxu0 %v4620
    %v4726 = vpop.f32.mrb[0].mxu0
    %v4727 = vadd.f32 %v4642, %v4726
    %v4728 = vpop.f32.mrb[0].mxu0
    %v4729 = vpop.f32.mrb[0].mxu0
    %v4730 = vpop.f32.mrb[0].mxu0
    %4731 = vdwg.mxu0
    %v4732 = vmax.f32 %v4727, 0.0
    %v4733 = vpack.c.bf16 %v4732, %v4732
    %v4734 = vld [vmem:[%s16] sm:$0xf]
    %v4735 = vld [vmem:[%s16 + $0x4] sm:$0xf]
    %v4736 = vld [vmem:[%s16 + $0x8] sm:$0xf]
    %v4737 = vld [vmem:[%s16 + $0xc] sm:$0xf]
    %v4738 = vld [vmem:[%s16 + $0x10] sm:$0xf]
    %v4739 = vld [vmem:[%s16 + $0x14] sm:$0xf]
    %v4740 = vld [vmem:[%s16 + $0x18] sm:$0xf]
    %v4741 = vld [vmem:[%s16 + $0x1c] sm:$0xf]
    %v4742 = vld [vmem:[%s16 + $0x20] sm:$0xf]
    %v4743 = vld [vmem:[%s16 + $0x24] sm:$0xf]
    %v4744 = vld [vmem:[%s16 + $0x28] sm:$0xf]
    %v4745 = vld [vmem:[%s16 + $0x2c] sm:$0xf]
    %v4746 = vld [vmem:[%s16 + $0x30] sm:$0xf]
    %v4747 = vld [vmem:[%s16 + $0x34] sm:$0xf]
    %v4748 = vld [vmem:[%s16 + $0x38] sm:$0xf]
    %v4749 = vld [vmem:[%s16 + $0x3c] sm:$0xf]
    %v4750 = vld [vmem:[#allocation15] sm:$0x1]
    %v4752 = vlaneseq
    %v4753 = vshrl.u32 %v4752, 7
    %v4754 = vsub.s32 0, %v4753
    %v4755 = vrot.slane %v4750, %v4754
    %v4773 = vunpack.c.l.b16 %v4734
    %v4774 = vunpack.c.l.b16 %v4735
    %v4775 = vunpack.c.l.b16 %v4736
    %v4776 = vunpack.c.l.b16 %v4737
    %v4777 = vunpack.c.l.b16 %v4738
    %v4778 = vunpack.c.l.b16 %v4739
    %v4779 = vunpack.c.l.b16 %v4740
    %v4780 = vunpack.c.l.b16 %v4741
    %v4781 = vunpack.c.l.b16 %v4742
    %v4782 = vunpack.c.l.b16 %v4743
    %v4783 = vunpack.c.l.b16 %v4744
    %v4784 = vunpack.c.l.b16 %v4745
    %v4785 = vunpack.c.l.b16 %v4746
    %v4786 = vunpack.c.l.b16 %v4747
    %v4787 = vunpack.c.l.b16 %v4748
    %v4788 = vunpack.c.l.b16 %v4749
    %v4789 = vpack.c.b16 %v4774, %v4773
    %v4790 = vpack.c.b16 %v4776, %v4775
    %v4791 = vpack.c.b16 %v4778, %v4777
    %v4792 = vpack.c.b16 %v4780, %v4779
    %v4793 = vpack.c.b16 %v4782, %v4781
    %v4794 = vpack.c.b16 %v4784, %v4783
    %v4795 = vpack.c.b16 %v4786, %v4785
    %v4796 = vpack.c.b16 %v4788, %v4787
    %4805 = vmatprep.subr.bf16.mxu0 0
    %4806 = vmatpush1.bf16.msra.mxu0 %v4789
    %4807 = vmatprep.subr.bf16.mxu0 0
    %4808 = vmatpush1.bf16.msra.mxu0 %v4790
    %4809 = vmatprep.subr.bf16.mxu0 0
    %4810 = vmatpush1.bf16.msra.mxu0 %v4791
    %4811 = vmatprep.subr.bf16.mxu0 0
    %4812 = vmatpush1.bf16.msra.mxu0 %v4792
    %4813 = vmatprep.subr.bf16.mxu0 0
    %4814 = vmatpush1.bf16.msra.mxu0 %v4793
    %4815 = vmatprep.subr.bf16.mxu0 0
    %4816 = vmatpush1.bf16.msra.mxu0 %v4794
    %4817 = vmatprep.subr.bf16.mxu0 0
    %4818 = vmatpush1.bf16.msra.mxu0 %v4795
    %4819 = vmatprep.subr.bf16.mxu0 0
    %4820 = vmatpush1.bf16.msra.mxu0 %v4796
    %4821 = vmatprep.subr.bf16.mxu0 0
    %4822 = vmatpush1.bf16.msra.mxu0 0
    %4823 = vmatprep.subr.bf16.mxu0 0
    %4824 = vmatpush1.bf16.msra.mxu0 0
    %4825 = vmatprep.subr.bf16.mxu0 0
    %4826 = vmatpush1.bf16.msra.mxu0 0
    %4827 = vmatprep.subr.bf16.mxu0 0
    %4828 = vmatpush1.bf16.msra.mxu0 0
    %4829 = vmatprep.subr.bf16.mxu0 0
    %4830 = vmatpush1.bf16.msra.mxu0 0
    %4831 = vmatprep.subr.bf16.mxu0 0
    %4832 = vmatpush1.bf16.msra.mxu0 0
    %4833 = vmatprep.subr.bf16.mxu0 0
    %4834 = vmatpush1.bf16.msra.mxu0 0
    %4835 = vmatprep.subr.bf16.mxu0 0
    %4836 = vmatpush1.bf16.msra.mxu0 0
    %4837 = vmatprep.mubr.bf16.mxu0 0
    %4838 = vmatmul.mubr.bf16.gmra.mrb[0].mxu0 %v4733
    %v4839 = vpop.f32.mrb[0].mxu0
    %v4840 = vadd.f32 %v4755, %v4839
    %v4841 = vpop.f32.mrb[0].mxu0
    %v4842 = vpop.f32.mrb[0].mxu0
    %v4843 = vpop.f32.mrb[0].mxu0
    %4844 = vdwg.mxu0
    %v4845 = vmax.f32 %v4840, 0.0
    %v4846 = vld [vmem:[%s18] sm:$0xff]
    %v4847 = vld [vmem:[%s18 + $0x8] sm:$0xff]
    %v4848 = vld [vmem:[%s18 + $0x10] sm:$0xff]
    %v4849 = vld [vmem:[%s18 + $0x18] sm:$0xff]
    %v4850 = vld [vmem:[%s18 + $0x20] sm:$0xff]
    %v4851 = vld [vmem:[%s18 + $0x28] sm:$0xff]
    %v4852 = vld [vmem:[%s18 + $0x30] sm:$0xff]
    %v4853 = vld [vmem:[%s18 + $0x38] sm:$0xff]
    %v4854 = vld [vmem:[#allocation16] sm:$0x1]
    %v4856 = vlaneseq
    %v4857 = vshrl.u32 %v4856, 7
    %v4858 = vsub.s32 0, %v4857
    %v4859 = vrot.slane %v4854, %v4858
    %vm4861 = vcmask 523264
    %v4863 = vsel %vm4861, %v4845, 0
    %4865 = vmatprep.subr.mxu0 0.0
    %4866 = vmatpush1.msra.mxu0 %v4846
    %4867 = vmatprep.subr.mxu0 0.0
    %4868 = vmatpush1.msra.mxu0 %v4847
    %4869 = vmatprep.subr.mxu0 0.0
    %4870 = vmatpush1.msra.mxu0 %v4848
    %4871 = vmatprep.subr.mxu0 0.0
    %4872 = vmatpush1.msra.mxu0 %v4849
    %4873 = vmatprep.subr.mxu0 0.0
    %4874 = vmatpush1.msra.mxu0 %v4850
    %4875 = vmatprep.subr.mxu0 0.0
    %4876 = vmatpush1.msra.mxu0 %v4851
    %4877 = vmatprep.subr.mxu0 0.0
    %4878 = vmatpush1.msra.mxu0 %v4852
    %4879 = vmatprep.subr.mxu0 0.0
    %4880 = vmatpush1.msra.mxu0 %v4853
    %4881 = vmatprep.subr.mxu0 0.0
    %4882 = vmatpush1.msra.mxu0 0.0
    %4883 = vmatprep.subr.mxu0 0.0
    %4884 = vmatpush1.msra.mxu0 0.0
    %4885 = vmatprep.subr.mxu0 0.0
    %4886 = vmatpush1.msra.mxu0 0.0
    %4887 = vmatprep.subr.mxu0 0.0
    %4888 = vmatpush1.msra.mxu0 0.0
    %4889 = vmatprep.subr.mxu0 0.0
    %4890 = vmatpush1.msra.mxu0 0.0
    %4891 = vmatprep.subr.mxu0 0.0
    %4892 = vmatpush1.msra.mxu0 0.0
    %4893 = vmatprep.subr.mxu0 0.0
    %4894 = vmatpush1.msra.mxu0 0.0
    %4895 = vmatprep.subr.mxu0 0.0
    %4896 = vmatpush1.msra.mxu0 0.0
    %4897 = vmatprep.subr.mxu0 0.0
    %4898 = vmatpush1.msra.mxu0 0.0
    %4899 = vmatprep.subr.mxu0 0.0
    %4900 = vmatpush1.msra.mxu0 0.0
    %4901 = vmatprep.subr.mxu0 0.0
    %4902 = vmatpush1.msra.mxu0 0.0
    %4903 = vmatprep.subr.mxu0 0.0
    %4904 = vmatpush1.msra.mxu0 0.0
    %4905 = vmatprep.subr.mxu0 0.0
    %4906 = vmatpush1.msra.mxu0 0.0
    %4907 = vmatprep.subr.mxu0 0.0
    %4908 = vmatpush1.msra.mxu0 0.0
    %4909 = vmatprep.subr.mxu0 0.0
    %4910 = vmatpush1.msra.mxu0 0.0
    %4911 = vmatprep.subr.mxu0 0.0
    %4912 = vmatpush1.msra.mxu0 0.0
    %4913 = vmatprep.subr.mxu0 0.0
    %4914 = vmatpush1.msra.mxu0 0.0
    %4915 = vmatprep.subr.mxu0 0.0
    %4916 = vmatpush1.msra.mxu0 0.0
    %4917 = vmatprep.subr.mxu0 0.0
    %4918 = vmatpush1.msra.mxu0 0.0
    %4919 = vmatprep.subr.mxu0 0.0
    %4920 = vmatpush1.msra.mxu0 0.0
    %4921 = vmatprep.subr.mxu0 0.0
    %4922 = vmatpush1.msra.mxu0 0.0
    %4923 = vmatprep.subr.mxu0 0.0
    %4924 = vmatpush1.msra.mxu0 0.0
    %4925 = vmatprep.subr.mxu0 0.0
    %4926 = vmatpush1.msra.mxu0 0.0
    %4927 = vmatprep.subr.mxu0 0.0
    %4928 = vmatpush1.msra.mxu0 0.0
    %4929 = vmatprep.mubr.f32.mxu0 0.0
    %4930 = vmatmul.mubr.f32.gmra.mrb[0].mxu0 %v4863
    %v4931 = vpop.f32.mrb[0].mxu0
    %v4932 = vadd.f32 %v4859, %v4931
    %v4933 = vpop.f32.mrb[0].mxu0
    %4934 = vdwg.mxu0
    %vm4935 = vcmask 9216
    %4936 = vst.msk [vmem:[#allocation18] sm:$0x3] %vm4935, %v4932
    // Predicated region
    $region114: #{composite_forward.1} parent=1 // pred_check
      _
    $region115: #{composite_forward.1} parent=1 // pred_check_branch
      %4938 = sbr.rel (0) target = $region117
    $region116: #{composite_forward.1} parent=1 // pred_region
      %s4940 = ssub.s32 32, 32
      %4941 = vsyncadd [#allocation6], %s4940
      %s4943 = sshll.u32 [#allocation18], 4
      %s4944 = int_to_ptr.vmem [resolvable:$true] %s4943
      %4946 = dma.vmem_to_hbm [thread:$0]  %s4944, 32, %s20, [#allocation6]
    $region117: #{composite_forward.1} parent=1 // pred_fallthru
      _
    // Predicated region
    $region118: #{composite_forward.1} parent=1 // pred_check
      _
    $region119: #{composite_forward.1} parent=1 // pred_check_branch
      %4948 = sbr.rel (0) target = $region121
    $region120: #{composite_forward.1} parent=1 // pred_region
      %4949 = dma.done [#allocation6], 32
    $region121: #{composite_forward.1} parent=1 // pred_fallthru
      _
    %4950 = vsyncpa [#allocation5], 1
    %4951 = vsyncpa [#allocation8], 1
    %4952 = vsyncpa [#allocation11], 1
    %4953 = vsyncpa [#allocation14], 1
    %4954 = vsyncpa [#allocation17], 1
    %4955 = vsyncpa [#allocation6], 1

</llo_original>
